<compile_context>
chip_gen: v6e
topology: v6e:2x2x1
jax: 0.10.0
libtpu: 0.0.40
codegen_flags: <defaults>
</compile_context>

<pallas_src>
import math
import functools

import jax
import jax.numpy as jnp
from jax.experimental import pallas as pl
from jax.experimental.pallas import tpu as pltpu


MATMUL_DTYPE = jnp.bfloat16   # MXU operand dtype (accumulation is always f32)
LN_EPS = 1e-5
NEG_INF = -1e9


# ------------------------------ small helpers -------------------------------

def _round_up(x, m):
    return ((x + m - 1) // m) * m


def _nbytes(shape, dtype):
    n = 1
    for d in shape:
        n *= int(d)
    return n * jnp.dtype(dtype).itemsize


def _vmem_limit(est_bytes):
    # Explicit scoped-VMEM limit sized from the actual block bytes (the default
    # is only 16/32 MiB); clamp to 64 MiB so it stays within v7x physical VMEM.
    return int(min(64 << 20, max(32 << 20, round(est_bytes * 1.5))))


def _rep(shape):
    """Grid-invariant (weight/bias) block: same block everywhere, single-buffered."""
    nd = len(shape)
    idx = lambda *_: (0,) * nd
    try:
        return pl.BlockSpec(shape, idx, pipeline_mode=pl.Buffered(1))
    except (TypeError, AttributeError):   # older jax without pipeline_mode
        return pl.BlockSpec(shape, idx)


def _row_tile(M, target=512):
    """Largest multiple-of-8 divisor of M <= target, preferring >=2 grid steps."""
    cands = [t for t in range(8, min(M, target) + 1, 8) if M % t == 0]
    if not cands:
        return M
    two_step = [t for t in cands if M // t >= 2]
    return max(two_step) if two_step else max(cands)


def _q_tile(S, target=256):
    cands = [t for t in range(8, min(S, target) + 1, 8) if S % t == 0]
    return max(cands) if cands else S


def _kv_tile(S, target=512):
    # The key tile is the lane dim of the (1,1,tk) mask block -> multiple of 128
    # (or the full extent).
    cands = [t for t in range(128, min(S, target) + 1, 128) if S % t == 0]
    return max(cands) if cands else S


def _fh_tile(Fh, target=2048):
    cands = [t for t in range(128, min(Fh, target) + 1, 128) if Fh % t == 0]
    return max(cands) if cands else Fh


def _n_tile(Np, target=512):
    cands = [t for t in range(128, min(Np, target) + 1, 128) if Np % t == 0]
    return max(cands) if cands else Np


def _pad_rows(x, mult):
    M = x.shape[0]
    pad = _round_up(M, mult) - M
    if pad:
        x = jnp.pad(x, ((0, pad), (0, 0)))
    return x


def _layer_norm_f32(y, gamma, beta, eps):
    mu = jnp.mean(y, axis=-1, keepdims=True)
    var = jnp.mean((y - mu) ** 2, axis=-1, keepdims=True)
    return (y - mu) * jax.lax.rsqrt(var + eps) * gamma + beta


# --------------------- fused flash-style attention block --------------------
# One kernel = QKV projection + multi-head SDPA (online softmax over key
# tiles) + output projection + residual add + LayerNorm.

def _attn_kernel(x_ref, kv_ref, mask_ref,
                 wq_ref, bq_ref, wkv_ref, bkv_ref, wo_ref, bo_ref,
                 g_ref, bb_ref, o_ref,
                 q_scr, m_scr, l_scr, acc_scr,
                 *, num_heads, causal, eps, cdt):
    E = x_ref.shape[-1]
    tq = x_ref.shape[1]
    tk = kv_ref.shape[1]
    H = num_heads
    Dh = E // H
    qi = pl.program_id(1)
    ki = pl.program_id(2)

    @pl.when(ki == 0)
    def _init():
        # Q projection once per (batch, q-tile); 1/sqrt(Dh) is folded into wq/bq.
        q = jnp.dot(x_ref[0].astype(cdt), wq_ref[...],
                    preferred_element_type=jnp.float32) + bq_ref[...]
        q_scr[...] = q.astype(cdt)
        m_scr[...] = jnp.full(m_scr.shape, -jnp.inf, dtype=m_scr.dtype)
        l_scr[...] = jnp.zeros(l_scr.shape, dtype=l_scr.dtype)
        acc_scr[...] = jnp.zeros(acc_scr.shape, dtype=acc_scr.dtype)

    def _online_softmax_step():
        # K/V projection for this key tile (fused K|V weight -> wide matmul).
        kvp = jnp.dot(kv_ref[0].astype(cdt), wkv_ref[...],
                      preferred_element_type=jnp.float32) + bkv_ref[...]
        k = kvp[:, :E].astype(cdt)
        v = kvp[:, E:].astype(cdt)

        bias = mask_ref[0]                                    # (1, tk) additive
        if causal:
            rows = qi * tq + jax.lax.broadcasted_iota(jnp.int32, (tq, tk), 0)
            cols = ki * tk + jax.lax.broadcasted_iota(jnp.int32, (tq, tk), 1)
            bias = bias + jnp.where(rows >= cols, 0.0, NEG_INF)

        # Heads stay folded in the lane dim; per-head compute uses static lane
        # slices (no reshape/swapaxes relayout of the (S, E) activations).
        for h in range(H):
            sl = slice(h * Dh, (h + 1) * Dh)
            s = jax.lax.dot_general(q_scr[:, sl], k[:, sl],
                                    (((1,), (1,)), ((), ())),
                                    preferred_element_type=jnp.float32)
            s = s + bias
            m_prev = m_scr[:, h:h + 1]
            m_new = jnp.maximum(m_prev, jnp.max(s, axis=-1, keepdims=True))
            alpha = jnp.exp(m_prev - m_new)
            p = jnp.exp(s - m_new)
            l_scr[:, h:h + 1] = (alpha * l_scr[:, h:h + 1]
                                 + jnp.sum(p, axis=-1, keepdims=True))
            pv = jnp.dot(p.astype(cdt), v[:, sl],
                         preferred_element_type=jnp.float32)
            acc_scr[:, sl] = alpha * acc_scr[:, sl] + pv
            m_scr[:, h:h + 1] = m_new

    if causal:
        # Skip key tiles that are entirely in the masked future.
        @pl.when(ki * tk <= qi * tq + (tq - 1))
        def _():
            _online_softmax_step()
    else:
        _online_softmax_step()

    @pl.when(ki == pl.num_programs(2) - 1)
    def _finalize():
        inv_l = pl.reciprocal(l_scr[...], approx=True)        # (tq, H), EUP slot
        acc = acc_scr[...]
        o = jnp.concatenate(
            [acc[:, h * Dh:(h + 1) * Dh] * inv_l[:, h:h + 1] for h in range(H)],
            axis=1)                                           # heads folded: (tq, E)
        attn = jnp.dot(o.astype(cdt), wo_ref[...],
                       preferred_element_type=jnp.float32) + bo_ref[...]
        y = _layer_norm_f32(x_ref[0].astype(jnp.float32) + attn,
                            g_ref[...], bb_ref[...], eps)
        o_ref[0] = y.astype(o_ref.dtype)


def attention_block(x, kv, pad_mask, p_attn, gamma, beta, num_heads, causal,
                    eps=LN_EPS):
    """Fused QKV proj + flash-style SDPA + out proj + residual + LayerNorm.

    x: (B, Sq, E) queries / residual source.  kv: (B, Sk, E).
    pad_mask: additive f32 (Bm, 1, Sk) with Bm in {1, B}.  The causal mask (if
    any) is generated in-kernel from iota, never DMA'd.
    """
    B, Sq, E = x.shape
    Sk = kv.shape[1]
    Bm = pad_mask.shape[0]
    assert E % num_heads == 0
    tq = _q_tile(Sq)
    tk = _kv_tile(Sk)

    mask_map = (lambda b, qi, ki: (b, 0, ki)) if Bm == B \
        else (lambda b, qi, ki: (0, 0, ki))

    wdt = MATMUL_DTYPE
    est = (2 * _nbytes((tq, E), x.dtype) + 2 * _nbytes((tk, E), kv.dtype)
           + 2 * _nbytes((1, tk), jnp.float32)
           + 2 * _nbytes((E, E), wdt) + _nbytes((E, 2 * E), wdt)
           + 6 * _nbytes((1, E), jnp.float32) + _nbytes((1, 2 * E), jnp.float32)
           + 2 * _nbytes((tq, E), x.dtype)
           + _nbytes((tq, E), wdt) + _nbytes((tq, E), jnp.float32)
           + 2 * _nbytes((tq, num_heads), jnp.float32))

    kernel = functools.partial(_attn_kernel, num_heads=num_heads, causal=causal,
                               eps=eps, cdt=MATMUL_DTYPE)
    return pl.pallas_call(
        kernel,
        out_shape=jax.ShapeDtypeStruct((B, Sq, E), x.dtype),
        grid=(B, Sq // tq, Sk // tk),
        in_specs=[
            pl.BlockSpec((1, tq, E), lambda b, qi, ki: (b, qi, 0)),
            pl.BlockSpec((1, tk, E), lambda b, qi, ki: (b, ki, 0)),
            pl.BlockSpec((1, 1, tk), mask_map),
            _rep((E, E)), _rep((1, E)),              # wq, bq (scale pre-folded)
            _rep((E, 2 * E)), _rep((1, 2 * E)),      # wkv, bkv (fused K|V)
            _rep((E, E)), _rep((1, E)),              # wo, bo
            _rep((1, E)), _rep((1, E)),              # ln gamma, beta
        ],
        out_specs=pl.BlockSpec((1, tq, E), lambda b, qi, ki: (b, qi, 0)),
        scratch_shapes=[
            pltpu.VMEM((tq, E), MATMUL_DTYPE),          # projected Q (bf16)
            pltpu.VMEM((tq, num_heads), jnp.float32),   # online-softmax max
            pltpu.VMEM((tq, num_heads), jnp.float32),   # online-softmax denom
            pltpu.VMEM((tq, E), jnp.float32),           # output accumulator
        ],
        compiler_params=pltpu.CompilerParams(
            dimension_semantics=("parallel", "parallel", "arbitrary"),
            vmem_limit_bytes=_vmem_limit(est)),
    )(x, kv, pad_mask,
      p_attn["wq"], p_attn["bq"], p_attn["wkv"], p_attn["bkv"],
      p_attn["wo"], p_attn["bo"], gamma, beta)


# ---------------------------- fused FFN block --------------------------------
# K-tiled over the hidden dim: Linear+ReLU per tile -> accumulate second matmul
# -> residual + LayerNorm on the last K step.

def _ffn_kernel(x_ref, w1_ref, b1_ref, w2_ref, b2_ref, g_ref, bb_ref, o_ref,
                acc_ref, *, eps, cdt):
    f = pl.program_id(1)

    @pl.when(f == 0)
    def _():
        acc_ref[...] = jnp.zeros(acc_ref.shape, dtype=acc_ref.dtype)

    h = jnp.dot(x_ref[...].astype(cdt), w1_ref[...],
                preferred_element_type=jnp.float32) + b1_ref[...]
    h = jnp.maximum(h, 0.0)                            # ReLU per K-tile (exact)
    acc_ref[...] += jnp.dot(h.astype(cdt), w2_ref[...],
                            preferred_element_type=jnp.float32)

    @pl.when(f == pl.num_programs(1) - 1)
    def _():
        y = acc_ref[...] + b2_ref[...]
        y = _layer_norm_f32(x_ref[...].astype(jnp.float32) + y,
                            g_ref[...], bb_ref[...], eps)
        o_ref[...] = y.astype(o_ref.dtype)


def ffn_block(x, blk, eps=LN_EPS):
    B, S, E = x.shape
    Fh = blk["ffn_w1"].shape[1]
    x2 = _pad_rows(x.reshape(B * S, E), 8)
    Mp = x2.shape[0]
    tm = _row_tile(Mp)
    tf = _fh_tile(Fh)

    est = (2 * _nbytes((tm, E), x.dtype)
           + 2 * _nbytes((E, tf), MATMUL_DTYPE) + 2 * _nbytes((1, tf), jnp.float32)
           + 2 * _nbytes((tf, E), MATMUL_DTYPE)
           + 3 * _nbytes((1, E), jnp.float32)
           + 2 * _nbytes((tm, E), x.dtype) + _nbytes((tm, E), jnp.float32))

    kernel = functools.partial(_ffn_kernel, eps=eps, cdt=MATMUL_DTYPE)
    out = pl.pallas_call(
        kernel,
        out_shape=jax.ShapeDtypeStruct((Mp, E), x.dtype),
        grid=(Mp // tm, Fh // tf),
        in_specs=[
            pl.BlockSpec((tm, E), lambda i, f: (i, 0)),
            pl.BlockSpec((E, tf), lambda i, f: (0, f)),   # w1 K-tiled (pipelined)
            pl.BlockSpec((1, tf), lambda i, f: (0, f)),   # b1 K-tiled
            pl.BlockSpec((tf, E), lambda i, f: (f, 0)),   # w2 K-tiled (pipelined)
            _rep((1, E)), _rep((1, E)), _rep((1, E)),     # b2, gamma, beta
        ],
        out_specs=pl.BlockSpec((tm, E), lambda i, f: (i, 0)),
        scratch_shapes=[pltpu.VMEM((tm, E), jnp.float32)],
        compiler_params=pltpu.CompilerParams(
            dimension_semantics=("parallel", "arbitrary"),
            vmem_limit_bytes=_vmem_limit(est)),
    )(x2, blk["ffn_w1"], blk["ffn_b1"], blk["ffn_w2"], blk["ffn_b2"],
      blk["ln3_g"], blk["ln3_b"])
    return out[:B * S].reshape(B, S, E)


# ------------------------------ output dense ---------------------------------
# Row- and N-tiled; the weight is pre-padded so N is a multiple of 128 and every
# store is lane-dense.

def _dense_kernel(x_ref, w_ref, b_ref, o_ref, *, cdt):
    y = jnp.dot(x_ref[...].astype(cdt), w_ref[...],
                preferred_element_type=jnp.float32) + b_ref[...]
    o_ref[...] = y.astype(o_ref.dtype)


def dense(x, w, b):
    """x: (M, K) f32, w: (K, Np) bf16 with Np a multiple of 128, b: (1, Np)."""
    M0, K = x.shape
    Np = w.shape[1]
    x2 = _pad_rows(x, 8)
    Mp = x2.shape[0]
    tm = _row_tile(Mp)
    tn = _n_tile(Np)

    est = (2 * _nbytes((tm, K), x.dtype) + 2 * _nbytes((K, tn), MATMUL_DTYPE)
           + 2 * _nbytes((1, tn), jnp.float32) + 2 * _nbytes((tm, tn), x.dtype))

    kernel = functools.partial(_dense_kernel, cdt=MATMUL_DTYPE)
    out = pl.pallas_call(
        kernel,
        out_shape=jax.ShapeDtypeStruct((Mp, Np), x.dtype),
        grid=(Mp // tm, Np // tn),
        in_specs=[pl.BlockSpec((tm, K), lambda i, j: (i, 0)),
                  pl.BlockSpec((K, tn), lambda i, j: (0, j)),
                  pl.BlockSpec((1, tn), lambda i, j: (0, j))],
        out_specs=pl.BlockSpec((tm, tn), lambda i, j: (i, j)),
        compiler_params=pltpu.CompilerParams(
            dimension_semantics=("parallel", "parallel"),
            vmem_limit_bytes=_vmem_limit(est)),
    )(x2, w, b)
    return out[:M0]


# ------------------------------ model (glue) --------------------------------

def init_params(key, output_dim, embed_dim, ffn_hidden_dim, num_layers,
                num_heads):
    keys = iter(jax.random.split(key, 2 + 8 * num_layers))
    E = embed_dim
    assert E % num_heads == 0
    q_scale = 1.0 / math.sqrt(E // num_heads)   # folded into the Q projection

    def w(shape, scale=0.02, dtype=MATMUL_DTYPE):
        return (scale * jax.random.normal(next(keys), shape)).astype(dtype)

    n_pad = _round_up(output_dim, 128)          # lane-dense final-dense stores
    out_w = jnp.pad(w((E, output_dim)), ((0, 0), (0, n_pad - output_dim)))

    params = {
        "embedding": w((output_dim, E), 1.0, jnp.float32),
        "out_w": out_w,                                   # (E, n_pad) bf16
        "out_b": jnp.zeros((1, n_pad), jnp.float32),
        "blocks": [],
    }
    for _ in range(num_layers):
        blk = {}
        for name in ("self", "cross"):
            blk[name] = {
                "wq": w((E, E), 0.02 * q_scale),          # 1/sqrt(Dh) pre-folded
                "bq": jnp.zeros((1, E), jnp.float32),
                "wkv": w((E, 2 * E)),
                "bkv": jnp.zeros((1, 2 * E), jnp.float32),
                "wo": w((E, E)),
                "bo": jnp.zeros((1, E), jnp.float32),
            }
        blk["ffn_w1"] = w((E, ffn_hidden_dim))
        blk["ffn_b1"] = jnp.zeros((1, ffn_hidden_dim), jnp.float32)
        blk["ffn_w2"] = w((ffn_hidden_dim, E))
        blk["ffn_b2"] = jnp.zeros((1, E), jnp.float32)
        for i in (1, 2, 3):
            blk[f"ln{i}_g"] = jnp.ones((1, E), jnp.float32)
            blk[f"ln{i}_b"] = jnp.zeros((1, E), jnp.float32)
        params["blocks"].append(blk)
    return params


def positional_encoding(S, E):
    pos = jnp.arange(S, dtype=jnp.float32)[:, None]
    j = jnp.arange(E)[None, :]
    rates = jnp.power(10000.0, -(2 * (j // 2)).astype(jnp.float32) / E)
    ang = pos * rates
    return jnp.where(j % 2 == 0, jnp.sin(ang), jnp.cos(ang))


def transformer_decoder_forward(params, X, encoder_state, key_padding_mask,
                                attn_mask, num_heads):
    B, S = X.shape
    V, E = params["embedding"].shape
    # TODO(synk): embedding gather has no rectangular BlockSpec; done in XLA.
    h = jnp.take(params["embedding"], X, axis=0) * math.sqrt(E)
    h = (h + positional_encoding(S, E)[None]).astype(jnp.float32)

    # The causal self-attention mask is regenerated inside the kernel with
    # broadcasted_iota (perf review) instead of being DMA'd as an (S,S) block.
    # TODO(synk): arbitrary (non-causal) attn_mask contents are not honored;
    # they would need to be passed back in as a tiled additive-bias input.
    del attn_mask
    self_mask = jnp.zeros((1, 1, S), jnp.float32)                  # no pad bias
    cross_mask = jnp.where(key_padding_mask, NEG_INF, 0.0)[:, None, :]
    cross_mask = cross_mask.astype(jnp.float32)

    for blk in params["blocks"]:
        h = attention_block(h, h, self_mask, blk["self"],
                            blk["ln1_g"], blk["ln1_b"], num_heads, causal=True)
        h = attention_block(h, encoder_state, cross_mask, blk["cross"],
                            blk["ln2_g"], blk["ln2_b"], num_heads, causal=False)
        h = ffn_block(h, blk)

    logits = dense(h.reshape(B * S, E), params["out_w"], params["out_b"])
    return logits[:, :V].reshape(B, S, V)


# ---------------------------------- main ------------------------------------

if __name__ == "__main__":
    B, S, S_enc = 2, 8, 8
    output_dim = 16      # vocab / output dim (embedding rows + final linear cols)
    embed_dim = 32
    num_heads = 4
    ffn_hidden = 64      # ffn_hidden_dim (ffn_input_dim == embed_dim)
    num_layers = 2

    key = jax.random.PRNGKey(0)
    k_param, k_x, k_enc = jax.random.split(key, 3)
    params = init_params(k_param, output_dim, embed_dim, ffn_hidden, num_layers,
                         num_heads)

    X = jax.random.randint(k_x, (B, S), 0, output_dim, dtype=jnp.int32)
    encoder_state = jax.random.normal(k_enc, (B, S_enc, embed_dim),
                                      dtype=jnp.float32)
    # float additive causal attn_mask (0 = keep, -1e9 = masked future position)
    attn_mask = jnp.triu(jnp.ones((S, S), jnp.float32), k=1) * NEG_INF
    # boolean key_padding_mask over encoder positions (True = padded)
    key_padding_mask = jnp.zeros((B, S_enc), jnp.bool_).at[1, -2:].set(True)

    fwd = jax.jit(transformer_decoder_forward, static_argnames=("num_heads",))
    out = fwd(params, X, encoder_state, key_padding_mask, attn_mask,
              num_heads=num_heads)
    out = jax.block_until_ready(out)
    assert out.shape == (B, S, output_dim), out.shape
    assert bool(jnp.all(jnp.isfinite(out)))
    print("KERNEL_OK")
</pallas_src>

<mosaic_0001>
module attributes {stable_mosaic.version = 11 : i64} {
  func.func @_attn_kernel(%arg0: i32, %arg1: i32, %arg2: i32, %arg3: memref<1x8x32xf32, #tpu.memory_space<vmem>>, %arg4: memref<1x8x32xf32, #tpu.memory_space<vmem>>, %arg5: memref<1x1x8xf32, #tpu.memory_space<vmem>>, %arg6: memref<32x32xbf16, #tpu.memory_space<vmem>>, %arg7: memref<1x32xf32, #tpu.memory_space<vmem>>, %arg8: memref<32x64xbf16, #tpu.memory_space<vmem>>, %arg9: memref<1x64xf32, #tpu.memory_space<vmem>>, %arg10: memref<32x32xbf16, #tpu.memory_space<vmem>>, %arg11: memref<1x32xf32, #tpu.memory_space<vmem>>, %arg12: memref<1x32xf32, #tpu.memory_space<vmem>>, %arg13: memref<1x32xf32, #tpu.memory_space<vmem>>, %arg14: memref<1x8x32xf32, #tpu.memory_space<vmem>>, %arg15: memref<8x32xbf16, #tpu.memory_space<vmem>>, %arg16: memref<8x4xf32, #tpu.memory_space<vmem>>, %arg17: memref<8x4xf32, #tpu.memory_space<vmem>>, %arg18: memref<8x32xf32, #tpu.memory_space<vmem>>) attributes {dimension_semantics = [#tpu.dimension_semantics<parallel>, #tpu.dimension_semantics<parallel>, #tpu.dimension_semantics<arbitrary>], iteration_bounds = array<i64: 2, 1, 1>, scalar_prefetch = 0 : i64, scratch_operands = 4 : i64, tpu.core_type = #tpu.core_type<tc>, window_params = [{transform_indices = @transform_0, window_bounds = array<i64: 1, 8, 32>}, {transform_indices = @transform_1, window_bounds = array<i64: 1, 8, 32>}, {transform_indices = @transform_2, window_bounds = array<i64: 1, 1, 8>}, {pipeline_mode = #tpu.pipeline_mode<synchronous>, transform_indices = @transform_3, window_bounds = array<i64: 32, 32>}, {pipeline_mode = #tpu.pipeline_mode<synchronous>, transform_indices = @transform_4, window_bounds = array<i64: 1, 32>}, {pipeline_mode = #tpu.pipeline_mode<synchronous>, transform_indices = @transform_5, window_bounds = array<i64: 32, 64>}, {pipeline_mode = #tpu.pipeline_mode<synchronous>, transform_indices = @transform_6, window_bounds = array<i64: 1, 64>}, {pipeline_mode = #tpu.pipeline_mode<synchronous>, transform_indices = @transform_7, window_bounds = array<i64: 32, 32>}, {pipeline_mode = #tpu.pipeline_mode<synchronous>, transform_indices = @transform_8, window_bounds = array<i64: 1, 32>}, {pipeline_mode = #tpu.pipeline_mode<synchronous>, transform_indices = @transform_9, window_bounds = array<i64: 1, 32>}, {pipeline_mode = #tpu.pipeline_mode<synchronous>, transform_indices = @transform_10, window_bounds = array<i64: 1, 32>}, {transform_indices = @transform_11, window_bounds = array<i64: 1, 8, 32>}]} {
    %c0_i32 = arith.constant 0 : i32
    %0 = arith.cmpi eq, %arg2, %c0_i32 : i32
    %1 = arith.extui %0 : i1 to i32
    %c0_i32_0 = arith.constant 0 : i32
    %2 = arith.cmpi ne, %1, %c0_i32_0 : i32
    scf.if %2 {
      %c0 = arith.constant 0 : index
      %c0_5 = arith.constant 0 : index
      %c0_6 = arith.constant 0 : index
      %12 = vector.load %arg3[%c0, %c0_5, %c0_6] : memref<1x8x32xf32, #tpu.memory_space<vmem>>, vector<1x8x32xf32>
      %13 = vector.shape_cast %12 : vector<1x8x32xf32> to vector<8x32xf32>
      %14 = arith.truncf %13 : vector<8x32xf32> to vector<8x32xbf16>
      %c0_7 = arith.constant 0 : index
      %c0_8 = arith.constant 0 : index
      %15 = vector.load %arg6[%c0_7, %c0_8] : memref<32x32xbf16, #tpu.memory_space<vmem>>, vector<32x32xbf16>
      %cst = arith.constant dense<0.000000e+00> : vector<8x32xf32>
      %16 = tpu.matmul %14, %15, %cst {dimension_numbers = #tpu.dot_dimension_numbers<[1], [0], [0], [1], [0, 0, 1, 1], [], []>} : vector<8x32xbf16>, vector<32x32xbf16>, vector<8x32xf32> -> vector<8x32xf32>
      %c0_9 = arith.constant 0 : index
      %c0_10 = arith.constant 0 : index
      %17 = vector.load %arg7[%c0_9, %c0_10] : memref<1x32xf32, #tpu.memory_space<vmem>>, vector<1x32xf32>
      %18 = vector.broadcast %17 : vector<1x32xf32> to vector<8x32xf32>
      %19 = arith.addf %16, %18 : vector<8x32xf32>
      %20 = arith.truncf %19 : vector<8x32xf32> to vector<8x32xbf16>
      %c0_11 = arith.constant 0 : index
      %c0_12 = arith.constant 0 : index
      %21 = vector.load %arg15[%c0_11, %c0_12] : memref<8x32xbf16, #tpu.memory_space<vmem>>, vector<8x32xbf16>
      tpu.vector_store %arg15[%c0_11, %c0_12], %20 {strides = array<i32>} : memref<8x32xbf16, #tpu.memory_space<vmem>>, vector<8x32xbf16>,
      %cst_13 = arith.constant 0xFF800000 : f32
      %22 = vector.broadcast %cst_13 : f32 to vector<8x4xf32>
      %c0_14 = arith.constant 0 : index
      %c0_15 = arith.constant 0 : index
      %23 = vector.load %arg16[%c0_14, %c0_15] : memref<8x4xf32, #tpu.memory_space<vmem>>, vector<8x4xf32>
      tpu.vector_store %arg16[%c0_14, %c0_15], %22 {strides = array<i32>} : memref<8x4xf32, #tpu.memory_space<vmem>>, vector<8x4xf32>,
      %cst_16 = arith.constant 0.000000e+00 : f32
      %24 = vector.broadcast %cst_16 : f32 to vector<8x4xf32>
      %c0_17 = arith.constant 0 : index
      %c0_18 = arith.constant 0 : index
      %25 = vector.load %arg17[%c0_17, %c0_18] : memref<8x4xf32, #tpu.memory_space<vmem>>, vector<8x4xf32>
      tpu.vector_store %arg17[%c0_17, %c0_18], %24 {strides = array<i32>} : memref<8x4xf32, #tpu.memory_space<vmem>>, vector<8x4xf32>,
      %cst_19 = arith.constant 0.000000e+00 : f32
      %26 = vector.broadcast %cst_19 : f32 to vector<8x32xf32>
      %c0_20 = arith.constant 0 : index
      %c0_21 = arith.constant 0 : index
      %27 = vector.load %arg18[%c0_20, %c0_21] : memref<8x32xf32, #tpu.memory_space<vmem>>, vector<8x32xf32>
      tpu.vector_store %arg18[%c0_20, %c0_21], %26 {strides = array<i32>} : memref<8x32xf32, #tpu.memory_space<vmem>>, vector<8x32xf32>,
    } else {
    }
    %c8_i32 = arith.constant 8 : i32
    %3 = arith.muli %arg2, %c8_i32 : i32
    %c8_i32_1 = arith.constant 8 : i32
    %4 = arith.muli %arg1, %c8_i32_1 : i32
    %c7_i32 = arith.constant 7 : i32
    %5 = arith.addi %4, %c7_i32 : i32
    %6 = arith.cmpi sle, %3, %5 : i32
    %7 = arith.extui %6 : i1 to i32
    %c0_i32_2 = arith.constant 0 : i32
    %8 = arith.cmpi ne, %7, %c0_i32_2 : i32
    scf.if %8 {
      %c0 = arith.constant 0 : index
      %c0_5 = arith.constant 0 : index
      %c0_6 = arith.constant 0 : index
      %12 = vector.load %arg4[%c0, %c0_5, %c0_6] : memref<1x8x32xf32, #tpu.memory_space<vmem>>, vector<1x8x32xf32>
      %13 = vector.shape_cast %12 : vector<1x8x32xf32> to vector<8x32xf32>
      %14 = arith.truncf %13 : vector<8x32xf32> to vector<8x32xbf16>
      %c0_7 = arith.constant 0 : index
      %c0_8 = arith.constant 0 : index
      %15 = vector.load %arg8[%c0_7, %c0_8] : memref<32x64xbf16, #tpu.memory_space<vmem>>, vector<32x64xbf16>
      %cst = arith.constant dense<0.000000e+00> : vector<8x64xf32>
      %16 = tpu.matmul %14, %15, %cst {dimension_numbers = #tpu.dot_dimension_numbers<[1], [0], [0], [1], [0, 0, 1, 1], [], []>} : vector<8x32xbf16>, vector<32x64xbf16>, vector<8x64xf32> -> vector<8x64xf32>
      %c0_9 = arith.constant 0 : index
      %c0_10 = arith.constant 0 : index
      %17 = vector.load %arg9[%c0_9, %c0_10] : memref<1x64xf32, #tpu.memory_space<vmem>>, vector<1x64xf32>
      %18 = vector.broadcast %17 : vector<1x64xf32> to vector<8x64xf32>
      %19 = arith.addf %16, %18 : vector<8x64xf32>
      %20 = vector.extract_strided_slice %19 {offsets = [0, 0], sizes = [8, 32], strides = [1, 1]} : vector<8x64xf32> to vector<8x32xf32>
      %21 = arith.truncf %20 : vector<8x32xf32> to vector<8x32xbf16>
      %22 = vector.extract_strided_slice %19 {offsets = [0, 32], sizes = [8, 32], strides = [1, 1]} : vector<8x64xf32> to vector<8x32xf32>
      %23 = arith.truncf %22 : vector<8x32xf32> to vector<8x32xbf16>
      %c0_11 = arith.constant 0 : index
      %c0_12 = arith.constant 0 : index
      %c0_13 = arith.constant 0 : index
      %24 = vector.load %arg5[%c0_11, %c0_12, %c0_13] : memref<1x1x8xf32, #tpu.memory_space<vmem>>, vector<1x1x8xf32>
      %25 = vector.shape_cast %24 : vector<1x1x8xf32> to vector<1x8xf32>
      %c8_i32_14 = arith.constant 8 : i32
      %26 = arith.muli %arg1, %c8_i32_14 : i32
      %27 = tpu.iota {dimensions = array<i32: 0>} : vector<8x8xi32>
      %28 = vector.broadcast %26 : i32 to vector<8x8xi32>
      %29 = arith.addi %28, %27 : vector<8x8xi32>
      %c8_i32_15 = arith.constant 8 : i32
      %30 = arith.muli %arg2, %c8_i32_15 : i32
      %31 = tpu.iota {dimensions = array<i32: 1>} : vector<8x8xi32>
      %32 = vector.broadcast %30 : i32 to vector<8x8xi32>
      %33 = arith.addi %32, %31 : vector<8x8xi32>
      %34 = arith.cmpi sge, %29, %33 : vector<8x8xi32>
      %cst_16 = arith.constant 0.000000e+00 : f32
      %cst_17 = arith.constant -1.000000e+09 : f32
      %35 = vector.broadcast %cst_16 : f32 to vector<8x8xf32>
      %36 = vector.broadcast %cst_17 : f32 to vector<8x8xf32>
      %37 = arith.select %34, %35, %36 : vector<8x8xi1>, vector<8x8xf32>
      %38 = vector.broadcast %25 : vector<1x8xf32> to vector<8x8xf32>
      %39 = arith.addf %38, %37 : vector<8x8xf32>
      %c0_18 = arith.constant 0 : index
      %c0_19 = arith.constant 0 : index
      %40 = vector.load %arg15[%c0_18, %c0_19] : memref<8x32xbf16, #tpu.memory_space<vmem>>, vector<8x8xbf16>
      %41 = vector.extract_strided_slice %21 {offsets = [0, 0], sizes = [8, 8], strides = [1, 1]} : vector<8x32xbf16> to vector<8x8xbf16>
      %cst_20 = arith.constant dense<0.000000e+00> : vector<8x8xf32>
      %42 = tpu.matmul %40, %41, %cst_20 {dimension_numbers = #tpu.dot_dimension_numbers<[1], [1], [0], [0], [0, 0, 1, 0], [], []>} : vector<8x8xbf16>, vector<8x8xbf16>, vector<8x8xf32> -> vector<8x8xf32>
      %43 = arith.addf %42, %39 : vector<8x8xf32>
      %c0_21 = arith.constant 0 : index
      %c0_22 = arith.constant 0 : index
      %44 = vector.load %arg16[%c0_21, %c0_22] : memref<8x4xf32, #tpu.memory_space<vmem>>, vector<8x1xf32>
      %cst_23 = arith.constant dense<0xFF800000> : vector<8xf32>
      %45 = vector.multi_reduction <maximumf>, %43, %cst_23 [1] : vector<8x8xf32> to vector<8xf32>
      %46 = vector.shape_cast %45 : vector<8xf32> to vector<8x1xf32>
      %47 = arith.maximumf %44, %46 : vector<8x1xf32>
      %48 = arith.subf %44, %47 : vector<8x1xf32>
      %49 = math.exp %48 : vector<8x1xf32>
      %50 = vector.broadcast %47 : vector<8x1xf32> to vector<8x8xf32>
      %51 = arith.subf %43, %50 : vector<8x8xf32>
      %52 = math.exp %51 : vector<8x8xf32>
      %c0_24 = arith.constant 0 : index
      %c0_25 = arith.constant 0 : index
      %53 = vector.load %arg17[%c0_24, %c0_25] : memref<8x4xf32, #tpu.memory_space<vmem>>, vector<8x1xf32>
      %54 = arith.mulf %49, %53 : vector<8x1xf32>
      %cst_26 = arith.constant dense<0.000000e+00> : vector<8xf32>
      %55 = vector.multi_reduction <add>, %52, %cst_26 [1] : vector<8x8xf32> to vector<8xf32>
      %56 = vector.shape_cast %55 : vector<8xf32> to vector<8x1xf32>
      %57 = arith.addf %54, %56 : vector<8x1xf32>
      %c0_27 = arith.constant 0 : index
      %c0_28 = arith.constant 0 : index
      %58 = vector.load %arg17[%c0_27, %c0_28] : memref<8x4xf32, #tpu.memory_space<vmem>>, vector<8x1xf32>
      tpu.vector_store %arg17[%c0_27, %c0_28], %57 {strides = array<i32>} : memref<8x4xf32, #tpu.memory_space<vmem>>, vector<8x1xf32>,
      %59 = arith.truncf %52 : vector<8x8xf32> to vector<8x8xbf16>
      %60 = vector.extract_strided_slice %23 {offsets = [0, 0], sizes = [8, 8], strides = [1, 1]} : vector<8x32xbf16> to vector<8x8xbf16>
      %cst_29 = arith.constant dense<0.000000e+00> : vector<8x8xf32>
      %61 = tpu.matmul %59, %60, %cst_29 {dimension_numbers = #tpu.dot_dimension_numbers<[1], [0], [0], [1], [0, 0, 1, 1], [], []>} : vector<8x8xbf16>, vector<8x8xbf16>, vector<8x8xf32> -> vector<8x8xf32>
      %c0_30 = arith.constant 0 : index
      %c0_31 = arith.constant 0 : index
      %62 = vector.load %arg18[%c0_30, %c0_31] : memref<8x32xf32, #tpu.memory_space<vmem>>, vector<8x8xf32>
      %63 = vector.broadcast %49 : vector<8x1xf32> to vector<8x8xf32>
      %64 = arith.mulf %63, %62 : vector<8x8xf32>
      %65 = arith.addf %64, %61 : vector<8x8xf32>
      %c0_32 = arith.constant 0 : index
      %c0_33 = arith.constant 0 : index
      %66 = vector.load %arg18[%c0_32, %c0_33] : memref<8x32xf32, #tpu.memory_space<vmem>>, vector<8x8xf32>
      tpu.vector_store %arg18[%c0_32, %c0_33], %65 {strides = array<i32>} : memref<8x32xf32, #tpu.memory_space<vmem>>, vector<8x8xf32>,
      %c0_34 = arith.constant 0 : index
      %c0_35 = arith.constant 0 : index
      %67 = vector.load %arg16[%c0_34, %c0_35] : memref<8x4xf32, #tpu.memory_space<vmem>>, vector<8x1xf32>
      tpu.vector_store %arg16[%c0_34, %c0_35], %47 {strides = array<i32>} : memref<8x4xf32, #tpu.memory_space<vmem>>, vector<8x1xf32>,
      %c0_36 = arith.constant 0 : index
      %c8 = arith.constant 8 : index
      %68 = vector.load %arg15[%c0_36, %c8] : memref<8x32xbf16, #tpu.memory_space<vmem>>, vector<8x8xbf16>
      %69 = vector.extract_strided_slice %21 {offsets = [0, 8], sizes = [8, 8], strides = [1, 1]} : vector<8x32xbf16> to vector<8x8xbf16>
      %cst_37 = arith.constant dense<0.000000e+00> : vector<8x8xf32>
      %70 = tpu.matmul %68, %69, %cst_37 {dimension_numbers = #tpu.dot_dimension_numbers<[1], [1], [0], [0], [0, 0, 1, 0], [], []>} : vector<8x8xbf16>, vector<8x8xbf16>, vector<8x8xf32> -> vector<8x8xf32>
      %71 = arith.addf %70, %39 : vector<8x8xf32>
      %c0_38 = arith.constant 0 : index
      %c1 = arith.constant 1 : index
      %72 = vector.load %arg16[%c0_38, %c1] : memref<8x4xf32, #tpu.memory_space<vmem>>, vector<8x1xf32>
      %cst_39 = arith.constant dense<0xFF800000> : vector<8xf32>
      %73 = vector.multi_reduction <maximumf>, %71, %cst_39 [1] : vector<8x8xf32> to vector<8xf32>
      %74 = vector.shape_cast %73 : vector<8xf32> to vector<8x1xf32>
      %75 = arith.maximumf %72, %74 : vector<8x1xf32>
      %76 = arith.subf %72, %75 : vector<8x1xf32>
      %77 = math.exp %76 : vector<8x1xf32>
      %78 = vector.broadcast %75 : vector<8x1xf32> to vector<8x8xf32>
      %79 = arith.subf %71, %78 : vector<8x8xf32>
      %80 = math.exp %79 : vector<8x8xf32>
      %c0_40 = arith.constant 0 : index
      %c1_41 = arith.constant 1 : index
      %81 = vector.load %arg17[%c0_40, %c1_41] : memref<8x4xf32, #tpu.memory_space<vmem>>, vector<8x1xf32>
      %82 = arith.mulf %77, %81 : vector<8x1xf32>
      %cst_42 = arith.constant dense<0.000000e+00> : vector<8xf32>
      %83 = vector.multi_reduction <add>, %80, %cst_42 [1] : vector<8x8xf32> to vector<8xf32>
      %84 = vector.shape_cast %83 : vector<8xf32> to vector<8x1xf32>
      %85 = arith.addf %82, %84 : vector<8x1xf32>
      %c0_43 = arith.constant 0 : index
      %c1_44 = arith.constant 1 : index
      %86 = vector.load %arg17[%c0_43, %c1_44] : memref<8x4xf32, #tpu.memory_space<vmem>>, vector<8x1xf32>
      tpu.vector_store %arg17[%c0_43, %c1_44], %85 {strides = array<i32>} : memref<8x4xf32, #tpu.memory_space<vmem>>, vector<8x1xf32>,
      %87 = arith.truncf %80 : vector<8x8xf32> to vector<8x8xbf16>
      %88 = vector.extract_strided_slice %23 {offsets = [0, 8], sizes = [8, 8], strides = [1, 1]} : vector<8x32xbf16> to vector<8x8xbf16>
      %cst_45 = arith.constant dense<0.000000e+00> : vector<8x8xf32>
      %89 = tpu.matmul %87, %88, %cst_45 {dimension_numbers = #tpu.dot_dimension_numbers<[1], [0], [0], [1], [0, 0, 1, 1], [], []>} : vector<8x8xbf16>, vector<8x8xbf16>, vector<8x8xf32> -> vector<8x8xf32>
      %c0_46 = arith.constant 0 : index
      %c8_47 = arith.constant 8 : index
      %90 = vector.load %arg18[%c0_46, %c8_47] : memref<8x32xf32, #tpu.memory_space<vmem>>, vector<8x8xf32>
      %91 = vector.broadcast %77 : vector<8x1xf32> to vector<8x8xf32>
      %92 = arith.mulf %91, %90 : vector<8x8xf32>
      %93 = arith.addf %92, %89 : vector<8x8xf32>
      %c0_48 = arith.constant 0 : index
      %c8_49 = arith.constant 8 : index
      %94 = vector.load %arg18[%c0_48, %c8_49] : memref<8x32xf32, #tpu.memory_space<vmem>>, vector<8x8xf32>
      tpu.vector_store %arg18[%c0_48, %c8_49], %93 {strides = array<i32>} : memref<8x32xf32, #tpu.memory_space<vmem>>, vector<8x8xf32>,
      %c0_50 = arith.constant 0 : index
      %c1_51 = arith.constant 1 : index
      %95 = vector.load %arg16[%c0_50, %c1_51] : memref<8x4xf32, #tpu.memory_space<vmem>>, vector<8x1xf32>
      tpu.vector_store %arg16[%c0_50, %c1_51], %75 {strides = array<i32>} : memref<8x4xf32, #tpu.memory_space<vmem>>, vector<8x1xf32>,
      %c0_52 = arith.constant 0 : index
      %c16 = arith.constant 16 : index
      %96 = vector.load %arg15[%c0_52, %c16] : memref<8x32xbf16, #tpu.memory_space<vmem>>, vector<8x8xbf16>
      %97 = vector.extract_strided_slice %21 {offsets = [0, 16], sizes = [8, 8], strides = [1, 1]} : vector<8x32xbf16> to vector<8x8xbf16>
      %cst_53 = arith.constant dense<0.000000e+00> : vector<8x8xf32>
      %98 = tpu.matmul %96, %97, %cst_53 {dimension_numbers = #tpu.dot_dimension_numbers<[1], [1], [0], [0], [0, 0, 1, 0], [], []>} : vector<8x8xbf16>, vector<8x8xbf16>, vector<8x8xf32> -> vector<8x8xf32>
      %99 = arith.addf %98, %39 : vector<8x8xf32>
      %c0_54 = arith.constant 0 : index
      %c2 = arith.constant 2 : index
      %100 = vector.load %arg16[%c0_54, %c2] : memref<8x4xf32, #tpu.memory_space<vmem>>, vector<8x1xf32>
      %cst_55 = arith.constant dense<0xFF800000> : vector<8xf32>
      %101 = vector.multi_reduction <maximumf>, %99, %cst_55 [1] : vector<8x8xf32> to vector<8xf32>
      %102 = vector.shape_cast %101 : vector<8xf32> to vector<8x1xf32>
      %103 = arith.maximumf %100, %102 : vector<8x1xf32>
      %104 = arith.subf %100, %103 : vector<8x1xf32>
      %105 = math.exp %104 : vector<8x1xf32>
      %106 = vector.broadcast %103 : vector<8x1xf32> to vector<8x8xf32>
      %107 = arith.subf %99, %106 : vector<8x8xf32>
      %108 = math.exp %107 : vector<8x8xf32>
      %c0_56 = arith.constant 0 : index
      %c2_57 = arith.constant 2 : index
      %109 = vector.load %arg17[%c0_56, %c2_57] : memref<8x4xf32, #tpu.memory_space<vmem>>, vector<8x1xf32>
      %110 = arith.mulf %105, %109 : vector<8x1xf32>
      %cst_58 = arith.constant dense<0.000000e+00> : vector<8xf32>
      %111 = vector.multi_reduction <add>, %108, %cst_58 [1] : vector<8x8xf32> to vector<8xf32>
      %112 = vector.shape_cast %111 : vector<8xf32> to vector<8x1xf32>
      %113 = arith.addf %110, %112 : vector<8x1xf32>
      %c0_59 = arith.constant 0 : index
      %c2_60 = arith.constant 2 : index
      %114 = vector.load %arg17[%c0_59, %c2_60] : memref<8x4xf32, #tpu.memory_space<vmem>>, vector<8x1xf32>
      tpu.vector_store %arg17[%c0_59, %c2_60], %113 {strides = array<i32>} : memref<8x4xf32, #tpu.memory_space<vmem>>, vector<8x1xf32>,
      %115 = arith.truncf %108 : vector<8x8xf32> to vector<8x8xbf16>
      %116 = vector.extract_strided_slice %23 {offsets = [0, 16], sizes = [8, 8], strides = [1, 1]} : vector<8x32xbf16> to vector<8x8xbf16>
      %cst_61 = arith.constant dense<0.000000e+00> : vector<8x8xf32>
      %117 = tpu.matmul %115, %116, %cst_61 {dimension_numbers = #tpu.dot_dimension_numbers<[1], [0], [0], [1], [0, 0, 1, 1], [], []>} : vector<8x8xbf16>, vector<8x8xbf16>, vector<8x8xf32> -> vector<8x8xf32>
      %c0_62 = arith.constant 0 : index
      %c16_63 = arith.constant 16 : index
      %118 = vector.load %arg18[%c0_62, %c16_63] : memref<8x32xf32, #tpu.memory_space<vmem>>, vector<8x8xf32>
      %119 = vector.broadcast %105 : vector<8x1xf32> to vector<8x8xf32>
      %120 = arith.mulf %119, %118 : vector<8x8xf32>
      %121 = arith.addf %120, %117 : vector<8x8xf32>
      %c0_64 = arith.constant 0 : index
      %c16_65 = arith.constant 16 : index
      %122 = vector.load %arg18[%c0_64, %c16_65] : memref<8x32xf32, #tpu.memory_space<vmem>>, vector<8x8xf32>
      tpu.vector_store %arg18[%c0_64, %c16_65], %121 {strides = array<i32>} : memref<8x32xf32, #tpu.memory_space<vmem>>, vector<8x8xf32>,
      %c0_66 = arith.constant 0 : index
      %c2_67 = arith.constant 2 : index
      %123 = vector.load %arg16[%c0_66, %c2_67] : memref<8x4xf32, #tpu.memory_space<vmem>>, vector<8x1xf32>
      tpu.vector_store %arg16[%c0_66, %c2_67], %103 {strides = array<i32>} : memref<8x4xf32, #tpu.memory_space<vmem>>, vector<8x1xf32>,
      %c0_68 = arith.constant 0 : index
      %c24 = arith.constant 24 : index
      %124 = vector.load %arg15[%c0_68, %c24] : memref<8x32xbf16, #tpu.memory_space<vmem>>, vector<8x8xbf16>
      %125 = vector.extract_strided_slice %21 {offsets = [0, 24], sizes = [8, 8], strides = [1, 1]} : vector<8x32xbf16> to vector<8x8xbf16>
      %cst_69 = arith.constant dense<0.000000e+00> : vector<8x8xf32>
      %126 = tpu.matmul %124, %125, %cst_69 {dimension_numbers = #tpu.dot_dimension_numbers<[1], [1], [0], [0], [0, 0, 1, 0], [], []>} : vector<8x8xbf16>, vector<8x8xbf16>, vector<8x8xf32> -> vector<8x8xf32>
      %127 = arith.addf %126, %39 : vector<8x8xf32>
      %c0_70 = arith.constant 0 : index
      %c3 = arith.constant 3 : index
      %128 = vector.load %arg16[%c0_70, %c3] : memref<8x4xf32, #tpu.memory_space<vmem>>, vector<8x1xf32>
      %cst_71 = arith.constant dense<0xFF800000> : vector<8xf32>
      %129 = vector.multi_reduction <maximumf>, %127, %cst_71 [1] : vector<8x8xf32> to vector<8xf32>
      %130 = vector.shape_cast %129 : vector<8xf32> to vector<8x1xf32>
      %131 = arith.maximumf %128, %130 : vector<8x1xf32>
      %132 = arith.subf %128, %131 : vector<8x1xf32>
      %133 = math.exp %132 : vector<8x1xf32>
      %134 = vector.broadcast %131 : vector<8x1xf32> to vector<8x8xf32>
      %135 = arith.subf %127, %134 : vector<8x8xf32>
      %136 = math.exp %135 : vector<8x8xf32>
      %c0_72 = arith.constant 0 : index
      %c3_73 = arith.constant 3 : index
      %137 = vector.load %arg17[%c0_72, %c3_73] : memref<8x4xf32, #tpu.memory_space<vmem>>, vector<8x1xf32>
      %138 = arith.mulf %133, %137 : vector<8x1xf32>
      %cst_74 = arith.constant dense<0.000000e+00> : vector<8xf32>
      %139 = vector.multi_reduction <add>, %136, %cst_74 [1] : vector<8x8xf32> to vector<8xf32>
      %140 = vector.shape_cast %139 : vector<8xf32> to vector<8x1xf32>
      %141 = arith.addf %138, %140 : vector<8x1xf32>
      %c0_75 = arith.constant 0 : index
      %c3_76 = arith.constant 3 : index
      %142 = vector.load %arg17[%c0_75, %c3_76] : memref<8x4xf32, #tpu.memory_space<vmem>>, vector<8x1xf32>
      tpu.vector_store %arg17[%c0_75, %c3_76], %141 {strides = array<i32>} : memref<8x4xf32, #tpu.memory_space<vmem>>, vector<8x1xf32>,
      %143 = arith.truncf %136 : vector<8x8xf32> to vector<8x8xbf16>
      %144 = vector.extract_strided_slice %23 {offsets = [0, 24], sizes = [8, 8], strides = [1, 1]} : vector<8x32xbf16> to vector<8x8xbf16>
      %cst_77 = arith.constant dense<0.000000e+00> : vector<8x8xf32>
      %145 = tpu.matmul %143, %144, %cst_77 {dimension_numbers = #tpu.dot_dimension_numbers<[1], [0], [0], [1], [0, 0, 1, 1], [], []>} : vector<8x8xbf16>, vector<8x8xbf16>, vector<8x8xf32> -> vector<8x8xf32>
      %c0_78 = arith.constant 0 : index
      %c24_79 = arith.constant 24 : index
      %146 = vector.load %arg18[%c0_78, %c24_79] : memref<8x32xf32, #tpu.memory_space<vmem>>, vector<8x8xf32>
      %147 = vector.broadcast %133 : vector<8x1xf32> to vector<8x8xf32>
      %148 = arith.mulf %147, %146 : vector<8x8xf32>
      %149 = arith.addf %148, %145 : vector<8x8xf32>
      %c0_80 = arith.constant 0 : index
      %c24_81 = arith.constant 24 : index
      %150 = vector.load %arg18[%c0_80, %c24_81] : memref<8x32xf32, #tpu.memory_space<vmem>>, vector<8x8xf32>
      tpu.vector_store %arg18[%c0_80, %c24_81], %149 {strides = array<i32>} : memref<8x32xf32, #tpu.memory_space<vmem>>, vector<8x8xf32>,
      %c0_82 = arith.constant 0 : index
      %c3_83 = arith.constant 3 : index
      %151 = vector.load %arg16[%c0_82, %c3_83] : memref<8x4xf32, #tpu.memory_space<vmem>>, vector<8x1xf32>
      tpu.vector_store %arg16[%c0_82, %c3_83], %131 {strides = array<i32>} : memref<8x4xf32, #tpu.memory_space<vmem>>, vector<8x1xf32>,
    } else {
    }
    %c0_i32_3 = arith.constant 0 : i32
    %9 = arith.cmpi eq, %arg2, %c0_i32_3 : i32
    %10 = arith.extui %9 : i1 to i32
    %c0_i32_4 = arith.constant 0 : i32
    %11 = arith.cmpi ne, %10, %c0_i32_4 : i32
    scf.if %11 {
      %c0 = arith.constant 0 : index
      %c0_5 = arith.constant 0 : index
      %12 = vector.load %arg17[%c0, %c0_5] : memref<8x4xf32, #tpu.memory_space<vmem>>, vector<8x4xf32>
      %13 = tpu.reciprocal %12 {approx = true} : vector<8x4xf32> -> vector<8x4xf32>
      %c0_6 = arith.constant 0 : index
      %c0_7 = arith.constant 0 : index
      %14 = vector.load %arg18[%c0_6, %c0_7] : memref<8x32xf32, #tpu.memory_space<vmem>>, vector<8x32xf32>
      %15 = vector.extract_strided_slice %14 {offsets = [0, 0], sizes = [8, 8], strides = [1, 1]} : vector<8x32xf32> to vector<8x8xf32>
      %16 = vector.extract_strided_slice %13 {offsets = [0, 0], sizes = [8, 1], strides = [1, 1]} : vector<8x4xf32> to vector<8x1xf32>
      %17 = vector.broadcast %16 : vector<8x1xf32> to vector<8x8xf32>
      %18 = arith.mulf %15, %17 : vector<8x8xf32>
      %19 = vector.extract_strided_slice %14 {offsets = [0, 8], sizes = [8, 8], strides = [1, 1]} : vector<8x32xf32> to vector<8x8xf32>
      %20 = vector.extract_strided_slice %13 {offsets = [0, 1], sizes = [8, 1], strides = [1, 1]} : vector<8x4xf32> to vector<8x1xf32>
      %21 = vector.broadcast %20 : vector<8x1xf32> to vector<8x8xf32>
      %22 = arith.mulf %19, %21 : vector<8x8xf32>
      %23 = vector.extract_strided_slice %14 {offsets = [0, 16], sizes = [8, 8], strides = [1, 1]} : vector<8x32xf32> to vector<8x8xf32>
      %24 = vector.extract_strided_slice %13 {offsets = [0, 2], sizes = [8, 1], strides = [1, 1]} : vector<8x4xf32> to vector<8x1xf32>
      %25 = vector.broadcast %24 : vector<8x1xf32> to vector<8x8xf32>
      %26 = arith.mulf %23, %25 : vector<8x8xf32>
      %27 = vector.extract_strided_slice %14 {offsets = [0, 24], sizes = [8, 8], strides = [1, 1]} : vector<8x32xf32> to vector<8x8xf32>
      %28 = vector.extract_strided_slice %13 {offsets = [0, 3], sizes = [8, 1], strides = [1, 1]} : vector<8x4xf32> to vector<8x1xf32>
      %29 = vector.broadcast %28 : vector<8x1xf32> to vector<8x8xf32>
      %30 = arith.mulf %27, %29 : vector<8x8xf32>
      %31 = tpu.concatenate %18, %22, %26, %30 in 1 : vector<8x8xf32>, vector<8x8xf32>, vector<8x8xf32>, vector<8x8xf32> -> vector<8x32xf32>
      %32 = arith.truncf %31 : vector<8x32xf32> to vector<8x32xbf16>
      %c0_8 = arith.constant 0 : index
      %c0_9 = arith.constant 0 : index
      %33 = vector.load %arg10[%c0_8, %c0_9] : memref<32x32xbf16, #tpu.memory_space<vmem>>, vector<32x32xbf16>
      %cst = arith.constant dense<0.000000e+00> : vector<8x32xf32>
      %34 = tpu.matmul %32, %33, %cst {dimension_numbers = #tpu.dot_dimension_numbers<[1], [0], [0], [1], [0, 0, 1, 1], [], []>} : vector<8x32xbf16>, vector<32x32xbf16>, vector<8x32xf32> -> vector<8x32xf32>
      %c0_10 = arith.constant 0 : index
      %c0_11 = arith.constant 0 : index
      %35 = vector.load %arg11[%c0_10, %c0_11] : memref<1x32xf32, #tpu.memory_space<vmem>>, vector<1x32xf32>
      %36 = vector.broadcast %35 : vector<1x32xf32> to vector<8x32xf32>
      %37 = arith.addf %34, %36 : vector<8x32xf32>
      %c0_12 = arith.constant 0 : index
      %c0_13 = arith.constant 0 : index
      %c0_14 = arith.constant 0 : index
      %38 = vector.load %arg3[%c0_12, %c0_13, %c0_14] : memref<1x8x32xf32, #tpu.memory_space<vmem>>, vector<1x8x32xf32>
      %39 = vector.shape_cast %38 : vector<1x8x32xf32> to vector<8x32xf32>
      %40 = arith.addf %39, %37 : vector<8x32xf32>
      %c0_15 = arith.constant 0 : index
      %c0_16 = arith.constant 0 : index
      %41 = vector.load %arg12[%c0_15, %c0_16] : memref<1x32xf32, #tpu.memory_space<vmem>>, vector<1x32xf32>
      %c0_17 = arith.constant 0 : index
      %c0_18 = arith.constant 0 : index
      %42 = vector.load %arg13[%c0_17, %c0_18] : memref<1x32xf32, #tpu.memory_space<vmem>>, vector<1x32xf32>
      %cst_19 = arith.constant dense<0.000000e+00> : vector<8xf32>
      %43 = vector.multi_reduction <add>, %40, %cst_19 [1] : vector<8x32xf32> to vector<8xf32>
      %44 = vector.shape_cast %43 : vector<8xf32> to vector<8x1xf32>
      %cst_20 = arith.constant 3.200000e+01 : f32
      %45 = vector.broadcast %cst_20 : f32 to vector<8x1xf32>
      %46 = arith.divf %44, %45 : vector<8x1xf32>
      %47 = vector.broadcast %46 : vector<8x1xf32> to vector<8x32xf32>
      %48 = arith.subf %40, %47 : vector<8x32xf32>
      %49 = arith.mulf %48, %48 : vector<8x32xf32>
      %cst_21 = arith.constant dense<0.000000e+00> : vector<8xf32>
      %50 = vector.multi_reduction <add>, %49, %cst_21 [1] : vector<8x32xf32> to vector<8xf32>
      %51 = vector.shape_cast %50 : vector<8xf32> to vector<8x1xf32>
      %cst_22 = arith.constant 3.200000e+01 : f32
      %52 = vector.broadcast %cst_22 : f32 to vector<8x1xf32>
      %53 = arith.divf %51, %52 : vector<8x1xf32>
      %54 = vector.broadcast %46 : vector<8x1xf32> to vector<8x32xf32>
      %55 = arith.subf %40, %54 : vector<8x32xf32>
      %cst_23 = arith.constant 9.99999974E-6 : f32
      %56 = vector.broadcast %cst_23 : f32 to vector<8x1xf32>
      %57 = arith.addf %53, %56 : vector<8x1xf32>
      %58 = math.rsqrt %57 : vector<8x1xf32>
      %59 = vector.broadcast %58 : vector<8x1xf32> to vector<8x32xf32>
      %60 = arith.mulf %55, %59 : vector<8x32xf32>
      %61 = vector.broadcast %41 : vector<1x32xf32> to vector<8x32xf32>
      %62 = arith.mulf %60, %61 : vector<8x32xf32>
      %63 = vector.broadcast %42 : vector<1x32xf32> to vector<8x32xf32>
      %64 = arith.addf %62, %63 : vector<8x32xf32>
      %c0_24 = arith.constant 0 : index
      %c0_25 = arith.constant 0 : index
      %c0_26 = arith.constant 0 : index
      %65 = vector.load %arg14[%c0_24, %c0_25, %c0_26] : memref<1x8x32xf32, #tpu.memory_space<vmem>>, vector<1x8x32xf32>
      %66 = vector.shape_cast %65 : vector<1x8x32xf32> to vector<8x32xf32>
      %67 = vector.shape_cast %64 : vector<8x32xf32> to vector<1x8x32xf32>
      tpu.vector_store %arg14[%c0_24, %c0_25, %c0_26], %67 {strides = array<i32>} : memref<1x8x32xf32, #tpu.memory_space<vmem>>, vector<1x8x32xf32>,
    } else {
    }
    return
  }
  func.func @transform_0(%arg0: i32, %arg1: i32, %arg2: i32) -> (i32, i32, i32) {
    %c0_i32 = arith.constant 0 : i32
    %c0_i32_0 = arith.constant 0 : i32
    return %arg0, %arg1, %c0_i32 : i32, i32, i32
  }
  func.func @transform_1(%arg0: i32, %arg1: i32, %arg2: i32) -> (i32, i32, i32) {
    %c0_i32 = arith.constant 0 : i32
    %c0_i32_0 = arith.constant 0 : i32
    return %arg0, %arg2, %c0_i32 : i32, i32, i32
  }
  func.func @transform_2(%arg0: i32, %arg1: i32, %arg2: i32) -> (i32, i32, i32) {
    %c0_i32 = arith.constant 0 : i32
    %c0_i32_0 = arith.constant 0 : i32
    %c0_i32_1 = arith.constant 0 : i32
    return %c0_i32, %c0_i32_0, %arg2 : i32, i32, i32
  }
  func.func @transform_3(%arg0: i32, %arg1: i32, %arg2: i32) -> (i32, i32) {
    %c0_i32 = arith.constant 0 : i32
    %c0_i32_0 = arith.constant 0 : i32
    %c0_i32_1 = arith.constant 0 : i32
    return %c0_i32, %c0_i32_0 : i32, i32
  }
  func.func @transform_4(%arg0: i32, %arg1: i32, %arg2: i32) -> (i32, i32) {
    %c0_i32 = arith.constant 0 : i32
    %c0_i32_0 = arith.constant 0 : i32
    %c0_i32_1 = arith.constant 0 : i32
    return %c0_i32, %c0_i32_0 : i32, i32
  }
  func.func @transform_5(%arg0: i32, %arg1: i32, %arg2: i32) -> (i32, i32) {
    %c0_i32 = arith.constant 0 : i32
    %c0_i32_0 = arith.constant 0 : i32
    %c0_i32_1 = arith.constant 0 : i32
    return %c0_i32, %c0_i32_0 : i32, i32
  }
  func.func @transform_6(%arg0: i32, %arg1: i32, %arg2: i32) -> (i32, i32) {
    %c0_i32 = arith.constant 0 : i32
    %c0_i32_0 = arith.constant 0 : i32
    %c0_i32_1 = arith.constant 0 : i32
    return %c0_i32, %c0_i32_0 : i32, i32
  }
  func.func @transform_7(%arg0: i32, %arg1: i32, %arg2: i32) -> (i32, i32) {
    %c0_i32 = arith.constant 0 : i32
    %c0_i32_0 = arith.constant 0 : i32
    %c0_i32_1 = arith.constant 0 : i32
    return %c0_i32, %c0_i32_0 : i32, i32
  }
  func.func @transform_8(%arg0: i32, %arg1: i32, %arg2: i32) -> (i32, i32) {
    %c0_i32 = arith.constant 0 : i32
    %c0_i32_0 = arith.constant 0 : i32
    %c0_i32_1 = arith.constant 0 : i32
    return %c0_i32, %c0_i32_0 : i32, i32
  }
  func.func @transform_9(%arg0: i32, %arg1: i32, %arg2: i32) -> (i32, i32) {
    %c0_i32 = arith.constant 0 : i32
    %c0_i32_0 = arith.constant 0 : i32
    %c0_i32_1 = arith.constant 0 : i32
    return %c0_i32, %c0_i32_0 : i32, i32
  }
  func.func @transform_10(%arg0: i32, %arg1: i32, %arg2: i32) -> (i32, i32) {
    %c0_i32 = arith.constant 0 : i32
    %c0_i32_0 = arith.constant 0 : i32
    %c0_i32_1 = arith.constant 0 : i32
    return %c0_i32, %c0_i32_0 : i32, i32
  }
  func.func @transform_11(%arg0: i32, %arg1: i32, %arg2: i32) -> (i32, i32, i32) {
    %c0_i32 = arith.constant 0 : i32
    %c0_i32_0 = arith.constant 0 : i32
    return %arg0, %arg1, %c0_i32 : i32, i32, i32
  }
}

module attributes {stable_mosaic.version = 11 : i64} {
  func.func @_attn_kernel(%arg0: i32, %arg1: i32, %arg2: i32, %arg3: memref<1x8x32xf32, #tpu.memory_space<vmem>>, %arg4: memref<1x8x32xf32, #tpu.memory_space<vmem>>, %arg5: memref<1x1x8xf32, #tpu.memory_space<vmem>>, %arg6: memref<32x32xbf16, #tpu.memory_space<vmem>>, %arg7: memref<1x32xf32, #tpu.memory_space<vmem>>, %arg8: memref<32x64xbf16, #tpu.memory_space<vmem>>, %arg9: memref<1x64xf32, #tpu.memory_space<vmem>>, %arg10: memref<32x32xbf16, #tpu.memory_space<vmem>>, %arg11: memref<1x32xf32, #tpu.memory_space<vmem>>, %arg12: memref<1x32xf32, #tpu.memory_space<vmem>>, %arg13: memref<1x32xf32, #tpu.memory_space<vmem>>, %arg14: memref<1x8x32xf32, #tpu.memory_space<vmem>>, %arg15: memref<8x32xbf16, #tpu.memory_space<vmem>>, %arg16: memref<8x4xf32, #tpu.memory_space<vmem>>, %arg17: memref<8x4xf32, #tpu.memory_space<vmem>>, %arg18: memref<8x32xf32, #tpu.memory_space<vmem>>) attributes {dimension_semantics = [#tpu.dimension_semantics<parallel>, #tpu.dimension_semantics<parallel>, #tpu.dimension_semantics<arbitrary>], iteration_bounds = array<i64: 2, 1, 1>, scalar_prefetch = 0 : i64, scratch_operands = 4 : i64, tpu.core_type = #tpu.core_type<tc>, window_params = [{transform_indices = @transform_0, window_bounds = array<i64: 1, 8, 32>}, {transform_indices = @transform_1, window_bounds = array<i64: 1, 8, 32>}, {transform_indices = @transform_2, window_bounds = array<i64: 1, 1, 8>}, {pipeline_mode = #tpu.pipeline_mode<synchronous>, transform_indices = @transform_3, window_bounds = array<i64: 32, 32>}, {pipeline_mode = #tpu.pipeline_mode<synchronous>, transform_indices = @transform_4, window_bounds = array<i64: 1, 32>}, {pipeline_mode = #tpu.pipeline_mode<synchronous>, transform_indices = @transform_5, window_bounds = array<i64: 32, 64>}, {pipeline_mode = #tpu.pipeline_mode<synchronous>, transform_indices = @transform_6, window_bounds = array<i64: 1, 64>}, {pipeline_mode = #tpu.pipeline_mode<synchronous>, transform_indices = @transform_7, window_bounds = array<i64: 32, 32>}, {pipeline_mode = #tpu.pipeline_mode<synchronous>, transform_indices = @transform_8, window_bounds = array<i64: 1, 32>}, {pipeline_mode = #tpu.pipeline_mode<synchronous>, transform_indices = @transform_9, window_bounds = array<i64: 1, 32>}, {pipeline_mode = #tpu.pipeline_mode<synchronous>, transform_indices = @transform_10, window_bounds = array<i64: 1, 32>}, {transform_indices = @transform_11, window_bounds = array<i64: 1, 8, 32>}]} {
    %c0_i32 = arith.constant 0 : i32
    %0 = arith.cmpi eq, %arg2, %c0_i32 : i32
    %1 = arith.extui %0 : i1 to i32
    %c0_i32_0 = arith.constant 0 : i32
    %2 = arith.cmpi ne, %1, %c0_i32_0 : i32
    scf.if %2 {
      %c0_78 = arith.constant 0 : index
      %c0_79 = arith.constant 0 : index
      %c0_80 = arith.constant 0 : index
      %136 = vector.load %arg3[%c0_78, %c0_79, %c0_80] : memref<1x8x32xf32, #tpu.memory_space<vmem>>, vector<1x8x32xf32>
      %137 = vector.shape_cast %136 : vector<1x8x32xf32> to vector<8x32xf32>
      %138 = arith.truncf %137 : vector<8x32xf32> to vector<8x32xbf16>
      %c0_81 = arith.constant 0 : index
      %c0_82 = arith.constant 0 : index
      %139 = vector.load %arg6[%c0_81, %c0_82] : memref<32x32xbf16, #tpu.memory_space<vmem>>, vector<32x32xbf16>
      %cst_83 = arith.constant dense<0.000000e+00> : vector<8x32xf32>
      %140 = tpu.matmul %138, %139, %cst_83 {dimension_numbers = #tpu.dot_dimension_numbers<[1], [0], [0], [1], [0, 0, 1, 1], [], []>} : vector<8x32xbf16>, vector<32x32xbf16>, vector<8x32xf32> -> vector<8x32xf32>
      %c0_84 = arith.constant 0 : index
      %c0_85 = arith.constant 0 : index
      %141 = vector.load %arg7[%c0_84, %c0_85] : memref<1x32xf32, #tpu.memory_space<vmem>>, vector<1x32xf32>
      %142 = vector.broadcast %141 : vector<1x32xf32> to vector<8x32xf32>
      %143 = arith.addf %140, %142 : vector<8x32xf32>
      %144 = arith.truncf %143 : vector<8x32xf32> to vector<8x32xbf16>
      %c0_86 = arith.constant 0 : index
      %c0_87 = arith.constant 0 : index
      %145 = vector.load %arg15[%c0_86, %c0_87] : memref<8x32xbf16, #tpu.memory_space<vmem>>, vector<8x32xbf16>
      tpu.vector_store %arg15[%c0_86, %c0_87], %144 {strides = array<i32>} : memref<8x32xbf16, #tpu.memory_space<vmem>>, vector<8x32xbf16>,
      %cst_88 = arith.constant 0xFF800000 : f32
      %146 = vector.broadcast %cst_88 : f32 to vector<8x4xf32>
      %c0_89 = arith.constant 0 : index
      %c0_90 = arith.constant 0 : index
      %147 = vector.load %arg16[%c0_89, %c0_90] : memref<8x4xf32, #tpu.memory_space<vmem>>, vector<8x4xf32>
      tpu.vector_store %arg16[%c0_89, %c0_90], %146 {strides = array<i32>} : memref<8x4xf32, #tpu.memory_space<vmem>>, vector<8x4xf32>,
      %cst_91 = arith.constant 0.000000e+00 : f32
      %148 = vector.broadcast %cst_91 : f32 to vector<8x4xf32>
      %c0_92 = arith.constant 0 : index
      %c0_93 = arith.constant 0 : index
      %149 = vector.load %arg17[%c0_92, %c0_93] : memref<8x4xf32, #tpu.memory_space<vmem>>, vector<8x4xf32>
      tpu.vector_store %arg17[%c0_92, %c0_93], %148 {strides = array<i32>} : memref<8x4xf32, #tpu.memory_space<vmem>>, vector<8x4xf32>,
      %cst_94 = arith.constant 0.000000e+00 : f32
      %150 = vector.broadcast %cst_94 : f32 to vector<8x32xf32>
      %c0_95 = arith.constant 0 : index
      %c0_96 = arith.constant 0 : index
      %151 = vector.load %arg18[%c0_95, %c0_96] : memref<8x32xf32, #tpu.memory_space<vmem>>, vector<8x32xf32>
      tpu.vector_store %arg18[%c0_95, %c0_96], %150 {strides = array<i32>} : memref<8x32xf32, #tpu.memory_space<vmem>>, vector<8x32xf32>,
    } else {
    }
    %c0 = arith.constant 0 : index
    %c0_1 = arith.constant 0 : index
    %c0_2 = arith.constant 0 : index
    %3 = vector.load %arg4[%c0, %c0_1, %c0_2] : memref<1x8x32xf32, #tpu.memory_space<vmem>>, vector<1x8x32xf32>
    %4 = vector.shape_cast %3 : vector<1x8x32xf32> to vector<8x32xf32>
    %5 = arith.truncf %4 : vector<8x32xf32> to vector<8x32xbf16>
    %c0_3 = arith.constant 0 : index
    %c0_4 = arith.constant 0 : index
    %6 = vector.load %arg8[%c0_3, %c0_4] : memref<32x64xbf16, #tpu.memory_space<vmem>>, vector<32x64xbf16>
    %cst = arith.constant dense<0.000000e+00> : vector<8x64xf32>
    %7 = tpu.matmul %5, %6, %cst {dimension_numbers = #tpu.dot_dimension_numbers<[1], [0], [0], [1], [0, 0, 1, 1], [], []>} : vector<8x32xbf16>, vector<32x64xbf16>, vector<8x64xf32> -> vector<8x64xf32>
    %c0_5 = arith.constant 0 : index
    %c0_6 = arith.constant 0 : index
    %8 = vector.load %arg9[%c0_5, %c0_6] : memref<1x64xf32, #tpu.memory_space<vmem>>, vector<1x64xf32>
    %9 = vector.broadcast %8 : vector<1x64xf32> to vector<8x64xf32>
    %10 = arith.addf %7, %9 : vector<8x64xf32>
    %11 = vector.extract_strided_slice %10 {offsets = [0, 0], sizes = [8, 32], strides = [1, 1]} : vector<8x64xf32> to vector<8x32xf32>
    %12 = arith.truncf %11 : vector<8x32xf32> to vector<8x32xbf16>
    %13 = vector.extract_strided_slice %10 {offsets = [0, 32], sizes = [8, 32], strides = [1, 1]} : vector<8x64xf32> to vector<8x32xf32>
    %14 = arith.truncf %13 : vector<8x32xf32> to vector<8x32xbf16>
    %c0_7 = arith.constant 0 : index
    %c0_8 = arith.constant 0 : index
    %c0_9 = arith.constant 0 : index
    %15 = vector.load %arg5[%c0_7, %c0_8, %c0_9] : memref<1x1x8xf32, #tpu.memory_space<vmem>>, vector<1x1x8xf32>
    %16 = vector.shape_cast %15 : vector<1x1x8xf32> to vector<1x8xf32>
    %c0_10 = arith.constant 0 : index
    %c0_11 = arith.constant 0 : index
    %17 = vector.load %arg15[%c0_10, %c0_11] : memref<8x32xbf16, #tpu.memory_space<vmem>>, vector<8x8xbf16>
    %18 = vector.extract_strided_slice %12 {offsets = [0, 0], sizes = [8, 8], strides = [1, 1]} : vector<8x32xbf16> to vector<8x8xbf16>
    %cst_12 = arith.constant dense<0.000000e+00> : vector<8x8xf32>
    %19 = tpu.matmul %17, %18, %cst_12 {dimension_numbers = #tpu.dot_dimension_numbers<[1], [1], [0], [0], [0, 0, 1, 0], [], []>} : vector<8x8xbf16>, vector<8x8xbf16>, vector<8x8xf32> -> vector<8x8xf32>
    %20 = vector.broadcast %16 : vector<1x8xf32> to vector<8x8xf32>
    %21 = arith.addf %19, %20 : vector<8x8xf32>
    %c0_13 = arith.constant 0 : index
    %c0_14 = arith.constant 0 : index
    %22 = vector.load %arg16[%c0_13, %c0_14] : memref<8x4xf32, #tpu.memory_space<vmem>>, vector<8x1xf32>
    %cst_15 = arith.constant dense<0xFF800000> : vector<8xf32>
    %23 = vector.multi_reduction <maximumf>, %21, %cst_15 [1] : vector<8x8xf32> to vector<8xf32>
    %24 = vector.shape_cast %23 : vector<8xf32> to vector<8x1xf32>
    %25 = arith.maximumf %22, %24 : vector<8x1xf32>
    %26 = arith.subf %22, %25 : vector<8x1xf32>
    %27 = math.exp %26 : vector<8x1xf32>
    %28 = vector.broadcast %25 : vector<8x1xf32> to vector<8x8xf32>
    %29 = arith.subf %21, %28 : vector<8x8xf32>
    %30 = math.exp %29 : vector<8x8xf32>
    %c0_16 = arith.constant 0 : index
    %c0_17 = arith.constant 0 : index
    %31 = vector.load %arg17[%c0_16, %c0_17] : memref<8x4xf32, #tpu.memory_space<vmem>>, vector<8x1xf32>
    %32 = arith.mulf %27, %31 : vector<8x1xf32>
    %cst_18 = arith.constant dense<0.000000e+00> : vector<8xf32>
    %33 = vector.multi_reduction <add>, %30, %cst_18 [1] : vector<8x8xf32> to vector<8xf32>
    %34 = vector.shape_cast %33 : vector<8xf32> to vector<8x1xf32>
    %35 = arith.addf %32, %34 : vector<8x1xf32>
    %c0_19 = arith.constant 0 : index
    %c0_20 = arith.constant 0 : index
    %36 = vector.load %arg17[%c0_19, %c0_20] : memref<8x4xf32, #tpu.memory_space<vmem>>, vector<8x1xf32>
    tpu.vector_store %arg17[%c0_19, %c0_20], %35 {strides = array<i32>} : memref<8x4xf32, #tpu.memory_space<vmem>>, vector<8x1xf32>,
    %37 = arith.truncf %30 : vector<8x8xf32> to vector<8x8xbf16>
    %38 = vector.extract_strided_slice %14 {offsets = [0, 0], sizes = [8, 8], strides = [1, 1]} : vector<8x32xbf16> to vector<8x8xbf16>
    %cst_21 = arith.constant dense<0.000000e+00> : vector<8x8xf32>
    %39 = tpu.matmul %37, %38, %cst_21 {dimension_numbers = #tpu.dot_dimension_numbers<[1], [0], [0], [1], [0, 0, 1, 1], [], []>} : vector<8x8xbf16>, vector<8x8xbf16>, vector<8x8xf32> -> vector<8x8xf32>
    %c0_22 = arith.constant 0 : index
    %c0_23 = arith.constant 0 : index
    %40 = vector.load %arg18[%c0_22, %c0_23] : memref<8x32xf32, #tpu.memory_space<vmem>>, vector<8x8xf32>
    %41 = vector.broadcast %27 : vector<8x1xf32> to vector<8x8xf32>
    %42 = arith.mulf %41, %40 : vector<8x8xf32>
    %43 = arith.addf %42, %39 : vector<8x8xf32>
    %c0_24 = arith.constant 0 : index
    %c0_25 = arith.constant 0 : index
    %44 = vector.load %arg18[%c0_24, %c0_25] : memref<8x32xf32, #tpu.memory_space<vmem>>, vector<8x8xf32>
    tpu.vector_store %arg18[%c0_24, %c0_25], %43 {strides = array<i32>} : memref<8x32xf32, #tpu.memory_space<vmem>>, vector<8x8xf32>,
    %c0_26 = arith.constant 0 : index
    %c0_27 = arith.constant 0 : index
    %45 = vector.load %arg16[%c0_26, %c0_27] : memref<8x4xf32, #tpu.memory_space<vmem>>, vector<8x1xf32>
    tpu.vector_store %arg16[%c0_26, %c0_27], %25 {strides = array<i32>} : memref<8x4xf32, #tpu.memory_space<vmem>>, vector<8x1xf32>,
    %c0_28 = arith.constant 0 : index
    %c8 = arith.constant 8 : index
    %46 = vector.load %arg15[%c0_28, %c8] : memref<8x32xbf16, #tpu.memory_space<vmem>>, vector<8x8xbf16>
    %47 = vector.extract_strided_slice %12 {offsets = [0, 8], sizes = [8, 8], strides = [1, 1]} : vector<8x32xbf16> to vector<8x8xbf16>
    %cst_29 = arith.constant dense<0.000000e+00> : vector<8x8xf32>
    %48 = tpu.matmul %46, %47, %cst_29 {dimension_numbers = #tpu.dot_dimension_numbers<[1], [1], [0], [0], [0, 0, 1, 0], [], []>} : vector<8x8xbf16>, vector<8x8xbf16>, vector<8x8xf32> -> vector<8x8xf32>
    %49 = vector.broadcast %16 : vector<1x8xf32> to vector<8x8xf32>
    %50 = arith.addf %48, %49 : vector<8x8xf32>
    %c0_30 = arith.constant 0 : index
    %c1 = arith.constant 1 : index
    %51 = vector.load %arg16[%c0_30, %c1] : memref<8x4xf32, #tpu.memory_space<vmem>>, vector<8x1xf32>
    %cst_31 = arith.constant dense<0xFF800000> : vector<8xf32>
    %52 = vector.multi_reduction <maximumf>, %50, %cst_31 [1] : vector<8x8xf32> to vector<8xf32>
    %53 = vector.shape_cast %52 : vector<8xf32> to vector<8x1xf32>
    %54 = arith.maximumf %51, %53 : vector<8x1xf32>
    %55 = arith.subf %51, %54 : vector<8x1xf32>
    %56 = math.exp %55 : vector<8x1xf32>
    %57 = vector.broadcast %54 : vector<8x1xf32> to vector<8x8xf32>
    %58 = arith.subf %50, %57 : vector<8x8xf32>
    %59 = math.exp %58 : vector<8x8xf32>
    %c0_32 = arith.constant 0 : index
    %c1_33 = arith.constant 1 : index
    %60 = vector.load %arg17[%c0_32, %c1_33] : memref<8x4xf32, #tpu.memory_space<vmem>>, vector<8x1xf32>
    %61 = arith.mulf %56, %60 : vector<8x1xf32>
    %cst_34 = arith.constant dense<0.000000e+00> : vector<8xf32>
    %62 = vector.multi_reduction <add>, %59, %cst_34 [1] : vector<8x8xf32> to vector<8xf32>
    %63 = vector.shape_cast %62 : vector<8xf32> to vector<8x1xf32>
    %64 = arith.addf %61, %63 : vector<8x1xf32>
    %c0_35 = arith.constant 0 : index
    %c1_36 = arith.constant 1 : index
    %65 = vector.load %arg17[%c0_35, %c1_36] : memref<8x4xf32, #tpu.memory_space<vmem>>, vector<8x1xf32>
    tpu.vector_store %arg17[%c0_35, %c1_36], %64 {strides = array<i32>} : memref<8x4xf32, #tpu.memory_space<vmem>>, vector<8x1xf32>,
    %66 = arith.truncf %59 : vector<8x8xf32> to vector<8x8xbf16>
    %67 = vector.extract_strided_slice %14 {offsets = [0, 8], sizes = [8, 8], strides = [1, 1]} : vector<8x32xbf16> to vector<8x8xbf16>
    %cst_37 = arith.constant dense<0.000000e+00> : vector<8x8xf32>
    %68 = tpu.matmul %66, %67, %cst_37 {dimension_numbers = #tpu.dot_dimension_numbers<[1], [0], [0], [1], [0, 0, 1, 1], [], []>} : vector<8x8xbf16>, vector<8x8xbf16>, vector<8x8xf32> -> vector<8x8xf32>
    %c0_38 = arith.constant 0 : index
    %c8_39 = arith.constant 8 : index
    %69 = vector.load %arg18[%c0_38, %c8_39] : memref<8x32xf32, #tpu.memory_space<vmem>>, vector<8x8xf32>
    %70 = vector.broadcast %56 : vector<8x1xf32> to vector<8x8xf32>
    %71 = arith.mulf %70, %69 : vector<8x8xf32>
    %72 = arith.addf %71, %68 : vector<8x8xf32>
    %c0_40 = arith.constant 0 : index
    %c8_41 = arith.constant 8 : index
    %73 = vector.load %arg18[%c0_40, %c8_41] : memref<8x32xf32, #tpu.memory_space<vmem>>, vector<8x8xf32>
    tpu.vector_store %arg18[%c0_40, %c8_41], %72 {strides = array<i32>} : memref<8x32xf32, #tpu.memory_space<vmem>>, vector<8x8xf32>,
    %c0_42 = arith.constant 0 : index
    %c1_43 = arith.constant 1 : index
    %74 = vector.load %arg16[%c0_42, %c1_43] : memref<8x4xf32, #tpu.memory_space<vmem>>, vector<8x1xf32>
    tpu.vector_store %arg16[%c0_42, %c1_43], %54 {strides = array<i32>} : memref<8x4xf32, #tpu.memory_space<vmem>>, vector<8x1xf32>,
    %c0_44 = arith.constant 0 : index
    %c16 = arith.constant 16 : index
    %75 = vector.load %arg15[%c0_44, %c16] : memref<8x32xbf16, #tpu.memory_space<vmem>>, vector<8x8xbf16>
    %76 = vector.extract_strided_slice %12 {offsets = [0, 16], sizes = [8, 8], strides = [1, 1]} : vector<8x32xbf16> to vector<8x8xbf16>
    %cst_45 = arith.constant dense<0.000000e+00> : vector<8x8xf32>
    %77 = tpu.matmul %75, %76, %cst_45 {dimension_numbers = #tpu.dot_dimension_numbers<[1], [1], [0], [0], [0, 0, 1, 0], [], []>} : vector<8x8xbf16>, vector<8x8xbf16>, vector<8x8xf32> -> vector<8x8xf32>
    %78 = vector.broadcast %16 : vector<1x8xf32> to vector<8x8xf32>
    %79 = arith.addf %77, %78 : vector<8x8xf32>
    %c0_46 = arith.constant 0 : index
    %c2 = arith.constant 2 : index
    %80 = vector.load %arg16[%c0_46, %c2] : memref<8x4xf32, #tpu.memory_space<vmem>>, vector<8x1xf32>
    %cst_47 = arith.constant dense<0xFF800000> : vector<8xf32>
    %81 = vector.multi_reduction <maximumf>, %79, %cst_47 [1] : vector<8x8xf32> to vector<8xf32>
    %82 = vector.shape_cast %81 : vector<8xf32> to vector<8x1xf32>
    %83 = arith.maximumf %80, %82 : vector<8x1xf32>
    %84 = arith.subf %80, %83 : vector<8x1xf32>
    %85 = math.exp %84 : vector<8x1xf32>
    %86 = vector.broadcast %83 : vector<8x1xf32> to vector<8x8xf32>
    %87 = arith.subf %79, %86 : vector<8x8xf32>
    %88 = math.exp %87 : vector<8x8xf32>
    %c0_48 = arith.constant 0 : index
    %c2_49 = arith.constant 2 : index
    %89 = vector.load %arg17[%c0_48, %c2_49] : memref<8x4xf32, #tpu.memory_space<vmem>>, vector<8x1xf32>
    %90 = arith.mulf %85, %89 : vector<8x1xf32>
    %cst_50 = arith.constant dense<0.000000e+00> : vector<8xf32>
    %91 = vector.multi_reduction <add>, %88, %cst_50 [1] : vector<8x8xf32> to vector<8xf32>
    %92 = vector.shape_cast %91 : vector<8xf32> to vector<8x1xf32>
    %93 = arith.addf %90, %92 : vector<8x1xf32>
    %c0_51 = arith.constant 0 : index
    %c2_52 = arith.constant 2 : index
    %94 = vector.load %arg17[%c0_51, %c2_52] : memref<8x4xf32, #tpu.memory_space<vmem>>, vector<8x1xf32>
    tpu.vector_store %arg17[%c0_51, %c2_52], %93 {strides = array<i32>} : memref<8x4xf32, #tpu.memory_space<vmem>>, vector<8x1xf32>,
    %95 = arith.truncf %88 : vector<8x8xf32> to vector<8x8xbf16>
    %96 = vector.extract_strided_slice %14 {offsets = [0, 16], sizes = [8, 8], strides = [1, 1]} : vector<8x32xbf16> to vector<8x8xbf16>
    %cst_53 = arith.constant dense<0.000000e+00> : vector<8x8xf32>
    %97 = tpu.matmul %95, %96, %cst_53 {dimension_numbers = #tpu.dot_dimension_numbers<[1], [0], [0], [1], [0, 0, 1, 1], [], []>} : vector<8x8xbf16>, vector<8x8xbf16>, vector<8x8xf32> -> vector<8x8xf32>
    %c0_54 = arith.constant 0 : index
    %c16_55 = arith.constant 16 : index
    %98 = vector.load %arg18[%c0_54, %c16_55] : memref<8x32xf32, #tpu.memory_space<vmem>>, vector<8x8xf32>
    %99 = vector.broadcast %85 : vector<8x1xf32> to vector<8x8xf32>
    %100 = arith.mulf %99, %98 : vector<8x8xf32>
    %101 = arith.addf %100, %97 : vector<8x8xf32>
    %c0_56 = arith.constant 0 : index
    %c16_57 = arith.constant 16 : index
    %102 = vector.load %arg18[%c0_56, %c16_57] : memref<8x32xf32, #tpu.memory_space<vmem>>, vector<8x8xf32>
    tpu.vector_store %arg18[%c0_56, %c16_57], %101 {strides = array<i32>} : memref<8x32xf32, #tpu.memory_space<vmem>>, vector<8x8xf32>,
    %c0_58 = arith.constant 0 : index
    %c2_59 = arith.constant 2 : index
    %103 = vector.load %arg16[%c0_58, %c2_59] : memref<8x4xf32, #tpu.memory_space<vmem>>, vector<8x1xf32>
    tpu.vector_store %arg16[%c0_58, %c2_59], %83 {strides = array<i32>} : memref<8x4xf32, #tpu.memory_space<vmem>>, vector<8x1xf32>,
    %c0_60 = arith.constant 0 : index
    %c24 = arith.constant 24 : index
    %104 = vector.load %arg15[%c0_60, %c24] : memref<8x32xbf16, #tpu.memory_space<vmem>>, vector<8x8xbf16>
    %105 = vector.extract_strided_slice %12 {offsets = [0, 24], sizes = [8, 8], strides = [1, 1]} : vector<8x32xbf16> to vector<8x8xbf16>
    %cst_61 = arith.constant dense<0.000000e+00> : vector<8x8xf32>
    %106 = tpu.matmul %104, %105, %cst_61 {dimension_numbers = #tpu.dot_dimension_numbers<[1], [1], [0], [0], [0, 0, 1, 0], [], []>} : vector<8x8xbf16>, vector<8x8xbf16>, vector<8x8xf32> -> vector<8x8xf32>
    %107 = vector.broadcast %16 : vector<1x8xf32> to vector<8x8xf32>
    %108 = arith.addf %106, %107 : vector<8x8xf32>
    %c0_62 = arith.constant 0 : index
    %c3 = arith.constant 3 : index
    %109 = vector.load %arg16[%c0_62, %c3] : memref<8x4xf32, #tpu.memory_space<vmem>>, vector<8x1xf32>
    %cst_63 = arith.constant dense<0xFF800000> : vector<8xf32>
    %110 = vector.multi_reduction <maximumf>, %108, %cst_63 [1] : vector<8x8xf32> to vector<8xf32>
    %111 = vector.shape_cast %110 : vector<8xf32> to vector<8x1xf32>
    %112 = arith.maximumf %109, %111 : vector<8x1xf32>
    %113 = arith.subf %109, %112 : vector<8x1xf32>
    %114 = math.exp %113 : vector<8x1xf32>
    %115 = vector.broadcast %112 : vector<8x1xf32> to vector<8x8xf32>
    %116 = arith.subf %108, %115 : vector<8x8xf32>
    %117 = math.exp %116 : vector<8x8xf32>
    %c0_64 = arith.constant 0 : index
    %c3_65 = arith.constant 3 : index
    %118 = vector.load %arg17[%c0_64, %c3_65] : memref<8x4xf32, #tpu.memory_space<vmem>>, vector<8x1xf32>
    %119 = arith.mulf %114, %118 : vector<8x1xf32>
    %cst_66 = arith.constant dense<0.000000e+00> : vector<8xf32>
    %120 = vector.multi_reduction <add>, %117, %cst_66 [1] : vector<8x8xf32> to vector<8xf32>
    %121 = vector.shape_cast %120 : vector<8xf32> to vector<8x1xf32>
    %122 = arith.addf %119, %121 : vector<8x1xf32>
    %c0_67 = arith.constant 0 : index
    %c3_68 = arith.constant 3 : index
    %123 = vector.load %arg17[%c0_67, %c3_68] : memref<8x4xf32, #tpu.memory_space<vmem>>, vector<8x1xf32>
    tpu.vector_store %arg17[%c0_67, %c3_68], %122 {strides = array<i32>} : memref<8x4xf32, #tpu.memory_space<vmem>>, vector<8x1xf32>,
    %124 = arith.truncf %117 : vector<8x8xf32> to vector<8x8xbf16>
    %125 = vector.extract_strided_slice %14 {offsets = [0, 24], sizes = [8, 8], strides = [1, 1]} : vector<8x32xbf16> to vector<8x8xbf16>
    %cst_69 = arith.constant dense<0.000000e+00> : vector<8x8xf32>
    %126 = tpu.matmul %124, %125, %cst_69 {dimension_numbers = #tpu.dot_dimension_numbers<[1], [0], [0], [1], [0, 0, 1, 1], [], []>} : vector<8x8xbf16>, vector<8x8xbf16>, vector<8x8xf32> -> vector<8x8xf32>
    %c0_70 = arith.constant 0 : index
    %c24_71 = arith.constant 24 : index
    %127 = vector.load %arg18[%c0_70, %c24_71] : memref<8x32xf32, #tpu.memory_space<vmem>>, vector<8x8xf32>
    %128 = vector.broadcast %114 : vector<8x1xf32> to vector<8x8xf32>
    %129 = arith.mulf %128, %127 : vector<8x8xf32>
    %130 = arith.addf %129, %126 : vector<8x8xf32>
    %c0_72 = arith.constant 0 : index
    %c24_73 = arith.constant 24 : index
    %131 = vector.load %arg18[%c0_72, %c24_73] : memref<8x32xf32, #tpu.memory_space<vmem>>, vector<8x8xf32>
    tpu.vector_store %arg18[%c0_72, %c24_73], %130 {strides = array<i32>} : memref<8x32xf32, #tpu.memory_space<vmem>>, vector<8x8xf32>,
    %c0_74 = arith.constant 0 : index
    %c3_75 = arith.constant 3 : index
    %132 = vector.load %arg16[%c0_74, %c3_75] : memref<8x4xf32, #tpu.memory_space<vmem>>, vector<8x1xf32>
    tpu.vector_store %arg16[%c0_74, %c3_75], %112 {strides = array<i32>} : memref<8x4xf32, #tpu.memory_space<vmem>>, vector<8x1xf32>,
    %c0_i32_76 = arith.constant 0 : i32
    %133 = arith.cmpi eq, %arg2, %c0_i32_76 : i32
    %134 = arith.extui %133 : i1 to i32
    %c0_i32_77 = arith.constant 0 : i32
    %135 = arith.cmpi ne, %134, %c0_i32_77 : i32
    scf.if %135 {
      %c0_78 = arith.constant 0 : index
      %c0_79 = arith.constant 0 : index
      %136 = vector.load %arg17[%c0_78, %c0_79] : memref<8x4xf32, #tpu.memory_space<vmem>>, vector<8x4xf32>
      %137 = tpu.reciprocal %136 {approx = true} : vector<8x4xf32> -> vector<8x4xf32>
      %c0_80 = arith.constant 0 : index
      %c0_81 = arith.constant 0 : index
      %138 = vector.load %arg18[%c0_80, %c0_81] : memref<8x32xf32, #tpu.memory_space<vmem>>, vector<8x32xf32>
      %139 = vector.extract_strided_slice %138 {offsets = [0, 0], sizes = [8, 8], strides = [1, 1]} : vector<8x32xf32> to vector<8x8xf32>
      %140 = vector.extract_strided_slice %137 {offsets = [0, 0], sizes = [8, 1], strides = [1, 1]} : vector<8x4xf32> to vector<8x1xf32>
      %141 = vector.broadcast %140 : vector<8x1xf32> to vector<8x8xf32>
      %142 = arith.mulf %139, %141 : vector<8x8xf32>
      %143 = vector.extract_strided_slice %138 {offsets = [0, 8], sizes = [8, 8], strides = [1, 1]} : vector<8x32xf32> to vector<8x8xf32>
      %144 = vector.extract_strided_slice %137 {offsets = [0, 1], sizes = [8, 1], strides = [1, 1]} : vector<8x4xf32> to vector<8x1xf32>
      %145 = vector.broadcast %144 : vector<8x1xf32> to vector<8x8xf32>
      %146 = arith.mulf %143, %145 : vector<8x8xf32>
      %147 = vector.extract_strided_slice %138 {offsets = [0, 16], sizes = [8, 8], strides = [1, 1]} : vector<8x32xf32> to vector<8x8xf32>
      %148 = vector.extract_strided_slice %137 {offsets = [0, 2], sizes = [8, 1], strides = [1, 1]} : vector<8x4xf32> to vector<8x1xf32>
      %149 = vector.broadcast %148 : vector<8x1xf32> to vector<8x8xf32>
      %150 = arith.mulf %147, %149 : vector<8x8xf32>
      %151 = vector.extract_strided_slice %138 {offsets = [0, 24], sizes = [8, 8], strides = [1, 1]} : vector<8x32xf32> to vector<8x8xf32>
      %152 = vector.extract_strided_slice %137 {offsets = [0, 3], sizes = [8, 1], strides = [1, 1]} : vector<8x4xf32> to vector<8x1xf32>
      %153 = vector.broadcast %152 : vector<8x1xf32> to vector<8x8xf32>
      %154 = arith.mulf %151, %153 : vector<8x8xf32>
      %155 = tpu.concatenate %142, %146, %150, %154 in 1 : vector<8x8xf32>, vector<8x8xf32>, vector<8x8xf32>, vector<8x8xf32> -> vector<8x32xf32>
      %156 = arith.truncf %155 : vector<8x32xf32> to vector<8x32xbf16>
      %c0_82 = arith.constant 0 : index
      %c0_83 = arith.constant 0 : index
      %157 = vector.load %arg10[%c0_82, %c0_83] : memref<32x32xbf16, #tpu.memory_space<vmem>>, vector<32x32xbf16>
      %cst_84 = arith.constant dense<0.000000e+00> : vector<8x32xf32>
      %158 = tpu.matmul %156, %157, %cst_84 {dimension_numbers = #tpu.dot_dimension_numbers<[1], [0], [0], [1], [0, 0, 1, 1], [], []>} : vector<8x32xbf16>, vector<32x32xbf16>, vector<8x32xf32> -> vector<8x32xf32>
      %c0_85 = arith.constant 0 : index
      %c0_86 = arith.constant 0 : index
      %159 = vector.load %arg11[%c0_85, %c0_86] : memref<1x32xf32, #tpu.memory_space<vmem>>, vector<1x32xf32>
      %160 = vector.broadcast %159 : vector<1x32xf32> to vector<8x32xf32>
      %161 = arith.addf %158, %160 : vector<8x32xf32>
      %c0_87 = arith.constant 0 : index
      %c0_88 = arith.constant 0 : index
      %c0_89 = arith.constant 0 : index
      %162 = vector.load %arg3[%c0_87, %c0_88, %c0_89] : memref<1x8x32xf32, #tpu.memory_space<vmem>>, vector<1x8x32xf32>
      %163 = vector.shape_cast %162 : vector<1x8x32xf32> to vector<8x32xf32>
      %164 = arith.addf %163, %161 : vector<8x32xf32>
      %c0_90 = arith.constant 0 : index
      %c0_91 = arith.constant 0 : index
      %165 = vector.load %arg12[%c0_90, %c0_91] : memref<1x32xf32, #tpu.memory_space<vmem>>, vector<1x32xf32>
      %c0_92 = arith.constant 0 : index
      %c0_93 = arith.constant 0 : index
      %166 = vector.load %arg13[%c0_92, %c0_93] : memref<1x32xf32, #tpu.memory_space<vmem>>, vector<1x32xf32>
      %cst_94 = arith.constant dense<0.000000e+00> : vector<8xf32>
      %167 = vector.multi_reduction <add>, %164, %cst_94 [1] : vector<8x32xf32> to vector<8xf32>
      %168 = vector.shape_cast %167 : vector<8xf32> to vector<8x1xf32>
      %cst_95 = arith.constant 3.200000e+01 : f32
      %169 = vector.broadcast %cst_95 : f32 to vector<8x1xf32>
      %170 = arith.divf %168, %169 : vector<8x1xf32>
      %171 = vector.broadcast %170 : vector<8x1xf32> to vector<8x32xf32>
      %172 = arith.subf %164, %171 : vector<8x32xf32>
      %173 = arith.mulf %172, %172 : vector<8x32xf32>
      %cst_96 = arith.constant dense<0.000000e+00> : vector<8xf32>
      %174 = vector.multi_reduction <add>, %173, %cst_96 [1] : vector<8x32xf32> to vector<8xf32>
      %175 = vector.shape_cast %174 : vector<8xf32> to vector<8x1xf32>
      %cst_97 = arith.constant 3.200000e+01 : f32
      %176 = vector.broadcast %cst_97 : f32 to vector<8x1xf32>
      %177 = arith.divf %175, %176 : vector<8x1xf32>
      %178 = vector.broadcast %170 : vector<8x1xf32> to vector<8x32xf32>
      %179 = arith.subf %164, %178 : vector<8x32xf32>
      %cst_98 = arith.constant 9.99999974E-6 : f32
      %180 = vector.broadcast %cst_98 : f32 to vector<8x1xf32>
      %181 = arith.addf %177, %180 : vector<8x1xf32>
      %182 = math.rsqrt %181 : vector<8x1xf32>
      %183 = vector.broadcast %182 : vector<8x1xf32> to vector<8x32xf32>
      %184 = arith.mulf %179, %183 : vector<8x32xf32>
      %185 = vector.broadcast %165 : vector<1x32xf32> to vector<8x32xf32>
      %186 = arith.mulf %184, %185 : vector<8x32xf32>
      %187 = vector.broadcast %166 : vector<1x32xf32> to vector<8x32xf32>
      %188 = arith.addf %186, %187 : vector<8x32xf32>
      %c0_99 = arith.constant 0 : index
      %c0_100 = arith.constant 0 : index
      %c0_101 = arith.constant 0 : index
      %189 = vector.load %arg14[%c0_99, %c0_100, %c0_101] : memref<1x8x32xf32, #tpu.memory_space<vmem>>, vector<1x8x32xf32>
      %190 = vector.shape_cast %189 : vector<1x8x32xf32> to vector<8x32xf32>
      %191 = vector.shape_cast %188 : vector<8x32xf32> to vector<1x8x32xf32>
      tpu.vector_store %arg14[%c0_99, %c0_100, %c0_101], %191 {strides = array<i32>} : memref<1x8x32xf32, #tpu.memory_space<vmem>>, vector<1x8x32xf32>,
    } else {
    }
    return
  }
  func.func @transform_0(%arg0: i32, %arg1: i32, %arg2: i32) -> (i32, i32, i32) {
    %c0_i32 = arith.constant 0 : i32
    %c0_i32_0 = arith.constant 0 : i32
    return %arg0, %arg1, %c0_i32 : i32, i32, i32
  }
  func.func @transform_1(%arg0: i32, %arg1: i32, %arg2: i32) -> (i32, i32, i32) {
    %c0_i32 = arith.constant 0 : i32
    %c0_i32_0 = arith.constant 0 : i32
    return %arg0, %arg2, %c0_i32 : i32, i32, i32
  }
  func.func @transform_2(%arg0: i32, %arg1: i32, %arg2: i32) -> (i32, i32, i32) {
    %c0_i32 = arith.constant 0 : i32
    %c0_i32_0 = arith.constant 0 : i32
    return %arg0, %c0_i32, %arg2 : i32, i32, i32
  }
  func.func @transform_3(%arg0: i32, %arg1: i32, %arg2: i32) -> (i32, i32) {
    %c0_i32 = arith.constant 0 : i32
    %c0_i32_0 = arith.constant 0 : i32
    %c0_i32_1 = arith.constant 0 : i32
    return %c0_i32, %c0_i32_0 : i32, i32
  }
  func.func @transform_4(%arg0: i32, %arg1: i32, %arg2: i32) -> (i32, i32) {
    %c0_i32 = arith.constant 0 : i32
    %c0_i32_0 = arith.constant 0 : i32
    %c0_i32_1 = arith.constant 0 : i32
    return %c0_i32, %c0_i32_0 : i32, i32
  }
  func.func @transform_5(%arg0: i32, %arg1: i32, %arg2: i32) -> (i32, i32) {
    %c0_i32 = arith.constant 0 : i32
    %c0_i32_0 = arith.constant 0 : i32
    %c0_i32_1 = arith.constant 0 : i32
    return %c0_i32, %c0_i32_0 : i32, i32
  }
  func.func @transform_6(%arg0: i32, %arg1: i32, %arg2: i32) -> (i32, i32) {
    %c0_i32 = arith.constant 0 : i32
    %c0_i32_0 = arith.constant 0 : i32
    %c0_i32_1 = arith.constant 0 : i32
    return %c0_i32, %c0_i32_0 : i32, i32
  }
  func.func @transform_7(%arg0: i32, %arg1: i32, %arg2: i32) -> (i32, i32) {
    %c0_i32 = arith.constant 0 : i32
    %c0_i32_0 = arith.constant 0 : i32
    %c0_i32_1 = arith.constant 0 : i32
    return %c0_i32, %c0_i32_0 : i32, i32
  }
  func.func @transform_8(%arg0: i32, %arg1: i32, %arg2: i32) -> (i32, i32) {
    %c0_i32 = arith.constant 0 : i32
    %c0_i32_0 = arith.constant 0 : i32
    %c0_i32_1 = arith.constant 0 : i32
    return %c0_i32, %c0_i32_0 : i32, i32
  }
  func.func @transform_9(%arg0: i32, %arg1: i32, %arg2: i32) -> (i32, i32) {
    %c0_i32 = arith.constant 0 : i32
    %c0_i32_0 = arith.constant 0 : i32
    %c0_i32_1 = arith.constant 0 : i32
    return %c0_i32, %c0_i32_0 : i32, i32
  }
  func.func @transform_10(%arg0: i32, %arg1: i32, %arg2: i32) -> (i32, i32) {
    %c0_i32 = arith.constant 0 : i32
    %c0_i32_0 = arith.constant 0 : i32
    %c0_i32_1 = arith.constant 0 : i32
    return %c0_i32, %c0_i32_0 : i32, i32
  }
  func.func @transform_11(%arg0: i32, %arg1: i32, %arg2: i32) -> (i32, i32, i32) {
    %c0_i32 = arith.constant 0 : i32
    %c0_i32_0 = arith.constant 0 : i32
    return %arg0, %arg1, %c0_i32 : i32, i32, i32
  }
}

module attributes {stable_mosaic.version = 11 : i64} {
  func.func @_ffn_kernel(%arg0: i32, %arg1: i32, %arg2: memref<8x32xf32, #tpu.memory_space<vmem>>, %arg3: memref<32x64xbf16, #tpu.memory_space<vmem>>, %arg4: memref<1x64xf32, #tpu.memory_space<vmem>>, %arg5: memref<64x32xbf16, #tpu.memory_space<vmem>>, %arg6: memref<1x32xf32, #tpu.memory_space<vmem>>, %arg7: memref<1x32xf32, #tpu.memory_space<vmem>>, %arg8: memref<1x32xf32, #tpu.memory_space<vmem>>, %arg9: memref<8x32xf32, #tpu.memory_space<vmem>>, %arg10: memref<8x32xf32, #tpu.memory_space<vmem>>) attributes {dimension_semantics = [#tpu.dimension_semantics<parallel>, #tpu.dimension_semantics<arbitrary>], iteration_bounds = array<i64: 2, 1>, scalar_prefetch = 0 : i64, scratch_operands = 1 : i64, tpu.core_type = #tpu.core_type<tc>, window_params = [{transform_indices = @transform_0, window_bounds = array<i64: 8, 32>}, {transform_indices = @transform_1, window_bounds = array<i64: 32, 64>}, {transform_indices = @transform_2, window_bounds = array<i64: 1, 64>}, {transform_indices = @transform_3, window_bounds = array<i64: 64, 32>}, {pipeline_mode = #tpu.pipeline_mode<synchronous>, transform_indices = @transform_4, window_bounds = array<i64: 1, 32>}, {pipeline_mode = #tpu.pipeline_mode<synchronous>, transform_indices = @transform_5, window_bounds = array<i64: 1, 32>}, {pipeline_mode = #tpu.pipeline_mode<synchronous>, transform_indices = @transform_6, window_bounds = array<i64: 1, 32>}, {transform_indices = @transform_7, window_bounds = array<i64: 8, 32>}]} {
    %c0_i32 = arith.constant 0 : i32
    %0 = arith.cmpi eq, %arg1, %c0_i32 : i32
    %1 = arith.extui %0 : i1 to i32
    %c0_i32_0 = arith.constant 0 : i32
    %2 = arith.cmpi ne, %1, %c0_i32_0 : i32
    scf.if %2 {
      %cst_16 = arith.constant 0.000000e+00 : f32
      %21 = vector.broadcast %cst_16 : f32 to vector<8x32xf32>
      %c0_17 = arith.constant 0 : index
      %c0_18 = arith.constant 0 : index
      %22 = vector.load %arg10[%c0_17, %c0_18] : memref<8x32xf32, #tpu.memory_space<vmem>>, vector<8x32xf32>
      tpu.vector_store %arg10[%c0_17, %c0_18], %21 {strides = array<i32>} : memref<8x32xf32, #tpu.memory_space<vmem>>, vector<8x32xf32>,
    } else {
    }
    %c0 = arith.constant 0 : index
    %c0_1 = arith.constant 0 : index
    %3 = vector.load %arg2[%c0, %c0_1] : memref<8x32xf32, #tpu.memory_space<vmem>>, vector<8x32xf32>
    %4 = arith.truncf %3 : vector<8x32xf32> to vector<8x32xbf16>
    %c0_2 = arith.constant 0 : index
    %c0_3 = arith.constant 0 : index
    %5 = vector.load %arg3[%c0_2, %c0_3] : memref<32x64xbf16, #tpu.memory_space<vmem>>, vector<32x64xbf16>
    %cst = arith.constant dense<0.000000e+00> : vector<8x64xf32>
    %6 = tpu.matmul %4, %5, %cst {dimension_numbers = #tpu.dot_dimension_numbers<[1], [0], [0], [1], [0, 0, 1, 1], [], []>} : vector<8x32xbf16>, vector<32x64xbf16>, vector<8x64xf32> -> vector<8x64xf32>
    %c0_4 = arith.constant 0 : index
    %c0_5 = arith.constant 0 : index
    %7 = vector.load %arg4[%c0_4, %c0_5] : memref<1x64xf32, #tpu.memory_space<vmem>>, vector<1x64xf32>
    %8 = vector.broadcast %7 : vector<1x64xf32> to vector<8x64xf32>
    %9 = arith.addf %6, %8 : vector<8x64xf32>
    %cst_6 = arith.constant 0.000000e+00 : f32
    %10 = vector.broadcast %cst_6 : f32 to vector<8x64xf32>
    %11 = arith.maximumf %9, %10 : vector<8x64xf32>
    %c0_7 = arith.constant 0 : index
    %c0_8 = arith.constant 0 : index
    %12 = vector.load %arg10[%c0_7, %c0_8] : memref<8x32xf32, #tpu.memory_space<vmem>>, vector<8x32xf32>
    %13 = arith.truncf %11 : vector<8x64xf32> to vector<8x64xbf16>
    %c0_9 = arith.constant 0 : index
    %c0_10 = arith.constant 0 : index
    %14 = vector.load %arg5[%c0_9, %c0_10] : memref<64x32xbf16, #tpu.memory_space<vmem>>, vector<64x32xbf16>
    %cst_11 = arith.constant dense<0.000000e+00> : vector<8x32xf32>
    %15 = tpu.matmul %13, %14, %cst_11 {dimension_numbers = #tpu.dot_dimension_numbers<[1], [0], [0], [1], [0, 0, 1, 1], [], []>} : vector<8x64xbf16>, vector<64x32xbf16>, vector<8x32xf32> -> vector<8x32xf32>
    %16 = arith.addf %12, %15 : vector<8x32xf32>
    %c0_12 = arith.constant 0 : index
    %c0_13 = arith.constant 0 : index
    %17 = vector.load %arg10[%c0_12, %c0_13] : memref<8x32xf32, #tpu.memory_space<vmem>>, vector<8x32xf32>
    tpu.vector_store %arg10[%c0_12, %c0_13], %16 {strides = array<i32>} : memref<8x32xf32, #tpu.memory_space<vmem>>, vector<8x32xf32>,
    %c0_i32_14 = arith.constant 0 : i32
    %18 = arith.cmpi eq, %arg1, %c0_i32_14 : i32
    %19 = arith.extui %18 : i1 to i32
    %c0_i32_15 = arith.constant 0 : i32
    %20 = arith.cmpi ne, %19, %c0_i32_15 : i32
    scf.if %20 {
      %c0_16 = arith.constant 0 : index
      %c0_17 = arith.constant 0 : index
      %21 = vector.load %arg10[%c0_16, %c0_17] : memref<8x32xf32, #tpu.memory_space<vmem>>, vector<8x32xf32>
      %c0_18 = arith.constant 0 : index
      %c0_19 = arith.constant 0 : index
      %22 = vector.load %arg6[%c0_18, %c0_19] : memref<1x32xf32, #tpu.memory_space<vmem>>, vector<1x32xf32>
      %23 = vector.broadcast %22 : vector<1x32xf32> to vector<8x32xf32>
      %24 = arith.addf %21, %23 : vector<8x32xf32>
      %c0_20 = arith.constant 0 : index
      %c0_21 = arith.constant 0 : index
      %25 = vector.load %arg2[%c0_20, %c0_21] : memref<8x32xf32, #tpu.memory_space<vmem>>, vector<8x32xf32>
      %26 = arith.addf %25, %24 : vector<8x32xf32>
      %c0_22 = arith.constant 0 : index
      %c0_23 = arith.constant 0 : index
      %27 = vector.load %arg7[%c0_22, %c0_23] : memref<1x32xf32, #tpu.memory_space<vmem>>, vector<1x32xf32>
      %c0_24 = arith.constant 0 : index
      %c0_25 = arith.constant 0 : index
      %28 = vector.load %arg8[%c0_24, %c0_25] : memref<1x32xf32, #tpu.memory_space<vmem>>, vector<1x32xf32>
      %cst_26 = arith.constant dense<0.000000e+00> : vector<8xf32>
      %29 = vector.multi_reduction <add>, %26, %cst_26 [1] : vector<8x32xf32> to vector<8xf32>
      %30 = vector.shape_cast %29 : vector<8xf32> to vector<8x1xf32>
      %cst_27 = arith.constant 3.200000e+01 : f32
      %31 = vector.broadcast %cst_27 : f32 to vector<8x1xf32>
      %32 = arith.divf %30, %31 : vector<8x1xf32>
      %33 = vector.broadcast %32 : vector<8x1xf32> to vector<8x32xf32>
      %34 = arith.subf %26, %33 : vector<8x32xf32>
      %35 = arith.mulf %34, %34 : vector<8x32xf32>
      %cst_28 = arith.constant dense<0.000000e+00> : vector<8xf32>
      %36 = vector.multi_reduction <add>, %35, %cst_28 [1] : vector<8x32xf32> to vector<8xf32>
      %37 = vector.shape_cast %36 : vector<8xf32> to vector<8x1xf32>
      %cst_29 = arith.constant 3.200000e+01 : f32
      %38 = vector.broadcast %cst_29 : f32 to vector<8x1xf32>
      %39 = arith.divf %37, %38 : vector<8x1xf32>
      %40 = vector.broadcast %32 : vector<8x1xf32> to vector<8x32xf32>
      %41 = arith.subf %26, %40 : vector<8x32xf32>
      %cst_30 = arith.constant 9.99999974E-6 : f32
      %42 = vector.broadcast %cst_30 : f32 to vector<8x1xf32>
      %43 = arith.addf %39, %42 : vector<8x1xf32>
      %44 = math.rsqrt %43 : vector<8x1xf32>
      %45 = vector.broadcast %44 : vector<8x1xf32> to vector<8x32xf32>
      %46 = arith.mulf %41, %45 : vector<8x32xf32>
      %47 = vector.broadcast %27 : vector<1x32xf32> to vector<8x32xf32>
      %48 = arith.mulf %46, %47 : vector<8x32xf32>
      %49 = vector.broadcast %28 : vector<1x32xf32> to vector<8x32xf32>
      %50 = arith.addf %48, %49 : vector<8x32xf32>
      %c0_31 = arith.constant 0 : index
      %c0_32 = arith.constant 0 : index
      %51 = vector.load %arg9[%c0_31, %c0_32] : memref<8x32xf32, #tpu.memory_space<vmem>>, vector<8x32xf32>
      tpu.vector_store %arg9[%c0_31, %c0_32], %50 {strides = array<i32>} : memref<8x32xf32, #tpu.memory_space<vmem>>, vector<8x32xf32>,
    } else {
    }
    return
  }
  func.func @transform_0(%arg0: i32, %arg1: i32) -> (i32, i32) {
    %c0_i32 = arith.constant 0 : i32
    %c0_i32_0 = arith.constant 0 : i32
    return %arg0, %c0_i32 : i32, i32
  }
  func.func @transform_1(%arg0: i32, %arg1: i32) -> (i32, i32) {
    %c0_i32 = arith.constant 0 : i32
    %c0_i32_0 = arith.constant 0 : i32
    return %c0_i32, %arg1 : i32, i32
  }
  func.func @transform_2(%arg0: i32, %arg1: i32) -> (i32, i32) {
    %c0_i32 = arith.constant 0 : i32
    %c0_i32_0 = arith.constant 0 : i32
    return %c0_i32, %arg1 : i32, i32
  }
  func.func @transform_3(%arg0: i32, %arg1: i32) -> (i32, i32) {
    %c0_i32 = arith.constant 0 : i32
    %c0_i32_0 = arith.constant 0 : i32
    return %arg1, %c0_i32 : i32, i32
  }
  func.func @transform_4(%arg0: i32, %arg1: i32) -> (i32, i32) {
    %c0_i32 = arith.constant 0 : i32
    %c0_i32_0 = arith.constant 0 : i32
    %c0_i32_1 = arith.constant 0 : i32
    return %c0_i32, %c0_i32_0 : i32, i32
  }
  func.func @transform_5(%arg0: i32, %arg1: i32) -> (i32, i32) {
    %c0_i32 = arith.constant 0 : i32
    %c0_i32_0 = arith.constant 0 : i32
    %c0_i32_1 = arith.constant 0 : i32
    return %c0_i32, %c0_i32_0 : i32, i32
  }
  func.func @transform_6(%arg0: i32, %arg1: i32) -> (i32, i32) {
    %c0_i32 = arith.constant 0 : i32
    %c0_i32_0 = arith.constant 0 : i32
    %c0_i32_1 = arith.constant 0 : i32
    return %c0_i32, %c0_i32_0 : i32, i32
  }
  func.func @transform_7(%arg0: i32, %arg1: i32) -> (i32, i32) {
    %c0_i32 = arith.constant 0 : i32
    %c0_i32_0 = arith.constant 0 : i32
    return %arg0, %c0_i32 : i32, i32
  }
}

module attributes {stable_mosaic.version = 11 : i64} {
  func.func @_dense_kernel(%arg0: i32, %arg1: i32, %arg2: memref<8x32xf32, #tpu.memory_space<vmem>>, %arg3: memref<32x128xbf16, #tpu.memory_space<vmem>>, %arg4: memref<1x128xf32, #tpu.memory_space<vmem>>, %arg5: memref<8x128xf32, #tpu.memory_space<vmem>>) attributes {dimension_semantics = [#tpu.dimension_semantics<parallel>, #tpu.dimension_semantics<parallel>], iteration_bounds = array<i64: 2, 1>, scalar_prefetch = 0 : i64, scratch_operands = 0 : i64, tpu.core_type = #tpu.core_type<tc>, window_params = [{transform_indices = @transform_0, window_bounds = array<i64: 8, 32>}, {transform_indices = @transform_1, window_bounds = array<i64: 32, 128>}, {transform_indices = @transform_2, window_bounds = array<i64: 1, 128>}, {transform_indices = @transform_3, window_bounds = array<i64: 8, 128>}]} {
    %c0 = arith.constant 0 : index
    %c0_0 = arith.constant 0 : index
    %0 = vector.load %arg2[%c0, %c0_0] : memref<8x32xf32, #tpu.memory_space<vmem>>, vector<8x32xf32>
    %1 = arith.truncf %0 : vector<8x32xf32> to vector<8x32xbf16>
    %c0_1 = arith.constant 0 : index
    %c0_2 = arith.constant 0 : index
    %2 = vector.load %arg3[%c0_1, %c0_2] : memref<32x128xbf16, #tpu.memory_space<vmem>>, vector<32x128xbf16>
    %cst = arith.constant dense<0.000000e+00> : vector<8x128xf32>
    %3 = tpu.matmul %1, %2, %cst {dimension_numbers = #tpu.dot_dimension_numbers<[1], [0], [0], [1], [0, 0, 1, 1], [], []>} : vector<8x32xbf16>, vector<32x128xbf16>, vector<8x128xf32> -> vector<8x128xf32>
    %c0_3 = arith.constant 0 : index
    %c0_4 = arith.constant 0 : index
    %4 = vector.load %arg4[%c0_3, %c0_4] : memref<1x128xf32, #tpu.memory_space<vmem>>, vector<1x128xf32>
    %5 = vector.broadcast %4 : vector<1x128xf32> to vector<8x128xf32>
    %6 = arith.addf %3, %5 : vector<8x128xf32>
    %c0_5 = arith.constant 0 : index
    %c0_6 = arith.constant 0 : index
    %7 = vector.load %arg5[%c0_5, %c0_6] : memref<8x128xf32, #tpu.memory_space<vmem>>, vector<8x128xf32>
    tpu.vector_store %arg5[%c0_5, %c0_6], %6 {strides = array<i32>} : memref<8x128xf32, #tpu.memory_space<vmem>>, vector<8x128xf32>,
    return
  }
  func.func @transform_0(%arg0: i32, %arg1: i32) -> (i32, i32) {
    %c0_i32 = arith.constant 0 : i32
    %c0_i32_0 = arith.constant 0 : i32
    return %arg0, %c0_i32 : i32, i32
  }
  func.func @transform_1(%arg0: i32, %arg1: i32) -> (i32, i32) {
    %c0_i32 = arith.constant 0 : i32
    %c0_i32_0 = arith.constant 0 : i32
    return %c0_i32, %arg1 : i32, i32
  }
  func.func @transform_2(%arg0: i32, %arg1: i32) -> (i32, i32) {
    %c0_i32 = arith.constant 0 : i32
    %c0_i32_0 = arith.constant 0 : i32
    return %c0_i32, %arg1 : i32, i32
  }
  func.func @transform_3(%arg0: i32, %arg1: i32) -> (i32, i32) {
    %c0_i32 = arith.constant 0 : i32
    return %arg0, %arg1 : i32, i32
  }
}

</mosaic_0001>

<llo_original>
// kernel: transformer_decoder_forward.9
$region0: #{transformer_decoder_forward.9}
  #allocation0 [shape = 'u32[]', space=smem, size = 0x4, offset = 0x4, fixed_abs, tag = 'smem constant byte address 0x4 - core index']
  #allocation1 [shape = 'u32[144,128]{1,0:T(1,128)}', space=vmem, size = 0x12000, scoped, tag = 'internal scratch']
  #allocation2 [shape = 'f32[8,32]{1,0:T(8,128)}', space=vmem, size = 0x1000, scoped, tag = 'scratch operand']
  %s0 = inlined_call_operand.vmem [shape: f32[16,32], index: 0, kind: input, shape index: {}]
  %s1 = inlined_call_operand.vmem [shape: bf16[32,64], index: 1, kind: input, shape index: {}]
  %s2 = inlined_call_operand.vmem [shape: f32[1,64], index: 2, kind: input, shape index: {}]
  %s3 = inlined_call_operand.vmem [shape: bf16[64,32], index: 3, kind: input, shape index: {}]
  %s4 = inlined_call_operand.vmem [shape: f32[1,32], index: 4, kind: input, shape index: {}]
  %s5 = inlined_call_operand.vmem [shape: f32[1,32], index: 5, kind: input, shape index: {}]
  %s6 = inlined_call_operand.vmem [shape: f32[1,32], index: 6, kind: input, shape index: {}]
  %s7 = inlined_call_operand.vmem [shape: f32[16,32], index: 7, kind: output, shape index: {}]
  %s8 = sld [smem:[#allocation0]]
  $region69: #{transformer_decoder_forward.9} parent=0
    _
  %s10 = ssub.s32 1, %s8
  %s11 = scalar_select 0, %s10, %s8
  loop: start=0, step=1, limit=4
  $region2: #{transformer_decoder_forward.9} parent=0 // loop_pre_header
    _
  $region3: #{transformer_decoder_forward.9} parent=0 // loop_header
    %s13 = sphi 0, %s17
    %p14 = scmp.ge.s32.totalorder %s13, 4
    %s20 = sphi 0, %s32
    %s21 = sphi 0, %s28
    %s22 = sphi 0, %s20
    %s23 = sphi 0, %s21
    %s24 = sphi 0, %s22
    %s25 = sphi 0, %s23
    %s35 = sphi 0, %s37
    %s38 = sphi 0, %s35
    %s39 = sphi 0, %s38
    %s55 = sphi 0, %s39
    %s61 = sphi 0, %s63
    %s64 = sphi 0, %s61
    %s65 = sphi 0, %s64
    %s81 = sphi 0, %s65
    %s87 = sphi 0, %s89
    %s90 = sphi 0, %s87
    %s91 = sphi 0, %s90
    %s107 = sphi 0, %s91
    %s113 = sphi 0, %s115
    %s116 = sphi 0, %s113
    %s117 = sphi 0, %s116
    %s133 = sphi 0, %s117
    %s137 = sphi 0, %s137
    %s139 = sphi 0, %s137
    %s140 = sphi 0, %s139
    %s154 = sphi 0, %s140
    %s158 = sphi 0, %s158
    %s160 = sphi 0, %s158
    %s161 = sphi 0, %s160
    %s175 = sphi 0, %s161
    %s179 = sphi 0, %s179
    %s181 = sphi 0, %s179
    %s182 = sphi 0, %s181
    %s196 = sphi 0, %s182
    %s202 = sphi 0, %s204
    %s205 = sphi 0, %s202
    %s206 = sphi 0, %s205
    %s222 = sphi 0, %s206
  $region4: #{transformer_decoder_forward.9} parent=0 // loop_header_branch
    %16 = sbr.rel (%p14) target = $region8
  $region5: #{transformer_decoder_forward.9} parent=0 // loop_body
    %s18 = ssub.s32 %s13, 1
    %s19 = ssub.s32 %s13, 2
    %s26 = sadd.s32 1, %s21
    %p27 = scmp.ge.s32.totalorder %s26, 1
    %s28 = scalar_select %p27, 0, %s26
    %s29 = sadd.s32 1, %s20
    %s30 = scalar_select %p27, %s29, %s20
    %p31 = scmp.ge.s32.totalorder %s30, 2
    %s32 = scalar_select %p31, 0, %s30
    %s33 = ssub.s32 %s20, %s32
    %p34 = scmp.eq.s32.totalorder %s33, 0
    %s36 = sadd.s32 %s35, 1
    %s37 = scalar_select %p34, %s35, %s36
    %p40 = pneg %p34
    %p41 = scmp.eq.s32.totalorder %s13, 1
    %p42 = por %p40, %p41
    %p43 = scmp.ne.s32.totalorder %s35, %s38
    %p44 = scmp.eq.s32.totalorder %s13, 0
    %p45 = por %p43, %p44
    %p46 = scmp.ne.s32.totalorder %s35, %s38
    %p47 = scmp.eq.s32.totalorder %s18, 1
    %p48 = por %p46, %p47
    %p49 = scmp.ne.s32.totalorder %s38, %s39
    %p50 = scmp.eq.s32.totalorder %s18, 0
    %p51 = por %p49, %p50
    %p52 = scmp.ne.s32.totalorder %s38, %s39
    %p53 = scmp.eq.s32.totalorder %s19, 1
    %p54 = por %p52, %p53
    %p56 = scmp.ne.s32.totalorder %s39, %s55
    %p57 = scmp.eq.s32.totalorder %s19, 0
    %p58 = por %p56, %p57
    %s59 = ssub.s32 %s21, %s28
    %p60 = scmp.eq.s32.totalorder %s59, 0
    %s62 = sadd.s32 %s61, 1
    %s63 = scalar_select %p60, %s61, %s62
    %p66 = pneg %p60
    %p67 = scmp.eq.s32.totalorder %s13, 1
    %p68 = por %p66, %p67
    %p69 = scmp.ne.s32.totalorder %s61, %s64
    %p70 = scmp.eq.s32.totalorder %s13, 0
    %p71 = por %p69, %p70
    %p72 = scmp.ne.s32.totalorder %s61, %s64
    %p73 = scmp.eq.s32.totalorder %s18, 1
    %p74 = por %p72, %p73
    %p75 = scmp.ne.s32.totalorder %s64, %s65
    %p76 = scmp.eq.s32.totalorder %s18, 0
    %p77 = por %p75, %p76
    %p78 = scmp.ne.s32.totalorder %s64, %s65
    %p79 = scmp.eq.s32.totalorder %s19, 1
    %p80 = por %p78, %p79
    %p82 = scmp.ne.s32.totalorder %s65, %s81
    %p83 = scmp.eq.s32.totalorder %s19, 0
    %p84 = por %p82, %p83
    %s85 = ssub.s32 %s21, %s28
    %p86 = scmp.eq.s32.totalorder %s85, 0
    %s88 = sadd.s32 %s87, 1
    %s89 = scalar_select %p86, %s87, %s88
    %p92 = pneg %p86
    %p93 = scmp.eq.s32.totalorder %s13, 1
    %p94 = por %p92, %p93
    %p95 = scmp.ne.s32.totalorder %s87, %s90
    %p96 = scmp.eq.s32.totalorder %s13, 0
    %p97 = por %p95, %p96
    %p98 = scmp.ne.s32.totalorder %s87, %s90
    %p99 = scmp.eq.s32.totalorder %s18, 1
    %p100 = por %p98, %p99
    %p101 = scmp.ne.s32.totalorder %s90, %s91
    %p102 = scmp.eq.s32.totalorder %s18, 0
    %p103 = por %p101, %p102
    %p104 = scmp.ne.s32.totalorder %s90, %s91
    %p105 = scmp.eq.s32.totalorder %s19, 1
    %p106 = por %p104, %p105
    %p108 = scmp.ne.s32.totalorder %s91, %s107
    %p109 = scmp.eq.s32.totalorder %s19, 0
    %p110 = por %p108, %p109
    %s111 = ssub.s32 %s21, %s28
    %p112 = scmp.eq.s32.totalorder %s111, 0
    %s114 = sadd.s32 %s113, 1
    %s115 = scalar_select %p112, %s113, %s114
    %p118 = pneg %p112
    %p119 = scmp.eq.s32.totalorder %s13, 1
    %p120 = por %p118, %p119
    %p121 = scmp.ne.s32.totalorder %s113, %s116
    %p122 = scmp.eq.s32.totalorder %s13, 0
    %p123 = por %p121, %p122
    %p124 = scmp.ne.s32.totalorder %s113, %s116
    %p125 = scmp.eq.s32.totalorder %s18, 1
    %p126 = por %p124, %p125
    %p127 = scmp.ne.s32.totalorder %s116, %s117
    %p128 = scmp.eq.s32.totalorder %s18, 0
    %p129 = por %p127, %p128
    %p130 = scmp.ne.s32.totalorder %s116, %s117
    %p131 = scmp.eq.s32.totalorder %s19, 1
    %p132 = por %p130, %p131
    %p134 = scmp.ne.s32.totalorder %s117, %s133
    %p135 = scmp.eq.s32.totalorder %s19, 0
    %p136 = por %p134, %p135
    %s138 = sadd.s32 %s137, 1
    %p141 = scmp.eq.s32.totalorder %s13, 1
    %p142 = scmp.ne.s32.totalorder %s137, %s139
    %p143 = scmp.eq.s32.totalorder %s13, 0
    %p144 = por %p142, %p143
    %p145 = scmp.ne.s32.totalorder %s137, %s139
    %p146 = scmp.eq.s32.totalorder %s18, 1
    %p147 = por %p145, %p146
    %p148 = scmp.ne.s32.totalorder %s139, %s140
    %p149 = scmp.eq.s32.totalorder %s18, 0
    %p150 = por %p148, %p149
    %p151 = scmp.ne.s32.totalorder %s139, %s140
    %p152 = scmp.eq.s32.totalorder %s19, 1
    %p153 = por %p151, %p152
    %p155 = scmp.ne.s32.totalorder %s140, %s154
    %p156 = scmp.eq.s32.totalorder %s19, 0
    %p157 = por %p155, %p156
    %s159 = sadd.s32 %s158, 1
    %p162 = scmp.eq.s32.totalorder %s13, 1
    %p163 = scmp.ne.s32.totalorder %s158, %s160
    %p164 = scmp.eq.s32.totalorder %s13, 0
    %p165 = por %p163, %p164
    %p166 = scmp.ne.s32.totalorder %s158, %s160
    %p167 = scmp.eq.s32.totalorder %s18, 1
    %p168 = por %p166, %p167
    %p169 = scmp.ne.s32.totalorder %s160, %s161
    %p170 = scmp.eq.s32.totalorder %s18, 0
    %p171 = por %p169, %p170
    %p172 = scmp.ne.s32.totalorder %s160, %s161
    %p173 = scmp.eq.s32.totalorder %s19, 1
    %p174 = por %p172, %p173
    %p176 = scmp.ne.s32.totalorder %s161, %s175
    %p177 = scmp.eq.s32.totalorder %s19, 0
    %p178 = por %p176, %p177
    %s180 = sadd.s32 %s179, 1
    %p183 = scmp.eq.s32.totalorder %s13, 1
    %p184 = scmp.ne.s32.totalorder %s179, %s181
    %p185 = scmp.eq.s32.totalorder %s13, 0
    %p186 = por %p184, %p185
    %p187 = scmp.ne.s32.totalorder %s179, %s181
    %p188 = scmp.eq.s32.totalorder %s18, 1
    %p189 = por %p187, %p188
    %p190 = scmp.ne.s32.totalorder %s181, %s182
    %p191 = scmp.eq.s32.totalorder %s18, 0
    %p192 = por %p190, %p191
    %p193 = scmp.ne.s32.totalorder %s181, %s182
    %p194 = scmp.eq.s32.totalorder %s19, 1
    %p195 = por %p193, %p194
    %p197 = scmp.ne.s32.totalorder %s182, %s196
    %p198 = scmp.eq.s32.totalorder %s19, 0
    %p199 = por %p197, %p198
    %s200 = ssub.s32 %s20, %s32
    %p201 = scmp.eq.s32.totalorder %s200, 0
    %s203 = sadd.s32 %s202, 1
    %s204 = scalar_select %p201, %s202, %s203
    %p207 = pneg %p201
    %p208 = scmp.eq.s32.totalorder %s13, 1
    %p209 = por %p207, %p208
    %p210 = scmp.ne.s32.totalorder %s202, %s205
    %p211 = scmp.eq.s32.totalorder %s13, 0
    %p212 = por %p210, %p211
    %p213 = scmp.ne.s32.totalorder %s202, %s205
    %p214 = scmp.eq.s32.totalorder %s18, 1
    %p215 = por %p213, %p214
    %p216 = scmp.ne.s32.totalorder %s205, %s206
    %p217 = scmp.eq.s32.totalorder %s18, 0
    %p218 = por %p216, %p217
    %p219 = scmp.ne.s32.totalorder %s205, %s206
    %p220 = scmp.eq.s32.totalorder %s19, 1
    %p221 = por %p219, %p220
    %p223 = scmp.ne.s32.totalorder %s206, %s222
    %p224 = scmp.eq.s32.totalorder %s19, 0
    %p225 = por %p223, %p224
    %p226 = scmp.le.s32.totalorder 1, %s13
    %p227 = scmp.lt.s32.totalorder %s13, 3
    %p228 = pnand %p226, %p227
    %p229 = pneg %p228
    // Predicated region
    $region9: #{transformer_decoder_forward.9} parent=5 // pred_check
      _
    $region10: #{transformer_decoder_forward.9} parent=5 // pred_check_branch
      %231 = sbr.rel (%p228) target = $region12
    $region11: #{transformer_decoder_forward.9} parent=5 // pred_region
      %s232 = ssub.s32 %s13, 1
      // Predicated region
      $region13: #{transformer_decoder_forward.9} parent=11 // pred_check
        %p233 = pneg %p77
      $region14: #{transformer_decoder_forward.9} parent=11 // pred_check_branch
        %235 = sbr.rel (%p233) target = $region16
      $region15: #{transformer_decoder_forward.9} parent=11 // pred_region
        %p236 = scmp.lt.s32.totalorder %s23, 0
        %s237 = scalar_select %p236, %s23, 0
        %s238 = smul.addr %s237, 4
        %s239 = scalar_lea.vmem %s1, %s238
      $region16: #{transformer_decoder_forward.9} parent=11 // pred_fallthru
        _
      // Predicated region
      $region17: #{transformer_decoder_forward.9} parent=11 // pred_check
        %p240 = pneg %p103
      $region18: #{transformer_decoder_forward.9} parent=11 // pred_check_branch
        %242 = sbr.rel (%p240) target = $region20
      $region19: #{transformer_decoder_forward.9} parent=11 // pred_region
        %p243 = scmp.lt.s32.totalorder %s23, 0
        %s244 = scalar_select %p243, %s23, 0
        %s245 = scalar_lea.vmem %s2, %s244
      $region20: #{transformer_decoder_forward.9} parent=11 // pred_fallthru
        _
      // Predicated region
      $region21: #{transformer_decoder_forward.9} parent=11 // pred_check
        %p246 = pneg %p129
      $region22: #{transformer_decoder_forward.9} parent=11 // pred_check_branch
        %248 = sbr.rel (%p246) target = $region24
      $region23: #{transformer_decoder_forward.9} parent=11 // pred_region
        %s249 = smul.u32 8, %s23
        %p250 = scmp.lt.s32.totalorder %s249, 7
        %s251 = scalar_select %p250, %s249, 7
        %s252 = smul.addr %s251, 4
        %s253 = scalar_lea.vmem %s3, %s252
        %s254 = smul.u32 8, %s23
      $region24: #{transformer_decoder_forward.9} parent=11 // pred_fallthru
        _
      // Predicated region
      $region25: #{transformer_decoder_forward.9} parent=11 // pred_check
        %p255 = pneg %p150
      $region26: #{transformer_decoder_forward.9} parent=11 // pred_check_branch
        %257 = sbr.rel (%p255) target = $region28
      $region27: #{transformer_decoder_forward.9} parent=11 // pred_region
        _
      $region28: #{transformer_decoder_forward.9} parent=11 // pred_fallthru
        _
      // Predicated region
      $region29: #{transformer_decoder_forward.9} parent=11 // pred_check
        %p258 = pneg %p171
      $region30: #{transformer_decoder_forward.9} parent=11 // pred_check_branch
        %260 = sbr.rel (%p258) target = $region32
      $region31: #{transformer_decoder_forward.9} parent=11 // pred_region
        _
      $region32: #{transformer_decoder_forward.9} parent=11 // pred_fallthru
        _
      // Predicated region
      $region33: #{transformer_decoder_forward.9} parent=11 // pred_check
        %p261 = pneg %p192
      $region34: #{transformer_decoder_forward.9} parent=11 // pred_check_branch
        %263 = sbr.rel (%p261) target = $region36
      $region35: #{transformer_decoder_forward.9} parent=11 // pred_region
        _
      $region36: #{transformer_decoder_forward.9} parent=11 // pred_fallthru
        _
    $region12: #{transformer_decoder_forward.9} parent=5 // pred_fallthru
      _
    %p264 = scmp.lt.s32.totalorder %s13, 2
    // Predicated region
    $region37: #{transformer_decoder_forward.9} parent=5 // pred_check
      %p265 = pneg %p264
    $region38: #{transformer_decoder_forward.9} parent=5 // pred_check_branch
      %267 = sbr.rel (%p265) target = $region40
    $region39: #{transformer_decoder_forward.9} parent=5 // pred_region
      // Predicated region
      $region41: #{transformer_decoder_forward.9} parent=39 // pred_check
        %p268 = pneg %p45
      $region42: #{transformer_decoder_forward.9} parent=39 // pred_check_branch
        %270 = sbr.rel (%p268) target = $region44
      $region43: #{transformer_decoder_forward.9} parent=39 // pred_region
        %p271 = scmp.lt.s32.totalorder %s20, 1
        %s272 = scalar_select %p271, %s20, 1
        %s273 = smul.addr %s272, 8
        %s274 = scalar_lea.vmem %s0, %s273
      $region44: #{transformer_decoder_forward.9} parent=39 // pred_fallthru
        _
    $region40: #{transformer_decoder_forward.9} parent=5 // pred_fallthru
      _
    %p275 = scmp.le.s32.totalorder 1, %s13
    %p276 = scmp.lt.s32.totalorder %s13, 3
    %p277 = pnand %p275, %p276
    %p278 = pneg %p277
    // Predicated region
    $region45: #{transformer_decoder_forward.9} parent=5 // pred_check
      _
    $region46: #{transformer_decoder_forward.9} parent=5 // pred_check_branch
      %280 = sbr.rel (%p277) target = $region48
    $region47: #{transformer_decoder_forward.9} parent=5 // pred_region
      %s281 = ssub.s32 %s13, 1
      %p282 = scmp.lt.s32.totalorder %s22, 1
      %s283 = scalar_select %p282, %s22, 1
      %s284 = smul.addr %s283, 8
      %s285 = scalar_lea.vmem %s0, %s284
      %p286 = pneg %p51
      %p287 = pneg %p48
      %p288 = scmp.lt.s32.totalorder %s23, 0
      %s289 = scalar_select %p288, %s23, 0
      %s290 = smul.addr %s289, 4
      %s291 = scalar_lea.vmem %s1, %s290
      %p292 = pneg %p77
      %p293 = pneg %p74
      %p294 = scmp.lt.s32.totalorder %s23, 0
      %s295 = scalar_select %p294, %s23, 0
      %s296 = scalar_lea.vmem %s2, %s295
      %p297 = pneg %p103
      %p298 = pneg %p100
      %s299 = smul.u32 8, %s23
      %p300 = scmp.lt.s32.totalorder %s299, 7
      %s301 = scalar_select %p300, %s299, 7
      %s302 = smul.addr %s301, 4
      %s303 = scalar_lea.vmem %s3, %s302
      %p304 = pneg %p129
      %p305 = pneg %p126
      %p306 = pneg %p150
      %p307 = pneg %p147
      %p308 = pneg %p171
      %p309 = pneg %p168
      %p310 = pneg %p192
      %p311 = pneg %p189
      %p312 = pneg %p218
      %p313 = pneg %p215
      %p314 = scmp.lt.s32.totalorder %s22, 1
      %s315 = scalar_select %p314, %s22, 1
      %s316 = smul.addr %s315, 8
      %s317 = scalar_lea.vmem %s7, %s316
      %p318 = scmp.lt.s32.totalorder %s22, 1
      %s319 = scalar_select %p318, %s22, 1
      %s320 = smul.addr %s319, 8
      %s321 = scalar_lea.vmem %s0, %s320
      %p322 = scmp.lt.s32.totalorder %s23, 0
      %s323 = scalar_select %p322, %s23, 0
      %s324 = smul.addr %s323, 4
      %s325 = scalar_lea.vmem %s1, %s324
      %p326 = scmp.lt.s32.totalorder %s23, 0
      %s327 = scalar_select %p326, %s23, 0
      %s328 = scalar_lea.vmem %s2, %s327
      %s329 = smul.u32 8, %s23
      %p330 = scmp.lt.s32.totalorder %s329, 7
      %s331 = scalar_select %p330, %s329, 7
      %s332 = smul.addr %s331, 4
      %s333 = scalar_lea.vmem %s3, %s332
      %s334 = smul.u32 8, %s23
      %p335 = scmp.lt.s32.totalorder %s22, 1
      %s336 = scalar_select %p335, %s22, 1
      %s337 = smul.addr %s336, 8
      %s338 = scalar_lea.vmem %s7, %s337
      %p340 = scmp.eq.s32.totalorder %s23, 0
      // Predicated region
      $region49: #{transformer_decoder_forward.9} parent=47 // pred_check
        %p341 = pneg %p340
      $region50: #{transformer_decoder_forward.9} parent=47 // pred_check_branch
        %343 = sbr.rel (%p341) target = $region52
      $region51: #{transformer_decoder_forward.9} parent=47 // pred_region
        %vm344 = vcmask 261120
        %345 = vst.msk [vmem:[#allocation2] sm:$0xff] %vm344, 0.0
      $region52: #{transformer_decoder_forward.9} parent=47 // pred_fallthru
        _
      %v346 = vld [vmem:[%s321] sm:$0xff]
      %v347 = vpack.c.bf16 %v346, %v346
      %v348 = vld [vmem:[%s325] sm:$0xf]
      %v349 = vld [vmem:[%s325 + $0x4] sm:$0xf]
      %v350 = vld [vmem:[%s325 + $0x8] sm:$0xf]
      %v351 = vld [vmem:[%s325 + $0xc] sm:$0xf]
      %v352 = vld [vmem:[%s328] sm:$0x1]
      %v354 = vlaneseq
      %v355 = vshrl.u32 %v354, 7
      %v356 = vsub.s32 0, %v355
      %v357 = vrot.slane %v352, %v356
      %v363 = vunpack.c.l.b16 %v348
      %v364 = vunpack.c.l.b16 %v349
      %v365 = vunpack.c.l.b16 %v350
      %v366 = vunpack.c.l.b16 %v351
      %v367 = vpack.c.b16 %v364, %v363
      %v368 = vpack.c.b16 %v366, %v365
      %vm371 = vcmask 261120
      %v373 = vsel %vm371, %v347, 0
      %375 = vmatprep.subr.bf16.mxu0 0
      %376 = vmatpush1.bf16.msra.mxu0 0
      %377 = vmatprep.subr.bf16.mxu0 0
      %378 = vmatpush1.bf16.msra.mxu0 0
      %379 = vmatprep.subr.bf16.mxu0 0
      %380 = vmatpush1.bf16.msra.mxu0 0
      %381 = vmatprep.subr.bf16.mxu0 0
      %382 = vmatpush1.bf16.msra.mxu0 0
      %383 = vmatprep.subr.bf16.mxu0 0
      %384 = vmatpush1.bf16.msra.mxu0 0
      %385 = vmatprep.subr.bf16.mxu0 0
      %386 = vmatpush1.bf16.msra.mxu0 0
      %387 = vmatprep.subr.bf16.mxu0 0
      %388 = vmatpush1.bf16.msra.mxu0 %v368
      %389 = vmatprep.subr.bf16.mxu0 0
      %390 = vmatpush1.bf16.msra.mxu0 %v367
      %391 = vmatprep.subr.bf16.mxu0 0
      %392 = vmatpush2.bf16.msra.mxu0 0
      %393 = vmatprep.subr.bf16.mxu0 0
      %394 = vmatpush2.bf16.msra.mxu0 0
      %395 = vmatprep.subr.bf16.mxu0 0
      %396 = vmatpush2.bf16.msra.mxu0 0
      %397 = vmatprep.subr.bf16.mxu0 0
      %398 = vmatpush2.bf16.msra.mxu0 0
      %399 = vmatprep.subr.bf16.mxu0 0
      %400 = vmatpush2.bf16.msra.mxu0 0
      %401 = vmatprep.subr.bf16.mxu0 0
      %402 = vmatpush2.bf16.msra.mxu0 0
      %403 = vmatprep.subr.bf16.mxu0 0
      %404 = vmatpush2.bf16.msra.mxu0 0
      %405 = vmatprep.subr.bf16.mxu0 0
      %406 = vmatpush2.bf16.msra.mxu0 0
      %407 = vmatprep.mubr.bf16.mxu0 0
      %408 = vmatmul.mubr.bf16.gmra.mxu0 %v373
      %v409 = vpop.f32.mrf.mxu0
      %v410 = vadd.f32 %v357, %v409
      %v411 = vpop.f32.mrf.mxu0
      %v412 = vpop.f32.mrf.mxu0
      %v413 = vpop.f32.mrf.mxu0
      %414 = vdwg.mxu0
      %v415 = vmax.f32 %v410, 0.0
      %v416 = vld [vmem:[#allocation2] sm:$0xff]
      %v417 = vpack.c.bf16 %v415, %v415
      %v418 = vld [vmem:[%s333] sm:$0xf]
      %v419 = vld [vmem:[%s333 + $0x4] sm:$0xf]
      %v420 = vld [vmem:[%s333 + $0x8] sm:$0xf]
      %v421 = vld [vmem:[%s333 + $0xc] sm:$0xf]
      %v422 = vld [vmem:[%s333 + $0x10] sm:$0xf]
      %v423 = vld [vmem:[%s333 + $0x14] sm:$0xf]
      %v424 = vld [vmem:[%s333 + $0x18] sm:$0xf]
      %v425 = vld [vmem:[%s333 + $0x1c] sm:$0xf]
      %v434 = vunpack.c.l.b16 %v418
      %v435 = vunpack.c.l.b16 %v419
      %v436 = vunpack.c.l.b16 %v420
      %v437 = vunpack.c.l.b16 %v421
      %v438 = vunpack.c.l.b16 %v422
      %v439 = vunpack.c.l.b16 %v423
      %v440 = vunpack.c.l.b16 %v424
      %v441 = vunpack.c.l.b16 %v425
      %v442 = vpack.c.b16 %v435, %v434
      %v443 = vpack.c.b16 %v437, %v436
      %v444 = vpack.c.b16 %v439, %v438
      %v445 = vpack.c.b16 %v441, %v440
      %vm450 = vcmask 523264
      %v452 = vsel %vm450, %v417, 0
      %454 = vmatprep.subr.bf16.mxu0 0
      %455 = vmatpush1.bf16.msra.mxu0 0
      %456 = vmatprep.subr.bf16.mxu0 0
      %457 = vmatpush1.bf16.msra.mxu0 0
      %458 = vmatprep.subr.bf16.mxu0 0
      %459 = vmatpush1.bf16.msra.mxu0 0
      %460 = vmatprep.subr.bf16.mxu0 0
      %461 = vmatpush1.bf16.msra.mxu0 0
      %462 = vmatprep.subr.bf16.mxu0 0
      %463 = vmatpush1.bf16.msra.mxu0 %v445
      %464 = vmatprep.subr.bf16.mxu0 0
      %465 = vmatpush1.bf16.msra.mxu0 %v444
      %466 = vmatprep.subr.bf16.mxu0 0
      %467 = vmatpush1.bf16.msra.mxu0 %v443
      %468 = vmatprep.subr.bf16.mxu0 0
      %469 = vmatpush1.bf16.msra.mxu0 %v442
      %470 = vmatprep.subr.bf16.mxu0 0
      %471 = vmatpush2.bf16.msra.mxu0 0
      %472 = vmatprep.subr.bf16.mxu0 0
      %473 = vmatpush2.bf16.msra.mxu0 0
      %474 = vmatprep.subr.bf16.mxu0 0
      %475 = vmatpush2.bf16.msra.mxu0 0
      %476 = vmatprep.subr.bf16.mxu0 0
      %477 = vmatpush2.bf16.msra.mxu0 0
      %478 = vmatprep.subr.bf16.mxu0 0
      %479 = vmatpush2.bf16.msra.mxu0 0
      %480 = vmatprep.subr.bf16.mxu0 0
      %481 = vmatpush2.bf16.msra.mxu0 0
      %482 = vmatprep.subr.bf16.mxu0 0
      %483 = vmatpush2.bf16.msra.mxu0 0
      %484 = vmatprep.subr.bf16.mxu0 0
      %485 = vmatpush2.bf16.msra.mxu0 0
      %486 = vmatprep.mubr.bf16.mxu0 0
      %487 = vmatmul.mubr.bf16.gmra.mxu0 %v452
      %v488 = vpop.f32.mrf.mxu0
      %v489 = vadd.f32 0.0, %v488
      %v490 = vpop.f32.mrf.mxu0
      %v491 = vpop.f32.mrf.mxu0
      %v492 = vpop.f32.mrf.mxu0
      %493 = vdwg.mxu0
      %v494 = vadd.f32 %v416, %v489
      %495 = vst.msk [vmem:[#allocation2] sm:$0xff] %vm371, %v494
      // Predicated region
      $region53: #{transformer_decoder_forward.9} parent=47 // pred_check
        %p496 = pneg %p340
      $region54: #{transformer_decoder_forward.9} parent=47 // pred_check_branch
        %498 = sbr.rel (%p496) target = $region56
      $region55: #{transformer_decoder_forward.9} parent=47 // pred_region
        %v499 = vld [vmem:[#allocation2] sm:$0xff]
        %v500 = vld [vmem:[%s4] sm:$0x1]
        %v502 = vlaneseq
        %v503 = vshrl.u32 %v502, 7
        %v504 = vsub.s32 0, %v503
        %v505 = vrot.slane %v500, %v504
        %v507 = vadd.f32 %v499, %v505
        %v508 = vld [vmem:[%s321] sm:$0xff]
        %v509 = vadd.f32 %v508, %v507
        %v510 = vld [vmem:[%s5] sm:$0x1]
        %v511 = vld [vmem:[%s6] sm:$0x1]
        %v512 = vsel %vm371, %v509, 0.0
        %513 = vadd.xlane.f32.xlu0 %v512
        %v514 = vpop.xlane.xlu0 %513
        %v515 = vrcp.pop 32.0
        %v516 = vmul.f32 %v514, %v515
        %v517 = vsub.f32 %v509, %v516
        %v518 = vmul.f32 %v517, %v517
        %v519 = vsel %vm371, %v518, 0.0
        %520 = vadd.xlane.f32.xlu0 %v519
        %v521 = vpop.xlane.xlu0 %520
        %v522 = vmul.f32 %v521, %v515
        %v523 = vadd.f32 %v522, 1e-05
        %v524 = vrsqrt.pop %v523
        %v525 = vmul.f32 %v517, %v524
        %v527 = vlaneseq
        %v528 = vshrl.u32 %v527, 7
        %v529 = vsub.s32 0, %v528
        %v530 = vrot.slane %v510, %v529
        %v532 = vmul.f32 %v525, %v530
        %v534 = vlaneseq
        %v535 = vshrl.u32 %v534, 7
        %v536 = vsub.s32 0, %v535
        %v537 = vrot.slane %v511, %v536
        %v539 = vadd.f32 %v532, %v537
        %540 = vst.msk [vmem:[%s338] sm:$0xff] %vm371, %v539
      $region56: #{transformer_decoder_forward.9} parent=47 // pred_fallthru
        _
      %p541 = scmp.lt.s32.totalorder %s22, 1
      %s542 = scalar_select %p541, %s22, 1
      %s543 = smul.addr %s542, 8
      %s544 = scalar_lea.vmem %s7, %s543
      // Predicated region
      $region57: #{transformer_decoder_forward.9} parent=47 // pred_check
        %p545 = pneg %p215
      $region58: #{transformer_decoder_forward.9} parent=47 // pred_check_branch
        %547 = sbr.rel (%p545) target = $region60
      $region59: #{transformer_decoder_forward.9} parent=47 // pred_region
        _
      $region60: #{transformer_decoder_forward.9} parent=47 // pred_fallthru
        _
    $region48: #{transformer_decoder_forward.9} parent=5 // pred_fallthru
      _
    %p548 = scmp.le.s32.totalorder 2, %s13
    // Predicated region
    $region61: #{transformer_decoder_forward.9} parent=5 // pred_check
      %p549 = pneg %p548
    $region62: #{transformer_decoder_forward.9} parent=5 // pred_check_branch
      %551 = sbr.rel (%p549) target = $region64
    $region63: #{transformer_decoder_forward.9} parent=5 // pred_region
      %s552 = ssub.s32 %s13, 2
      // Predicated region
      $region65: #{transformer_decoder_forward.9} parent=63 // pred_check
        %p553 = pneg %p221
      $region66: #{transformer_decoder_forward.9} parent=63 // pred_check_branch
        %555 = sbr.rel (%p553) target = $region68
      $region67: #{transformer_decoder_forward.9} parent=63 // pred_region
        %p556 = scmp.lt.s32.totalorder %s24, 1
        %s557 = scalar_select %p556, %s24, 1
        %s558 = smul.addr %s557, 8
        %s559 = scalar_lea.vmem %s7, %s558
      $region68: #{transformer_decoder_forward.9} parent=63 // pred_fallthru
        _
    $region64: #{transformer_decoder_forward.9} parent=5 // pred_fallthru
      _
  $region6: #{transformer_decoder_forward.9} parent=0 // loop_footer
    %s17 = sadd.s32 1, %s13
  $region7: #{transformer_decoder_forward.9} parent=0 // loop_footer_branch
    %12 = sbr.rel target = $region3
  $region8: #{transformer_decoder_forward.9} parent=0 // loop_exit
    _

// kernel: transformer_decoder_forward.13
$region0: #{transformer_decoder_forward.13}
  #allocation0 [shape = 'u32[]', space=smem, size = 0x4, offset = 0x4, fixed_abs, tag = 'smem constant byte address 0x4 - core index']
  #allocation1 [shape = 'u32[144,128]{1,0:T(1,128)}', space=vmem, size = 0x12000, scoped, tag = 'internal scratch']
  %s0 = inlined_call_operand.vmem [shape: f32[16,32], index: 0, kind: input, shape index: {}]
  %s1 = inlined_call_operand.vmem [shape: bf16[32,128], index: 1, kind: input, shape index: {}]
  %s2 = inlined_call_operand.vmem [shape: f32[1,128], index: 2, kind: input, shape index: {}]
  %s3 = inlined_call_operand.vmem [shape: f32[16,128], index: 3, kind: output, shape index: {}]
  %s4 = sld [smem:[#allocation0]]
  $region45: #{transformer_decoder_forward.13} parent=0
    _
  %s6 = ssub.s32 1, %s4
  %s7 = scalar_select 0, %s6, %s4
  loop: start=0, step=1, limit=4
  $region2: #{transformer_decoder_forward.13} parent=0 // loop_pre_header
    _
  $region3: #{transformer_decoder_forward.13} parent=0 // loop_header
    %s9 = sphi 0, %s13
    %p10 = scmp.ge.s32.totalorder %s9, 4
    %s16 = sphi 0, %s28
    %s17 = sphi 0, %s24
    %s18 = sphi 0, %s16
    %s19 = sphi 0, %s17
    %s20 = sphi 0, %s18
    %s21 = sphi 0, %s19
    %s31 = sphi 0, %s33
    %s34 = sphi 0, %s31
    %s35 = sphi 0, %s34
    %s51 = sphi 0, %s35
    %s57 = sphi 0, %s59
    %s60 = sphi 0, %s57
    %s61 = sphi 0, %s60
    %s77 = sphi 0, %s61
    %s83 = sphi 0, %s85
    %s86 = sphi 0, %s83
    %s87 = sphi 0, %s86
    %s103 = sphi 0, %s87
    %s111 = sphi 0, %s113
    %s114 = sphi 0, %s111
    %s115 = sphi 0, %s114
    %s131 = sphi 0, %s115
  $region4: #{transformer_decoder_forward.13} parent=0 // loop_header_branch
    %12 = sbr.rel (%p10) target = $region8
  $region5: #{transformer_decoder_forward.13} parent=0 // loop_body
    %s14 = ssub.s32 %s9, 1
    %s15 = ssub.s32 %s9, 2
    %s22 = sadd.s32 1, %s17
    %p23 = scmp.ge.s32.totalorder %s22, 1
    %s24 = scalar_select %p23, 0, %s22
    %s25 = sadd.s32 1, %s16
    %s26 = scalar_select %p23, %s25, %s16
    %p27 = scmp.ge.s32.totalorder %s26, 2
    %s28 = scalar_select %p27, 0, %s26
    %s29 = ssub.s32 %s16, %s28
    %p30 = scmp.eq.s32.totalorder %s29, 0
    %s32 = sadd.s32 %s31, 1
    %s33 = scalar_select %p30, %s31, %s32
    %p36 = pneg %p30
    %p37 = scmp.eq.s32.totalorder %s9, 1
    %p38 = por %p36, %p37
    %p39 = scmp.ne.s32.totalorder %s31, %s34
    %p40 = scmp.eq.s32.totalorder %s9, 0
    %p41 = por %p39, %p40
    %p42 = scmp.ne.s32.totalorder %s31, %s34
    %p43 = scmp.eq.s32.totalorder %s14, 1
    %p44 = por %p42, %p43
    %p45 = scmp.ne.s32.totalorder %s34, %s35
    %p46 = scmp.eq.s32.totalorder %s14, 0
    %p47 = por %p45, %p46
    %p48 = scmp.ne.s32.totalorder %s34, %s35
    %p49 = scmp.eq.s32.totalorder %s15, 1
    %p50 = por %p48, %p49
    %p52 = scmp.ne.s32.totalorder %s35, %s51
    %p53 = scmp.eq.s32.totalorder %s15, 0
    %p54 = por %p52, %p53
    %s55 = ssub.s32 %s17, %s24
    %p56 = scmp.eq.s32.totalorder %s55, 0
    %s58 = sadd.s32 %s57, 1
    %s59 = scalar_select %p56, %s57, %s58
    %p62 = pneg %p56
    %p63 = scmp.eq.s32.totalorder %s9, 1
    %p64 = por %p62, %p63
    %p65 = scmp.ne.s32.totalorder %s57, %s60
    %p66 = scmp.eq.s32.totalorder %s9, 0
    %p67 = por %p65, %p66
    %p68 = scmp.ne.s32.totalorder %s57, %s60
    %p69 = scmp.eq.s32.totalorder %s14, 1
    %p70 = por %p68, %p69
    %p71 = scmp.ne.s32.totalorder %s60, %s61
    %p72 = scmp.eq.s32.totalorder %s14, 0
    %p73 = por %p71, %p72
    %p74 = scmp.ne.s32.totalorder %s60, %s61
    %p75 = scmp.eq.s32.totalorder %s15, 1
    %p76 = por %p74, %p75
    %p78 = scmp.ne.s32.totalorder %s61, %s77
    %p79 = scmp.eq.s32.totalorder %s15, 0
    %p80 = por %p78, %p79
    %s81 = ssub.s32 %s17, %s24
    %p82 = scmp.eq.s32.totalorder %s81, 0
    %s84 = sadd.s32 %s83, 1
    %s85 = scalar_select %p82, %s83, %s84
    %p88 = pneg %p82
    %p89 = scmp.eq.s32.totalorder %s9, 1
    %p90 = por %p88, %p89
    %p91 = scmp.ne.s32.totalorder %s83, %s86
    %p92 = scmp.eq.s32.totalorder %s9, 0
    %p93 = por %p91, %p92
    %p94 = scmp.ne.s32.totalorder %s83, %s86
    %p95 = scmp.eq.s32.totalorder %s14, 1
    %p96 = por %p94, %p95
    %p97 = scmp.ne.s32.totalorder %s86, %s87
    %p98 = scmp.eq.s32.totalorder %s14, 0
    %p99 = por %p97, %p98
    %p100 = scmp.ne.s32.totalorder %s86, %s87
    %p101 = scmp.eq.s32.totalorder %s15, 1
    %p102 = por %p100, %p101
    %p104 = scmp.ne.s32.totalorder %s87, %s103
    %p105 = scmp.eq.s32.totalorder %s15, 0
    %p106 = por %p104, %p105
    %s107 = ssub.s32 %s16, %s28
    %s108 = ssub.s32 %s17, %s24
    %s109 = sor.u32 %s107, %s108
    %p110 = scmp.eq.s32.totalorder %s109, 0
    %s112 = sadd.s32 %s111, 1
    %s113 = scalar_select %p110, %s111, %s112
    %p116 = pneg %p110
    %p117 = scmp.eq.s32.totalorder %s9, 1
    %p118 = por %p116, %p117
    %p119 = scmp.ne.s32.totalorder %s111, %s114
    %p120 = scmp.eq.s32.totalorder %s9, 0
    %p121 = por %p119, %p120
    %p122 = scmp.ne.s32.totalorder %s111, %s114
    %p123 = scmp.eq.s32.totalorder %s14, 1
    %p124 = por %p122, %p123
    %p125 = scmp.ne.s32.totalorder %s114, %s115
    %p126 = scmp.eq.s32.totalorder %s14, 0
    %p127 = por %p125, %p126
    %p128 = scmp.ne.s32.totalorder %s114, %s115
    %p129 = scmp.eq.s32.totalorder %s15, 1
    %p130 = por %p128, %p129
    %p132 = scmp.ne.s32.totalorder %s115, %s131
    %p133 = scmp.eq.s32.totalorder %s15, 0
    %p134 = por %p132, %p133
    %p135 = scmp.le.s32.totalorder 1, %s9
    %p136 = scmp.lt.s32.totalorder %s9, 3
    %p137 = pnand %p135, %p136
    %p138 = pneg %p137
    // Predicated region
    $region9: #{transformer_decoder_forward.13} parent=5 // pred_check
      _
    $region10: #{transformer_decoder_forward.13} parent=5 // pred_check_branch
      %140 = sbr.rel (%p137) target = $region12
    $region11: #{transformer_decoder_forward.13} parent=5 // pred_region
      %s141 = ssub.s32 %s9, 1
      // Predicated region
      $region13: #{transformer_decoder_forward.13} parent=11 // pred_check
        %p142 = pneg %p73
      $region14: #{transformer_decoder_forward.13} parent=11 // pred_check_branch
        %144 = sbr.rel (%p142) target = $region16
      $region15: #{transformer_decoder_forward.13} parent=11 // pred_region
        %p145 = scmp.lt.s32.totalorder %s19, 0
        %s146 = scalar_select %p145, %s19, 0
        %s147 = smul.addr %s146, 4
        %s148 = scalar_lea.vmem %s1, %s147
      $region16: #{transformer_decoder_forward.13} parent=11 // pred_fallthru
        _
      // Predicated region
      $region17: #{transformer_decoder_forward.13} parent=11 // pred_check
        %p149 = pneg %p99
      $region18: #{transformer_decoder_forward.13} parent=11 // pred_check_branch
        %151 = sbr.rel (%p149) target = $region20
      $region19: #{transformer_decoder_forward.13} parent=11 // pred_region
        %p152 = scmp.lt.s32.totalorder %s19, 0
        %s153 = scalar_select %p152, %s19, 0
        %s154 = scalar_lea.vmem %s2, %s153
      $region20: #{transformer_decoder_forward.13} parent=11 // pred_fallthru
        _
    $region12: #{transformer_decoder_forward.13} parent=5 // pred_fallthru
      _
    %p155 = scmp.lt.s32.totalorder %s9, 2
    // Predicated region
    $region21: #{transformer_decoder_forward.13} parent=5 // pred_check
      %p156 = pneg %p155
    $region22: #{transformer_decoder_forward.13} parent=5 // pred_check_branch
      %158 = sbr.rel (%p156) target = $region24
    $region23: #{transformer_decoder_forward.13} parent=5 // pred_region
      // Predicated region
      $region25: #{transformer_decoder_forward.13} parent=23 // pred_check
        %p159 = pneg %p41
      $region26: #{transformer_decoder_forward.13} parent=23 // pred_check_branch
        %161 = sbr.rel (%p159) target = $region28
      $region27: #{transformer_decoder_forward.13} parent=23 // pred_region
        %p162 = scmp.lt.s32.totalorder %s16, 1
        %s163 = scalar_select %p162, %s16, 1
        %s164 = smul.addr %s163, 8
        %s165 = scalar_lea.vmem %s0, %s164
      $region28: #{transformer_decoder_forward.13} parent=23 // pred_fallthru
        _
    $region24: #{transformer_decoder_forward.13} parent=5 // pred_fallthru
      _
    %p166 = scmp.le.s32.totalorder 1, %s9
    %p167 = scmp.lt.s32.totalorder %s9, 3
    %p168 = pnand %p166, %p167
    %p169 = pneg %p168
    // Predicated region
    $region29: #{transformer_decoder_forward.13} parent=5 // pred_check
      _
    $region30: #{transformer_decoder_forward.13} parent=5 // pred_check_branch
      %171 = sbr.rel (%p168) target = $region32
    $region31: #{transformer_decoder_forward.13} parent=5 // pred_region
      %s172 = ssub.s32 %s9, 1
      %p173 = scmp.lt.s32.totalorder %s18, 1
      %s174 = scalar_select %p173, %s18, 1
      %s175 = smul.addr %s174, 8
      %s176 = scalar_lea.vmem %s0, %s175
      %p177 = pneg %p47
      %p178 = pneg %p44
      %p179 = scmp.lt.s32.totalorder %s19, 0
      %s180 = scalar_select %p179, %s19, 0
      %s181 = smul.addr %s180, 4
      %s182 = scalar_lea.vmem %s1, %s181
      %p183 = pneg %p73
      %p184 = pneg %p70
      %p185 = scmp.lt.s32.totalorder %s19, 0
      %s186 = scalar_select %p185, %s19, 0
      %s187 = scalar_lea.vmem %s2, %s186
      %p188 = pneg %p99
      %p189 = pneg %p96
      %p190 = pneg %p127
      %p191 = pneg %p124
      %p192 = scmp.lt.s32.totalorder %s18, 1
      %s193 = scalar_select %p192, %s18, 1
      %p194 = scmp.lt.s32.totalorder %s19, 0
      %s195 = scalar_select %p194, %s19, 0
      %s196 = sadd.s32 %s195, %s193
      %s197 = smul.addr %s196, 8
      %s198 = scalar_lea.vmem %s3, %s197
      %p199 = scmp.lt.s32.totalorder %s18, 1
      %s200 = scalar_select %p199, %s18, 1
      %s201 = smul.addr %s200, 8
      %s202 = scalar_lea.vmem %s0, %s201
      %p203 = scmp.lt.s32.totalorder %s19, 0
      %s204 = scalar_select %p203, %s19, 0
      %s205 = smul.addr %s204, 4
      %s206 = scalar_lea.vmem %s1, %s205
      %p207 = scmp.lt.s32.totalorder %s19, 0
      %s208 = scalar_select %p207, %s19, 0
      %s209 = scalar_lea.vmem %s2, %s208
      %p210 = scmp.lt.s32.totalorder %s18, 1
      %s211 = scalar_select %p210, %s18, 1
      %p212 = scmp.lt.s32.totalorder %s19, 0
      %s213 = scalar_select %p212, %s19, 0
      %s214 = sadd.s32 %s213, %s211
      %s215 = smul.addr %s214, 8
      %s216 = scalar_lea.vmem %s3, %s215
      %v218 = vld [vmem:[%s202] sm:$0xff]
      %v219 = vpack.c.bf16 %v218, %v218
      %v220 = vld [vmem:[%s206] sm:$0xf]
      %v221 = vld [vmem:[%s206 + $0x4] sm:$0xf]
      %v222 = vld [vmem:[%s206 + $0x8] sm:$0xf]
      %v223 = vld [vmem:[%s206 + $0xc] sm:$0xf]
      %v224 = vld [vmem:[%s209] sm:$0x1]
      %v226 = vlaneseq
      %v227 = vshrl.u32 %v226, 7
      %v228 = vsub.s32 0, %v227
      %v229 = vrot.slane %v224, %v228
      %v235 = vunpack.c.l.b16 %v220
      %v236 = vunpack.c.l.b16 %v221
      %v237 = vunpack.c.l.b16 %v222
      %v238 = vunpack.c.l.b16 %v223
      %v239 = vpack.c.b16 %v236, %v235
      %v240 = vpack.c.b16 %v238, %v237
      %vm243 = vcmask 261120
      %v245 = vsel %vm243, %v219, 0
      %247 = vmatprep.subr.bf16.mxu0 0
      %248 = vmatpush1.bf16.msra.mxu0 0
      %249 = vmatprep.subr.bf16.mxu0 0
      %250 = vmatpush1.bf16.msra.mxu0 0
      %251 = vmatprep.subr.bf16.mxu0 0
      %252 = vmatpush1.bf16.msra.mxu0 0
      %253 = vmatprep.subr.bf16.mxu0 0
      %254 = vmatpush1.bf16.msra.mxu0 0
      %255 = vmatprep.subr.bf16.mxu0 0
      %256 = vmatpush1.bf16.msra.mxu0 0
      %257 = vmatprep.subr.bf16.mxu0 0
      %258 = vmatpush1.bf16.msra.mxu0 0
      %259 = vmatprep.subr.bf16.mxu0 0
      %260 = vmatpush1.bf16.msra.mxu0 %v240
      %261 = vmatprep.subr.bf16.mxu0 0
      %262 = vmatpush1.bf16.msra.mxu0 %v239
      %263 = vmatprep.subr.bf16.mxu0 0
      %264 = vmatpush2.bf16.msra.mxu0 0
      %265 = vmatprep.subr.bf16.mxu0 0
      %266 = vmatpush2.bf16.msra.mxu0 0
      %267 = vmatprep.subr.bf16.mxu0 0
      %268 = vmatpush2.bf16.msra.mxu0 0
      %269 = vmatprep.subr.bf16.mxu0 0
      %270 = vmatpush2.bf16.msra.mxu0 0
      %271 = vmatprep.subr.bf16.mxu0 0
      %272 = vmatpush2.bf16.msra.mxu0 0
      %273 = vmatprep.subr.bf16.mxu0 0
      %274 = vmatpush2.bf16.msra.mxu0 0
      %275 = vmatprep.subr.bf16.mxu0 0
      %276 = vmatpush2.bf16.msra.mxu0 0
      %277 = vmatprep.subr.bf16.mxu0 0
      %278 = vmatpush2.bf16.msra.mxu0 0
      %279 = vmatprep.mubr.bf16.mxu0 0
      %280 = vmatmul.mubr.bf16.gmra.mxu0 %v245
      %v281 = vpop.f32.mrf.mxu0
      %v282 = vadd.f32 %v229, %v281
      %v283 = vpop.f32.mrf.mxu0
      %v284 = vpop.f32.mrf.mxu0
      %v285 = vpop.f32.mrf.mxu0
      %286 = vdwg.mxu0
      %287 = vst [vmem:[%s216] sm:$0xff] %v282
      %p288 = scmp.lt.s32.totalorder %s18, 1
      %s289 = scalar_select %p288, %s18, 1
      %p290 = scmp.lt.s32.totalorder %s19, 0
      %s291 = scalar_select %p290, %s19, 0
      %s292 = sadd.s32 %s291, %s289
      %s293 = smul.addr %s292, 8
      %s294 = scalar_lea.vmem %s3, %s293
      // Predicated region
      $region33: #{transformer_decoder_forward.13} parent=31 // pred_check
        %p295 = pneg %p124
      $region34: #{transformer_decoder_forward.13} parent=31 // pred_check_branch
        %297 = sbr.rel (%p295) target = $region36
      $region35: #{transformer_decoder_forward.13} parent=31 // pred_region
        _
      $region36: #{transformer_decoder_forward.13} parent=31 // pred_fallthru
        _
    $region32: #{transformer_decoder_forward.13} parent=5 // pred_fallthru
      _
    %p298 = scmp.le.s32.totalorder 2, %s9
    // Predicated region
    $region37: #{transformer_decoder_forward.13} parent=5 // pred_check
      %p299 = pneg %p298
    $region38: #{transformer_decoder_forward.13} parent=5 // pred_check_branch
      %301 = sbr.rel (%p299) target = $region40
    $region39: #{transformer_decoder_forward.13} parent=5 // pred_region
      %s302 = ssub.s32 %s9, 2
      // Predicated region
      $region41: #{transformer_decoder_forward.13} parent=39 // pred_check
        %p303 = pneg %p130
      $region42: #{transformer_decoder_forward.13} parent=39 // pred_check_branch
        %305 = sbr.rel (%p303) target = $region44
      $region43: #{transformer_decoder_forward.13} parent=39 // pred_region
        %p306 = scmp.lt.s32.totalorder %s20, 1
        %s307 = scalar_select %p306, %s20, 1
        %p308 = scmp.lt.s32.totalorder %s21, 0
        %s309 = scalar_select %p308, %s21, 0
        %s310 = sadd.s32 %s309, %s307
        %s311 = smul.addr %s310, 8
        %s312 = scalar_lea.vmem %s3, %s311
      $region44: #{transformer_decoder_forward.13} parent=39 // pred_fallthru
        _
    $region40: #{transformer_decoder_forward.13} parent=5 // pred_fallthru
      _
  $region6: #{transformer_decoder_forward.13} parent=0 // loop_footer
    %s13 = sadd.s32 1, %s9
  $region7: #{transformer_decoder_forward.13} parent=0 // loop_footer_branch
    %8 = sbr.rel target = $region3
  $region8: #{transformer_decoder_forward.13} parent=0 // loop_exit
    _

// kernel: transformer_decoder_forward.8
$region0: #{transformer_decoder_forward.8}
  #allocation0 [shape = 'u32[]', space=smem, size = 0x4, offset = 0x4, fixed_abs, tag = 'smem constant byte address 0x4 - core index']
  #allocation1 [shape = 'u32[144,128]{1,0:T(1,128)}', space=vmem, size = 0x12000, scoped, tag = 'internal scratch']
  #allocation2 [shape = 'bf16[8,32]{1,0:T(8,128)(2,1)}', space=vmem, size = 0x800, scoped, tag = 'scratch operand']
  #allocation3 [shape = 'f32[8,4]{1,0:T(8,128)}', space=vmem, size = 0x1000, scoped, tag = 'scratch operand']
  #allocation4 [shape = 'f32[8,4]{1,0:T(8,128)}', space=vmem, size = 0x1000, scoped, tag = 'scratch operand']
  #allocation5 [shape = 'f32[8,32]{1,0:T(8,128)}', space=vmem, size = 0x1000, scoped, tag = 'scratch operand']
  %s0 = inlined_call_operand.vmem [shape: f32[2,8,32], index: 0, kind: input, shape index: {}]
  %s1 = inlined_call_operand.vmem [shape: f32[2,8,32], index: 1, kind: input, shape index: {}]
  %s2 = inlined_call_operand.vmem [shape: f32[2,1,8], index: 2, kind: input, shape index: {}]
  %s3 = inlined_call_operand.vmem [shape: bf16[32,32], index: 3, kind: input, shape index: {}]
  %s4 = inlined_call_operand.vmem [shape: f32[1,32], index: 4, kind: input, shape index: {}]
  %s5 = inlined_call_operand.vmem [shape: bf16[32,64], index: 5, kind: input, shape index: {}]
  %s6 = inlined_call_operand.vmem [shape: f32[1,64], index: 6, kind: input, shape index: {}]
  %s7 = inlined_call_operand.vmem [shape: bf16[32,32], index: 7, kind: input, shape index: {}]
  %s8 = inlined_call_operand.vmem [shape: f32[1,32], index: 8, kind: input, shape index: {}]
  %s9 = inlined_call_operand.vmem [shape: f32[1,32], index: 9, kind: input, shape index: {}]
  %s10 = inlined_call_operand.vmem [shape: f32[1,32], index: 10, kind: input, shape index: {}]
  %s11 = inlined_call_operand.vmem [shape: f32[2,8,32], index: 11, kind: output, shape index: {}]
  %s12 = sld [smem:[#allocation0]]
  $region85: #{transformer_decoder_forward.8} parent=0
    _
  %s14 = ssub.s32 1, %s12
  %s15 = scalar_select 0, %s14, %s12
  loop: start=0, step=1, limit=4
  $region2: #{transformer_decoder_forward.8} parent=0 // loop_pre_header
    _
  $region3: #{transformer_decoder_forward.8} parent=0 // loop_header
    %s17 = sphi 0, %s21
    %p18 = scmp.ge.s32.totalorder %s17, 4
    %s24 = sphi 0, %s43
    %s25 = sphi 0, %s39
    %s26 = sphi 0, %s35
    %s27 = sphi 0, %s24
    %s28 = sphi 0, %s25
    %s29 = sphi 0, %s26
    %s30 = sphi 0, %s27
    %s31 = sphi 0, %s28
    %s32 = sphi 0, %s29
    %s48 = sphi 0, %s50
    %s51 = sphi 0, %s48
    %s52 = sphi 0, %s51
    %s68 = sphi 0, %s52
    %s76 = sphi 0, %s78
    %s79 = sphi 0, %s76
    %s80 = sphi 0, %s79
    %s96 = sphi 0, %s80
    %s104 = sphi 0, %s106
    %s107 = sphi 0, %s104
    %s108 = sphi 0, %s107
    %s124 = sphi 0, %s108
    %s128 = sphi 0, %s128
    %s130 = sphi 0, %s128
    %s131 = sphi 0, %s130
    %s145 = sphi 0, %s131
    %s149 = sphi 0, %s149
    %s151 = sphi 0, %s149
    %s152 = sphi 0, %s151
    %s166 = sphi 0, %s152
    %s170 = sphi 0, %s170
    %s172 = sphi 0, %s170
    %s173 = sphi 0, %s172
    %s187 = sphi 0, %s173
    %s191 = sphi 0, %s191
    %s193 = sphi 0, %s191
    %s194 = sphi 0, %s193
    %s208 = sphi 0, %s194
    %s212 = sphi 0, %s212
    %s214 = sphi 0, %s212
    %s215 = sphi 0, %s214
    %s229 = sphi 0, %s215
    %s233 = sphi 0, %s233
    %s235 = sphi 0, %s233
    %s236 = sphi 0, %s235
    %s250 = sphi 0, %s236
    %s254 = sphi 0, %s254
    %s256 = sphi 0, %s254
    %s257 = sphi 0, %s256
    %s271 = sphi 0, %s257
    %s275 = sphi 0, %s275
    %s277 = sphi 0, %s275
    %s278 = sphi 0, %s277
    %s292 = sphi 0, %s278
    %s300 = sphi 0, %s302
    %s303 = sphi 0, %s300
    %s304 = sphi 0, %s303
    %s320 = sphi 0, %s304
  $region4: #{transformer_decoder_forward.8} parent=0 // loop_header_branch
    %20 = sbr.rel (%p18) target = $region8
  $region5: #{transformer_decoder_forward.8} parent=0 // loop_body
    %s22 = ssub.s32 %s17, 1
    %s23 = ssub.s32 %s17, 2
    %s33 = sadd.s32 1, %s26
    %p34 = scmp.ge.s32.totalorder %s33, 1
    %s35 = scalar_select %p34, 0, %s33
    %s36 = sadd.s32 1, %s25
    %s37 = scalar_select %p34, %s36, %s25
    %p38 = scmp.ge.s32.totalorder %s37, 1
    %s39 = scalar_select %p38, 0, %s37
    %s40 = sadd.s32 1, %s24
    %s41 = scalar_select %p38, %s40, %s24
    %p42 = scmp.ge.s32.totalorder %s41, 2
    %s43 = scalar_select %p42, 0, %s41
    %s44 = ssub.s32 %s24, %s43
    %s45 = ssub.s32 %s25, %s39
    %s46 = sor.u32 %s44, %s45
    %p47 = scmp.eq.s32.totalorder %s46, 0
    %s49 = sadd.s32 %s48, 1
    %s50 = scalar_select %p47, %s48, %s49
    %p53 = pneg %p47
    %p54 = scmp.eq.s32.totalorder %s17, 1
    %p55 = por %p53, %p54
    %p56 = scmp.ne.s32.totalorder %s48, %s51
    %p57 = scmp.eq.s32.totalorder %s17, 0
    %p58 = por %p56, %p57
    %p59 = scmp.ne.s32.totalorder %s48, %s51
    %p60 = scmp.eq.s32.totalorder %s22, 1
    %p61 = por %p59, %p60
    %p62 = scmp.ne.s32.totalorder %s51, %s52
    %p63 = scmp.eq.s32.totalorder %s22, 0
    %p64 = por %p62, %p63
    %p65 = scmp.ne.s32.totalorder %s51, %s52
    %p66 = scmp.eq.s32.totalorder %s23, 1
    %p67 = por %p65, %p66
    %p69 = scmp.ne.s32.totalorder %s52, %s68
    %p70 = scmp.eq.s32.totalorder %s23, 0
    %p71 = por %p69, %p70
    %s72 = ssub.s32 %s24, %s43
    %s73 = ssub.s32 %s26, %s35
    %s74 = sor.u32 %s72, %s73
    %p75 = scmp.eq.s32.totalorder %s74, 0
    %s77 = sadd.s32 %s76, 1
    %s78 = scalar_select %p75, %s76, %s77
    %p81 = pneg %p75
    %p82 = scmp.eq.s32.totalorder %s17, 1
    %p83 = por %p81, %p82
    %p84 = scmp.ne.s32.totalorder %s76, %s79
    %p85 = scmp.eq.s32.totalorder %s17, 0
    %p86 = por %p84, %p85
    %p87 = scmp.ne.s32.totalorder %s76, %s79
    %p88 = scmp.eq.s32.totalorder %s22, 1
    %p89 = por %p87, %p88
    %p90 = scmp.ne.s32.totalorder %s79, %s80
    %p91 = scmp.eq.s32.totalorder %s22, 0
    %p92 = por %p90, %p91
    %p93 = scmp.ne.s32.totalorder %s79, %s80
    %p94 = scmp.eq.s32.totalorder %s23, 1
    %p95 = por %p93, %p94
    %p97 = scmp.ne.s32.totalorder %s80, %s96
    %p98 = scmp.eq.s32.totalorder %s23, 0
    %p99 = por %p97, %p98
    %s100 = ssub.s32 %s24, %s43
    %s101 = ssub.s32 %s26, %s35
    %s102 = sor.u32 %s100, %s101
    %p103 = scmp.eq.s32.totalorder %s102, 0
    %s105 = sadd.s32 %s104, 1
    %s106 = scalar_select %p103, %s104, %s105
    %p109 = pneg %p103
    %p110 = scmp.eq.s32.totalorder %s17, 1
    %p111 = por %p109, %p110
    %p112 = scmp.ne.s32.totalorder %s104, %s107
    %p113 = scmp.eq.s32.totalorder %s17, 0
    %p114 = por %p112, %p113
    %p115 = scmp.ne.s32.totalorder %s104, %s107
    %p116 = scmp.eq.s32.totalorder %s22, 1
    %p117 = por %p115, %p116
    %p118 = scmp.ne.s32.totalorder %s107, %s108
    %p119 = scmp.eq.s32.totalorder %s22, 0
    %p120 = por %p118, %p119
    %p121 = scmp.ne.s32.totalorder %s107, %s108
    %p122 = scmp.eq.s32.totalorder %s23, 1
    %p123 = por %p121, %p122
    %p125 = scmp.ne.s32.totalorder %s108, %s124
    %p126 = scmp.eq.s32.totalorder %s23, 0
    %p127 = por %p125, %p126
    %s129 = sadd.s32 %s128, 1
    %p132 = scmp.eq.s32.totalorder %s17, 1
    %p133 = scmp.ne.s32.totalorder %s128, %s130
    %p134 = scmp.eq.s32.totalorder %s17, 0
    %p135 = por %p133, %p134
    %p136 = scmp.ne.s32.totalorder %s128, %s130
    %p137 = scmp.eq.s32.totalorder %s22, 1
    %p138 = por %p136, %p137
    %p139 = scmp.ne.s32.totalorder %s130, %s131
    %p140 = scmp.eq.s32.totalorder %s22, 0
    %p141 = por %p139, %p140
    %p142 = scmp.ne.s32.totalorder %s130, %s131
    %p143 = scmp.eq.s32.totalorder %s23, 1
    %p144 = por %p142, %p143
    %p146 = scmp.ne.s32.totalorder %s131, %s145
    %p147 = scmp.eq.s32.totalorder %s23, 0
    %p148 = por %p146, %p147
    %s150 = sadd.s32 %s149, 1
    %p153 = scmp.eq.s32.totalorder %s17, 1
    %p154 = scmp.ne.s32.totalorder %s149, %s151
    %p155 = scmp.eq.s32.totalorder %s17, 0
    %p156 = por %p154, %p155
    %p157 = scmp.ne.s32.totalorder %s149, %s151
    %p158 = scmp.eq.s32.totalorder %s22, 1
    %p159 = por %p157, %p158
    %p160 = scmp.ne.s32.totalorder %s151, %s152
    %p161 = scmp.eq.s32.totalorder %s22, 0
    %p162 = por %p160, %p161
    %p163 = scmp.ne.s32.totalorder %s151, %s152
    %p164 = scmp.eq.s32.totalorder %s23, 1
    %p165 = por %p163, %p164
    %p167 = scmp.ne.s32.totalorder %s152, %s166
    %p168 = scmp.eq.s32.totalorder %s23, 0
    %p169 = por %p167, %p168
    %s171 = sadd.s32 %s170, 1
    %p174 = scmp.eq.s32.totalorder %s17, 1
    %p175 = scmp.ne.s32.totalorder %s170, %s172
    %p176 = scmp.eq.s32.totalorder %s17, 0
    %p177 = por %p175, %p176
    %p178 = scmp.ne.s32.totalorder %s170, %s172
    %p179 = scmp.eq.s32.totalorder %s22, 1
    %p180 = por %p178, %p179
    %p181 = scmp.ne.s32.totalorder %s172, %s173
    %p182 = scmp.eq.s32.totalorder %s22, 0
    %p183 = por %p181, %p182
    %p184 = scmp.ne.s32.totalorder %s172, %s173
    %p185 = scmp.eq.s32.totalorder %s23, 1
    %p186 = por %p184, %p185
    %p188 = scmp.ne.s32.totalorder %s173, %s187
    %p189 = scmp.eq.s32.totalorder %s23, 0
    %p190 = por %p188, %p189
    %s192 = sadd.s32 %s191, 1
    %p195 = scmp.eq.s32.totalorder %s17, 1
    %p196 = scmp.ne.s32.totalorder %s191, %s193
    %p197 = scmp.eq.s32.totalorder %s17, 0
    %p198 = por %p196, %p197
    %p199 = scmp.ne.s32.totalorder %s191, %s193
    %p200 = scmp.eq.s32.totalorder %s22, 1
    %p201 = por %p199, %p200
    %p202 = scmp.ne.s32.totalorder %s193, %s194
    %p203 = scmp.eq.s32.totalorder %s22, 0
    %p204 = por %p202, %p203
    %p205 = scmp.ne.s32.totalorder %s193, %s194
    %p206 = scmp.eq.s32.totalorder %s23, 1
    %p207 = por %p205, %p206
    %p209 = scmp.ne.s32.totalorder %s194, %s208
    %p210 = scmp.eq.s32.totalorder %s23, 0
    %p211 = por %p209, %p210
    %s213 = sadd.s32 %s212, 1
    %p216 = scmp.eq.s32.totalorder %s17, 1
    %p217 = scmp.ne.s32.totalorder %s212, %s214
    %p218 = scmp.eq.s32.totalorder %s17, 0
    %p219 = por %p217, %p218
    %p220 = scmp.ne.s32.totalorder %s212, %s214
    %p221 = scmp.eq.s32.totalorder %s22, 1
    %p222 = por %p220, %p221
    %p223 = scmp.ne.s32.totalorder %s214, %s215
    %p224 = scmp.eq.s32.totalorder %s22, 0
    %p225 = por %p223, %p224
    %p226 = scmp.ne.s32.totalorder %s214, %s215
    %p227 = scmp.eq.s32.totalorder %s23, 1
    %p228 = por %p226, %p227
    %p230 = scmp.ne.s32.totalorder %s215, %s229
    %p231 = scmp.eq.s32.totalorder %s23, 0
    %p232 = por %p230, %p231
    %s234 = sadd.s32 %s233, 1
    %p237 = scmp.eq.s32.totalorder %s17, 1
    %p238 = scmp.ne.s32.totalorder %s233, %s235
    %p239 = scmp.eq.s32.totalorder %s17, 0
    %p240 = por %p238, %p239
    %p241 = scmp.ne.s32.totalorder %s233, %s235
    %p242 = scmp.eq.s32.totalorder %s22, 1
    %p243 = por %p241, %p242
    %p244 = scmp.ne.s32.totalorder %s235, %s236
    %p245 = scmp.eq.s32.totalorder %s22, 0
    %p246 = por %p244, %p245
    %p247 = scmp.ne.s32.totalorder %s235, %s236
    %p248 = scmp.eq.s32.totalorder %s23, 1
    %p249 = por %p247, %p248
    %p251 = scmp.ne.s32.totalorder %s236, %s250
    %p252 = scmp.eq.s32.totalorder %s23, 0
    %p253 = por %p251, %p252
    %s255 = sadd.s32 %s254, 1
    %p258 = scmp.eq.s32.totalorder %s17, 1
    %p259 = scmp.ne.s32.totalorder %s254, %s256
    %p260 = scmp.eq.s32.totalorder %s17, 0
    %p261 = por %p259, %p260
    %p262 = scmp.ne.s32.totalorder %s254, %s256
    %p263 = scmp.eq.s32.totalorder %s22, 1
    %p264 = por %p262, %p263
    %p265 = scmp.ne.s32.totalorder %s256, %s257
    %p266 = scmp.eq.s32.totalorder %s22, 0
    %p267 = por %p265, %p266
    %p268 = scmp.ne.s32.totalorder %s256, %s257
    %p269 = scmp.eq.s32.totalorder %s23, 1
    %p270 = por %p268, %p269
    %p272 = scmp.ne.s32.totalorder %s257, %s271
    %p273 = scmp.eq.s32.totalorder %s23, 0
    %p274 = por %p272, %p273
    %s276 = sadd.s32 %s275, 1
    %p279 = scmp.eq.s32.totalorder %s17, 1
    %p280 = scmp.ne.s32.totalorder %s275, %s277
    %p281 = scmp.eq.s32.totalorder %s17, 0
    %p282 = por %p280, %p281
    %p283 = scmp.ne.s32.totalorder %s275, %s277
    %p284 = scmp.eq.s32.totalorder %s22, 1
    %p285 = por %p283, %p284
    %p286 = scmp.ne.s32.totalorder %s277, %s278
    %p287 = scmp.eq.s32.totalorder %s22, 0
    %p288 = por %p286, %p287
    %p289 = scmp.ne.s32.totalorder %s277, %s278
    %p290 = scmp.eq.s32.totalorder %s23, 1
    %p291 = por %p289, %p290
    %p293 = scmp.ne.s32.totalorder %s278, %s292
    %p294 = scmp.eq.s32.totalorder %s23, 0
    %p295 = por %p293, %p294
    %s296 = ssub.s32 %s24, %s43
    %s297 = ssub.s32 %s25, %s39
    %s298 = sor.u32 %s296, %s297
    %p299 = scmp.eq.s32.totalorder %s298, 0
    %s301 = sadd.s32 %s300, 1
    %s302 = scalar_select %p299, %s300, %s301
    %p305 = pneg %p299
    %p306 = scmp.eq.s32.totalorder %s17, 1
    %p307 = por %p305, %p306
    %p308 = scmp.ne.s32.totalorder %s300, %s303
    %p309 = scmp.eq.s32.totalorder %s17, 0
    %p310 = por %p308, %p309
    %p311 = scmp.ne.s32.totalorder %s300, %s303
    %p312 = scmp.eq.s32.totalorder %s22, 1
    %p313 = por %p311, %p312
    %p314 = scmp.ne.s32.totalorder %s303, %s304
    %p315 = scmp.eq.s32.totalorder %s22, 0
    %p316 = por %p314, %p315
    %p317 = scmp.ne.s32.totalorder %s303, %s304
    %p318 = scmp.eq.s32.totalorder %s23, 1
    %p319 = por %p317, %p318
    %p321 = scmp.ne.s32.totalorder %s304, %s320
    %p322 = scmp.eq.s32.totalorder %s23, 0
    %p323 = por %p321, %p322
    %p324 = scmp.le.s32.totalorder 1, %s17
    %p325 = scmp.lt.s32.totalorder %s17, 3
    %p326 = pnand %p324, %p325
    %p327 = pneg %p326
    // Predicated region
    $region9: #{transformer_decoder_forward.8} parent=5 // pred_check
      _
    $region10: #{transformer_decoder_forward.8} parent=5 // pred_check_branch
      %329 = sbr.rel (%p326) target = $region12
    $region11: #{transformer_decoder_forward.8} parent=5 // pred_region
      %s330 = ssub.s32 %s17, 1
      // Predicated region
      $region13: #{transformer_decoder_forward.8} parent=11 // pred_check
        %p331 = pneg %p141
      $region14: #{transformer_decoder_forward.8} parent=11 // pred_check_branch
        %333 = sbr.rel (%p331) target = $region16
      $region15: #{transformer_decoder_forward.8} parent=11 // pred_region
        _
      $region16: #{transformer_decoder_forward.8} parent=11 // pred_fallthru
        _
      // Predicated region
      $region17: #{transformer_decoder_forward.8} parent=11 // pred_check
        %p334 = pneg %p162
      $region18: #{transformer_decoder_forward.8} parent=11 // pred_check_branch
        %336 = sbr.rel (%p334) target = $region20
      $region19: #{transformer_decoder_forward.8} parent=11 // pred_region
        _
      $region20: #{transformer_decoder_forward.8} parent=11 // pred_fallthru
        _
      // Predicated region
      $region21: #{transformer_decoder_forward.8} parent=11 // pred_check
        %p337 = pneg %p183
      $region22: #{transformer_decoder_forward.8} parent=11 // pred_check_branch
        %339 = sbr.rel (%p337) target = $region24
      $region23: #{transformer_decoder_forward.8} parent=11 // pred_region
        _
      $region24: #{transformer_decoder_forward.8} parent=11 // pred_fallthru
        _
      // Predicated region
      $region25: #{transformer_decoder_forward.8} parent=11 // pred_check
        %p340 = pneg %p204
      $region26: #{transformer_decoder_forward.8} parent=11 // pred_check_branch
        %342 = sbr.rel (%p340) target = $region28
      $region27: #{transformer_decoder_forward.8} parent=11 // pred_region
        _
      $region28: #{transformer_decoder_forward.8} parent=11 // pred_fallthru
        _
      // Predicated region
      $region29: #{transformer_decoder_forward.8} parent=11 // pred_check
        %p343 = pneg %p225
      $region30: #{transformer_decoder_forward.8} parent=11 // pred_check_branch
        %345 = sbr.rel (%p343) target = $region32
      $region31: #{transformer_decoder_forward.8} parent=11 // pred_region
        _
      $region32: #{transformer_decoder_forward.8} parent=11 // pred_fallthru
        _
      // Predicated region
      $region33: #{transformer_decoder_forward.8} parent=11 // pred_check
        %p346 = pneg %p246
      $region34: #{transformer_decoder_forward.8} parent=11 // pred_check_branch
        %348 = sbr.rel (%p346) target = $region36
      $region35: #{transformer_decoder_forward.8} parent=11 // pred_region
        _
      $region36: #{transformer_decoder_forward.8} parent=11 // pred_fallthru
        _
      // Predicated region
      $region37: #{transformer_decoder_forward.8} parent=11 // pred_check
        %p349 = pneg %p267
      $region38: #{transformer_decoder_forward.8} parent=11 // pred_check_branch
        %351 = sbr.rel (%p349) target = $region40
      $region39: #{transformer_decoder_forward.8} parent=11 // pred_region
        _
      $region40: #{transformer_decoder_forward.8} parent=11 // pred_fallthru
        _
      // Predicated region
      $region41: #{transformer_decoder_forward.8} parent=11 // pred_check
        %p352 = pneg %p288
      $region42: #{transformer_decoder_forward.8} parent=11 // pred_check_branch
        %354 = sbr.rel (%p352) target = $region44
      $region43: #{transformer_decoder_forward.8} parent=11 // pred_region
        _
      $region44: #{transformer_decoder_forward.8} parent=11 // pred_fallthru
        _
    $region12: #{transformer_decoder_forward.8} parent=5 // pred_fallthru
      _
    %p355 = scmp.lt.s32.totalorder %s17, 2
    // Predicated region
    $region45: #{transformer_decoder_forward.8} parent=5 // pred_check
      %p356 = pneg %p355
    $region46: #{transformer_decoder_forward.8} parent=5 // pred_check_branch
      %358 = sbr.rel (%p356) target = $region48
    $region47: #{transformer_decoder_forward.8} parent=5 // pred_region
      // Predicated region
      $region49: #{transformer_decoder_forward.8} parent=47 // pred_check
        %p359 = pneg %p58
      $region50: #{transformer_decoder_forward.8} parent=47 // pred_check_branch
        %361 = sbr.rel (%p359) target = $region52
      $region51: #{transformer_decoder_forward.8} parent=47 // pred_region
        %p362 = scmp.lt.s32.totalorder %s24, 1
        %s363 = scalar_select %p362, %s24, 1
        %p364 = scmp.lt.s32.totalorder %s25, 0
        %s365 = scalar_select %p364, %s25, 0
        %s366 = sadd.s32 %s365, %s363
        %s367 = smul.addr %s366, 8
        %s368 = scalar_lea.vmem %s0, %s367
      $region52: #{transformer_decoder_forward.8} parent=47 // pred_fallthru
        _
      // Predicated region
      $region53: #{transformer_decoder_forward.8} parent=47 // pred_check
        %p369 = pneg %p86
      $region54: #{transformer_decoder_forward.8} parent=47 // pred_check_branch
        %371 = sbr.rel (%p369) target = $region56
      $region55: #{transformer_decoder_forward.8} parent=47 // pred_region
        %p372 = scmp.lt.s32.totalorder %s24, 1
        %s373 = scalar_select %p372, %s24, 1
        %p374 = scmp.lt.s32.totalorder %s26, 0
        %s375 = scalar_select %p374, %s26, 0
        %s376 = sadd.s32 %s375, %s373
        %s377 = smul.addr %s376, 8
        %s378 = scalar_lea.vmem %s1, %s377
      $region56: #{transformer_decoder_forward.8} parent=47 // pred_fallthru
        _
      // Predicated region
      $region57: #{transformer_decoder_forward.8} parent=47 // pred_check
        %p379 = pneg %p114
      $region58: #{transformer_decoder_forward.8} parent=47 // pred_check_branch
        %381 = sbr.rel (%p379) target = $region60
      $region59: #{transformer_decoder_forward.8} parent=47 // pred_region
        %p382 = scmp.lt.s32.totalorder %s24, 1
        %s383 = scalar_select %p382, %s24, 1
        %p384 = scmp.lt.s32.totalorder %s26, 0
        %s385 = scalar_select %p384, %s26, 0
        %s386 = sadd.s32 %s385, %s383
        %s387 = scalar_lea.vmem %s2, %s386
      $region60: #{transformer_decoder_forward.8} parent=47 // pred_fallthru
        _
    $region48: #{transformer_decoder_forward.8} parent=5 // pred_fallthru
      _
    %p388 = scmp.le.s32.totalorder 1, %s17
    %p389 = scmp.lt.s32.totalorder %s17, 3
    %p390 = pnand %p388, %p389
    %p391 = pneg %p390
    // Predicated region
    $region61: #{transformer_decoder_forward.8} parent=5 // pred_check
      _
    $region62: #{transformer_decoder_forward.8} parent=5 // pred_check_branch
      %393 = sbr.rel (%p390) target = $region64
    $region63: #{transformer_decoder_forward.8} parent=5 // pred_region
      %s394 = ssub.s32 %s17, 1
      %p395 = scmp.lt.s32.totalorder %s27, 1
      %s396 = scalar_select %p395, %s27, 1
      %p397 = scmp.lt.s32.totalorder %s28, 0
      %s398 = scalar_select %p397, %s28, 0
      %s399 = sadd.s32 %s398, %s396
      %s400 = smul.addr %s399, 8
      %s401 = scalar_lea.vmem %s0, %s400
      %p402 = pneg %p64
      %p403 = pneg %p61
      %p404 = scmp.lt.s32.totalorder %s27, 1
      %s405 = scalar_select %p404, %s27, 1
      %p406 = scmp.lt.s32.totalorder %s29, 0
      %s407 = scalar_select %p406, %s29, 0
      %s408 = sadd.s32 %s407, %s405
      %s409 = smul.addr %s408, 8
      %s410 = scalar_lea.vmem %s1, %s409
      %p411 = pneg %p92
      %p412 = pneg %p89
      %p413 = scmp.lt.s32.totalorder %s27, 1
      %s414 = scalar_select %p413, %s27, 1
      %p415 = scmp.lt.s32.totalorder %s29, 0
      %s416 = scalar_select %p415, %s29, 0
      %s417 = sadd.s32 %s416, %s414
      %s418 = scalar_lea.vmem %s2, %s417
      %p419 = pneg %p120
      %p420 = pneg %p117
      %p421 = pneg %p141
      %p422 = pneg %p138
      %p423 = pneg %p162
      %p424 = pneg %p159
      %p425 = pneg %p183
      %p426 = pneg %p180
      %p427 = pneg %p204
      %p428 = pneg %p201
      %p429 = pneg %p225
      %p430 = pneg %p222
      %p431 = pneg %p246
      %p432 = pneg %p243
      %p433 = pneg %p267
      %p434 = pneg %p264
      %p435 = pneg %p288
      %p436 = pneg %p285
      %p437 = pneg %p316
      %p438 = pneg %p313
      %p439 = scmp.lt.s32.totalorder %s27, 1
      %s440 = scalar_select %p439, %s27, 1
      %p441 = scmp.lt.s32.totalorder %s28, 0
      %s442 = scalar_select %p441, %s28, 0
      %s443 = sadd.s32 %s442, %s440
      %s444 = smul.addr %s443, 8
      %s445 = scalar_lea.vmem %s11, %s444
      %p446 = scmp.lt.s32.totalorder %s27, 1
      %s447 = scalar_select %p446, %s27, 1
      %p448 = scmp.lt.s32.totalorder %s28, 0
      %s449 = scalar_select %p448, %s28, 0
      %s450 = sadd.s32 %s449, %s447
      %s451 = smul.addr %s450, 8
      %s452 = scalar_lea.vmem %s0, %s451
      %p453 = scmp.lt.s32.totalorder %s27, 1
      %s454 = scalar_select %p453, %s27, 1
      %p455 = scmp.lt.s32.totalorder %s29, 0
      %s456 = scalar_select %p455, %s29, 0
      %s457 = sadd.s32 %s456, %s454
      %s458 = smul.addr %s457, 8
      %s459 = scalar_lea.vmem %s1, %s458
      %p460 = scmp.lt.s32.totalorder %s27, 1
      %s461 = scalar_select %p460, %s27, 1
      %p462 = scmp.lt.s32.totalorder %s29, 0
      %s463 = scalar_select %p462, %s29, 0
      %s464 = sadd.s32 %s463, %s461
      %s465 = scalar_lea.vmem %s2, %s464
      %p466 = scmp.lt.s32.totalorder %s27, 1
      %s467 = scalar_select %p466, %s27, 1
      %p468 = scmp.lt.s32.totalorder %s28, 0
      %s469 = scalar_select %p468, %s28, 0
      %s470 = sadd.s32 %s469, %s467
      %s471 = smul.addr %s470, 8
      %s472 = scalar_lea.vmem %s11, %s471
      %p474 = scmp.eq.s32.totalorder %s29, 0
      // Predicated region
      $region65: #{transformer_decoder_forward.8} parent=63 // pred_check
        %p475 = pneg %p474
      $region66: #{transformer_decoder_forward.8} parent=63 // pred_check_branch
        %477 = sbr.rel (%p475) target = $region68
      $region67: #{transformer_decoder_forward.8} parent=63 // pred_region
        %v478 = vld [vmem:[%s452] sm:$0xff]
        %v479 = vpack.c.bf16 %v478, %v478
        %v480 = vld [vmem:[%s3] sm:$0xf]
        %v481 = vld [vmem:[%s3 + $0x4] sm:$0xf]
        %v482 = vld [vmem:[%s3 + $0x8] sm:$0xf]
        %v483 = vld [vmem:[%s3 + $0xc] sm:$0xf]
        %v484 = vld [vmem:[%s4] sm:$0x1]
        %v486 = vlaneseq
        %v487 = vshrl.u32 %v486, 7
        %v488 = vsub.s32 0, %v487
        %v489 = vrot.slane %v484, %v488
        %v495 = vunpack.c.l.b16 %v480
        %v496 = vunpack.c.l.b16 %v481
        %v497 = vunpack.c.l.b16 %v482
        %v498 = vunpack.c.l.b16 %v483
        %v499 = vpack.c.b16 %v496, %v495
        %v500 = vpack.c.b16 %v498, %v497
        %vm503 = vcmask 261120
        %v505 = vsel %vm503, %v479, 0
        %507 = vmatprep.subr.bf16.mxu0 0
        %508 = vmatpush1.bf16.msra.mxu0 0
        %509 = vmatprep.subr.bf16.mxu0 0
        %510 = vmatpush1.bf16.msra.mxu0 0
        %511 = vmatprep.subr.bf16.mxu0 0
        %512 = vmatpush1.bf16.msra.mxu0 0
        %513 = vmatprep.subr.bf16.mxu0 0
        %514 = vmatpush1.bf16.msra.mxu0 0
        %515 = vmatprep.subr.bf16.mxu0 0
        %516 = vmatpush1.bf16.msra.mxu0 0
        %517 = vmatprep.subr.bf16.mxu0 0
        %518 = vmatpush1.bf16.msra.mxu0 0
        %519 = vmatprep.subr.bf16.mxu0 0
        %520 = vmatpush1.bf16.msra.mxu0 %v500
        %521 = vmatprep.subr.bf16.mxu0 0
        %522 = vmatpush1.bf16.msra.mxu0 %v499
        %523 = vmatprep.subr.bf16.mxu0 0
        %524 = vmatpush2.bf16.msra.mxu0 0
        %525 = vmatprep.subr.bf16.mxu0 0
        %526 = vmatpush2.bf16.msra.mxu0 0
        %527 = vmatprep.subr.bf16.mxu0 0
        %528 = vmatpush2.bf16.msra.mxu0 0
        %529 = vmatprep.subr.bf16.mxu0 0
        %530 = vmatpush2.bf16.msra.mxu0 0
        %531 = vmatprep.subr.bf16.mxu0 0
        %532 = vmatpush2.bf16.msra.mxu0 0
        %533 = vmatprep.subr.bf16.mxu0 0
        %534 = vmatpush2.bf16.msra.mxu0 0
        %535 = vmatprep.subr.bf16.mxu0 0
        %536 = vmatpush2.bf16.msra.mxu0 0
        %537 = vmatprep.subr.bf16.mxu0 0
        %538 = vmatpush2.bf16.msra.mxu0 0
        %539 = vmatprep.mubr.bf16.mxu0 0
        %540 = vmatmul.mubr.bf16.gmra.mxu0 %v505
        %v541 = vpop.f32.mrf.mxu0
        %v542 = vadd.f32 %v489, %v541
        %v543 = vpop.f32.mrf.mxu0
        %v544 = vpop.f32.mrf.mxu0
        %v545 = vpop.f32.mrf.mxu0
        %546 = vdwg.mxu0
        %v547 = vpack.c.bf16 %v542, %v542
        %vm548 = vcmask 257024
        %549 = vst.msk [vmem:[#allocation2] sm:$0xf] %vm548, %v547
        %vm550 = vcmask 31744
        %551 = vst.msk [vmem:[#allocation3] sm:$0xff] %vm550, -inf
        %552 = vst.msk [vmem:[#allocation4] sm:$0xff] %vm550, 0.0
        %553 = vst.msk [vmem:[#allocation5] sm:$0xff] %vm503, 0.0
      $region68: #{transformer_decoder_forward.8} parent=63 // pred_fallthru
        _
      %v554 = vld [vmem:[%s459] sm:$0xff]
      %v555 = vpack.c.bf16 %v554, %v554
      %v556 = vld [vmem:[%s5] sm:$0xf]
      %v557 = vld [vmem:[%s5 + $0x4] sm:$0xf]
      %v558 = vld [vmem:[%s5 + $0x8] sm:$0xf]
      %v559 = vld [vmem:[%s5 + $0xc] sm:$0xf]
      %v560 = vld [vmem:[%s6] sm:$0x1]
      %v562 = vlaneseq
      %v563 = vshrl.u32 %v562, 7
      %v564 = vsub.s32 0, %v563
      %v565 = vrot.slane %v560, %v564
      %v571 = vunpack.c.l.b16 %v556
      %v572 = vunpack.c.l.b16 %v557
      %v573 = vunpack.c.l.b16 %v558
      %v574 = vunpack.c.l.b16 %v559
      %v575 = vpack.c.b16 %v572, %v571
      %v576 = vpack.c.b16 %v574, %v573
      %vm579 = vcmask 261120
      %v581 = vsel %vm579, %v555, 0
      %583 = vmatprep.subr.bf16.mxu0 0
      %584 = vmatpush1.bf16.msra.mxu0 0
      %585 = vmatprep.subr.bf16.mxu0 0
      %586 = vmatpush1.bf16.msra.mxu0 0
      %587 = vmatprep.subr.bf16.mxu0 0
      %588 = vmatpush1.bf16.msra.mxu0 0
      %589 = vmatprep.subr.bf16.mxu0 0
      %590 = vmatpush1.bf16.msra.mxu0 0
      %591 = vmatprep.subr.bf16.mxu0 0
      %592 = vmatpush1.bf16.msra.mxu0 0
      %593 = vmatprep.subr.bf16.mxu0 0
      %594 = vmatpush1.bf16.msra.mxu0 0
      %595 = vmatprep.subr.bf16.mxu0 0
      %596 = vmatpush1.bf16.msra.mxu0 %v576
      %597 = vmatprep.subr.bf16.mxu0 0
      %598 = vmatpush1.bf16.msra.mxu0 %v575
      %599 = vmatprep.subr.bf16.mxu0 0
      %600 = vmatpush2.bf16.msra.mxu0 0
      %601 = vmatprep.subr.bf16.mxu0 0
      %602 = vmatpush2.bf16.msra.mxu0 0
      %603 = vmatprep.subr.bf16.mxu0 0
      %604 = vmatpush2.bf16.msra.mxu0 0
      %605 = vmatprep.subr.bf16.mxu0 0
      %606 = vmatpush2.bf16.msra.mxu0 0
      %607 = vmatprep.subr.bf16.mxu0 0
      %608 = vmatpush2.bf16.msra.mxu0 0
      %609 = vmatprep.subr.bf16.mxu0 0
      %610 = vmatpush2.bf16.msra.mxu0 0
      %611 = vmatprep.subr.bf16.mxu0 0
      %612 = vmatpush2.bf16.msra.mxu0 0
      %613 = vmatprep.subr.bf16.mxu0 0
      %614 = vmatpush2.bf16.msra.mxu0 0
      %615 = vmatprep.mubr.bf16.mxu0 0
      %616 = vmatmul.mubr.bf16.gmra.mxu0 %v581
      %v617 = vpop.f32.mrf.mxu0
      %v618 = vadd.f32 %v565, %v617
      %v619 = vpop.f32.mrf.mxu0
      %v620 = vpop.f32.mrf.mxu0
      %v621 = vpop.f32.mrf.mxu0
      %622 = vdwg.mxu0
      %v623 = vpack.c.bf16 %v618, %v618
      %v624 = vld [vmem:[%s465] sm:$0x1]
      %v625 = vld [vmem:[#allocation2] sm:$0xf]
      %v627 = vlaneseq
      %v628 = vshrl.u32 %v627, 7
      %v629 = vsub.s32 0, %v628
      %v630 = vrot.slane %v624, %v629
      %vm632 = vcmask 64512
      %v634 = vsel %vm632, %v625, 0
      %v637 = vsel %vm632, %v623, 0
      %639 = vmatprep.subr.bf16.mxu0 0
      %640 = vmatpush1.bf16.xpose.msra.mxu0 0
      %641 = vmatprep.subr.bf16.mxu0 0
      %642 = vmatpush1.bf16.xpose.msra.mxu0 0
      %643 = vmatprep.subr.bf16.mxu0 0
      %644 = vmatpush1.bf16.xpose.msra.mxu0 0
      %645 = vmatprep.subr.bf16.mxu0 0
      %646 = vmatpush1.bf16.xpose.msra.mxu0 0
      %647 = vmatprep.subr.bf16.mxu0 0
      %648 = vmatpush1.bf16.xpose.msra.mxu0 0
      %649 = vmatprep.subr.bf16.mxu0 0
      %650 = vmatpush1.bf16.xpose.msra.mxu0 0
      %651 = vmatprep.subr.bf16.mxu0 0
      %652 = vmatpush1.bf16.xpose.msra.mxu0 0
      %653 = vmatprep.subr.bf16.mxu0 0
      %654 = vmatpush1.bf16.xpose.msra.mxu0 %v637
      %655 = vmatprep.subr.bf16.mxu0 0
      %656 = vmatpush2.bf16.xpose.msra.mxu0 0
      %657 = vmatprep.subr.bf16.mxu0 0
      %658 = vmatpush2.bf16.xpose.msra.mxu0 0
      %659 = vmatprep.subr.bf16.mxu0 0
      %660 = vmatpush2.bf16.xpose.msra.mxu0 0
      %661 = vmatprep.subr.bf16.mxu0 0
      %662 = vmatpush2.bf16.xpose.msra.mxu0 0
      %663 = vmatprep.subr.bf16.mxu0 0
      %664 = vmatpush2.bf16.xpose.msra.mxu0 0
      %665 = vmatprep.subr.bf16.mxu0 0
      %666 = vmatpush2.bf16.xpose.msra.mxu0 0
      %667 = vmatprep.subr.bf16.mxu0 0
      %668 = vmatpush2.bf16.xpose.msra.mxu0 0
      %669 = vmatprep.subr.bf16.mxu0 0
      %670 = vmatpush2.bf16.xpose.msra.mxu0 0
      %671 = vmatprep.mubr.bf16.mxu0 0
      %672 = vmatmul.mubr.bf16.gmra.mxu0 %v634
      %v673 = vpop.f32.mrf.mxu0
      %v674 = vadd.f32 %v630, %v673
      %v675 = vpop.f32.mrf.mxu0
      %v676 = vpop.f32.mrf.mxu0
      %v677 = vpop.f32.mrf.mxu0
      %678 = vdwg.mxu0
      %v679 = vld [vmem:[#allocation3] sm:$0xff]
      %v680 = vsel %vm632, %v674, -inf
      %681 = vmax.xlane.f32.xlu0 %v680
      %v682 = vpop.xlane.xlu0 %681
      %v683 = vmax.f32 %v679, %v682
      %v684 = vsub.f32 %v679, %v683
      %v685 = vmul.f32 %v684, 1.442695
      %v686 = vpow.pop %v685
      %688 = vset.pattern.permute.xlu0 0
      %689 = vperm.xlu0 %688, %v683
      %v690 = vpop.permute.xlu0 %689
      %v692 = vsub.f32 %v674, %v690
      %v693 = vmul.f32 %v692, 1.442695
      %v694 = vpow.pop %v693
      %v695 = vld [vmem:[#allocation4] sm:$0xff]
      %v696 = vmul.f32 %v686, %v695
      %v697 = vsel %vm632, %v694, 0.0
      %698 = vadd.xlane.f32.xlu0 %v697
      %v699 = vpop.xlane.xlu0 %698
      %v700 = vadd.f32 %v696, %v699
      %vm701 = vcmask 7168
      %702 = vst.msk [vmem:[#allocation4] sm:$0xff] %vm701, %v700
      %v703 = vpack.c.bf16 %v694, %v694
      %705 = vrot.lane.b32.xlu0 %v623, 96
      %v706 = vpop.permute.xlu0 %705
      %v708 = vsel %vm632, %v703, 0
      %vm710 = vcmask 1043456
      %v712 = vsel %vm710, %v706, 0
      %714 = vmatprep.subr.bf16.mxu0 0
      %715 = vmatpush1.bf16.msra.mxu0 0
      %716 = vmatprep.subr.bf16.mxu0 0
      %717 = vmatpush1.bf16.msra.mxu0 0
      %718 = vmatprep.subr.bf16.mxu0 0
      %719 = vmatpush1.bf16.msra.mxu0 0
      %720 = vmatprep.subr.bf16.mxu0 0
      %721 = vmatpush1.bf16.msra.mxu0 0
      %722 = vmatprep.subr.bf16.mxu0 0
      %723 = vmatpush1.bf16.msra.mxu0 0
      %724 = vmatprep.subr.bf16.mxu0 0
      %725 = vmatpush1.bf16.msra.mxu0 0
      %726 = vmatprep.subr.bf16.mxu0 0
      %727 = vmatpush1.bf16.msra.mxu0 0
      %728 = vmatprep.subr.bf16.mxu0 0
      %729 = vmatpush1.bf16.msra.mxu0 %v712
      %730 = vmatprep.subr.bf16.mxu0 0
      %731 = vmatpush2.bf16.msra.mxu0 0
      %732 = vmatprep.subr.bf16.mxu0 0
      %733 = vmatpush2.bf16.msra.mxu0 0
      %734 = vmatprep.subr.bf16.mxu0 0
      %735 = vmatpush2.bf16.msra.mxu0 0
      %736 = vmatprep.subr.bf16.mxu0 0
      %737 = vmatpush2.bf16.msra.mxu0 0
      %738 = vmatprep.subr.bf16.mxu0 0
      %739 = vmatpush2.bf16.msra.mxu0 0
      %740 = vmatprep.subr.bf16.mxu0 0
      %741 = vmatpush2.bf16.msra.mxu0 0
      %742 = vmatprep.subr.bf16.mxu0 0
      %743 = vmatpush2.bf16.msra.mxu0 0
      %744 = vmatprep.subr.bf16.mxu0 0
      %745 = vmatpush2.bf16.msra.mxu0 0
      %746 = vmatprep.mubr.bf16.mxu0 0
      %747 = vmatmul.mubr.bf16.gmra.mxu0 %v708
      %v748 = vpop.f32.mrf.mxu0
      %v749 = vadd.f32 0.0, %v748
      %v750 = vpop.f32.mrf.mxu0
      %v751 = vpop.f32.mrf.mxu0
      %v752 = vpop.f32.mrf.mxu0
      %753 = vdwg.mxu0
      %v754 = vld [vmem:[#allocation5] sm:$0xff]
      %756 = vset.pattern.permute.xlu0 0
      %757 = vperm.xlu0 %756, %v686
      %v758 = vpop.permute.xlu0 %757
      %v760 = vmul.f32 %v758, %v754
      %v761 = vadd.f32 %v760, %v749
      %762 = vst.msk [vmem:[#allocation5] sm:$0xff] %vm632, %v761
      %763 = vst.msk [vmem:[#allocation3] sm:$0xff] %vm701, %v683
      %v764 = vld [vmem:[#allocation2] sm:$0xf]
      %v766 = vunpack.c.l.b16 %v764
      %v767 = vpack.c.b16 %v766, %v766
      %768 = vrot.lane.b32.xlu0 %v767, 120
      %v769 = vpop.permute.xlu0 %768
      %770 = vrot.lane.b32.xlu0 %v623, 120
      %v771 = vpop.permute.xlu0 %770
      %v773 = vsel %vm632, %v769, 0
      %v776 = vsel %vm632, %v771, 0
      %778 = vmatprep.subr.bf16.mxu0 0
      %779 = vmatpush1.bf16.xpose.msra.mxu0 0
      %780 = vmatprep.subr.bf16.mxu0 0
      %781 = vmatpush1.bf16.xpose.msra.mxu0 0
      %782 = vmatprep.subr.bf16.mxu0 0
      %783 = vmatpush1.bf16.xpose.msra.mxu0 0
      %784 = vmatprep.subr.bf16.mxu0 0
      %785 = vmatpush1.bf16.xpose.msra.mxu0 0
      %786 = vmatprep.subr.bf16.mxu0 0
      %787 = vmatpush1.bf16.xpose.msra.mxu0 0
      %788 = vmatprep.subr.bf16.mxu0 0
      %789 = vmatpush1.bf16.xpose.msra.mxu0 0
      %790 = vmatprep.subr.bf16.mxu0 0
      %791 = vmatpush1.bf16.xpose.msra.mxu0 0
      %792 = vmatprep.subr.bf16.mxu0 0
      %793 = vmatpush1.bf16.xpose.msra.mxu0 %v776
      %794 = vmatprep.subr.bf16.mxu0 0
      %795 = vmatpush2.bf16.xpose.msra.mxu0 0
      %796 = vmatprep.subr.bf16.mxu0 0
      %797 = vmatpush2.bf16.xpose.msra.mxu0 0
      %798 = vmatprep.subr.bf16.mxu0 0
      %799 = vmatpush2.bf16.xpose.msra.mxu0 0
      %800 = vmatprep.subr.bf16.mxu0 0
      %801 = vmatpush2.bf16.xpose.msra.mxu0 0
      %802 = vmatprep.subr.bf16.mxu0 0
      %803 = vmatpush2.bf16.xpose.msra.mxu0 0
      %804 = vmatprep.subr.bf16.mxu0 0
      %805 = vmatpush2.bf16.xpose.msra.mxu0 0
      %806 = vmatprep.subr.bf16.mxu0 0
      %807 = vmatpush2.bf16.xpose.msra.mxu0 0
      %808 = vmatprep.subr.bf16.mxu0 0
      %809 = vmatpush2.bf16.xpose.msra.mxu0 0
      %810 = vmatprep.mubr.bf16.mxu0 0
      %811 = vmatmul.mubr.bf16.gmra.mxu0 %v773
      %v812 = vpop.f32.mrf.mxu0
      %v813 = vadd.f32 %v630, %v812
      %v814 = vpop.f32.mrf.mxu0
      %v815 = vpop.f32.mrf.mxu0
      %v816 = vpop.f32.mrf.mxu0
      %817 = vdwg.mxu0
      %v818 = vld [vmem:[#allocation3] sm:$0xff]
      %v819 = vsel %vm632, %v813, -inf
      %820 = vmax.xlane.f32.xlu0 %v819
      %v821 = vpop.xlane.xlu0 %820
      %v822 = vmax.f32 %v818, %v821
      %v823 = vsub.f32 %v818, %v822
      %v824 = vmul.f32 %v823, 1.442695
      %v825 = vpow.pop %v824
      %827 = vset.pattern.permute.xlu0 1
      %828 = vperm.xlu0 %827, %v822
      %v829 = vpop.permute.xlu0 %828
      %v831 = vsub.f32 %v813, %v829
      %v832 = vmul.f32 %v831, 1.442695
      %v833 = vpow.pop %v832
      %v834 = vld [vmem:[#allocation4] sm:$0xff]
      %v835 = vmul.f32 %v825, %v834
      %v836 = vsel %vm632, %v833, 0.0
      %837 = vadd.xlane.f32.xlu0 %v836
      %v838 = vpop.xlane.xlu0 %837
      %v839 = vadd.f32 %v835, %v838
      %vm840 = vcmask 15368
      %841 = vst.msk [vmem:[#allocation4] sm:$0xff] %vm840, %v839
      %v842 = vpack.c.bf16 %v833, %v833
      %843 = vrot.lane.b32.xlu0 %v623, 88
      %v844 = vpop.permute.xlu0 %843
      %v846 = vsel %vm632, %v842, 0
      %v849 = vsel %vm710, %v844, 0
      %851 = vmatprep.subr.bf16.mxu0 0
      %852 = vmatpush1.bf16.msra.mxu0 0
      %853 = vmatprep.subr.bf16.mxu0 0
      %854 = vmatpush1.bf16.msra.mxu0 0
      %855 = vmatprep.subr.bf16.mxu0 0
      %856 = vmatpush1.bf16.msra.mxu0 0
      %857 = vmatprep.subr.bf16.mxu0 0
      %858 = vmatpush1.bf16.msra.mxu0 0
      %859 = vmatprep.subr.bf16.mxu0 0
      %860 = vmatpush1.bf16.msra.mxu0 0
      %861 = vmatprep.subr.bf16.mxu0 0
      %862 = vmatpush1.bf16.msra.mxu0 0
      %863 = vmatprep.subr.bf16.mxu0 0
      %864 = vmatpush1.bf16.msra.mxu0 0
      %865 = vmatprep.subr.bf16.mxu0 0
      %866 = vmatpush1.bf16.msra.mxu0 %v849
      %867 = vmatprep.subr.bf16.mxu0 0
      %868 = vmatpush2.bf16.msra.mxu0 0
      %869 = vmatprep.subr.bf16.mxu0 0
      %870 = vmatpush2.bf16.msra.mxu0 0
      %871 = vmatprep.subr.bf16.mxu0 0
      %872 = vmatpush2.bf16.msra.mxu0 0
      %873 = vmatprep.subr.bf16.mxu0 0
      %874 = vmatpush2.bf16.msra.mxu0 0
      %875 = vmatprep.subr.bf16.mxu0 0
      %876 = vmatpush2.bf16.msra.mxu0 0
      %877 = vmatprep.subr.bf16.mxu0 0
      %878 = vmatpush2.bf16.msra.mxu0 0
      %879 = vmatprep.subr.bf16.mxu0 0
      %880 = vmatpush2.bf16.msra.mxu0 0
      %881 = vmatprep.subr.bf16.mxu0 0
      %882 = vmatpush2.bf16.msra.mxu0 0
      %883 = vmatprep.mubr.bf16.mxu0 0
      %884 = vmatmul.mubr.bf16.gmra.mxu0 %v846
      %v885 = vpop.f32.mrf.mxu0
      %v886 = vadd.f32 0.0, %v885
      %v887 = vpop.f32.mrf.mxu0
      %v888 = vpop.f32.mrf.mxu0
      %v889 = vpop.f32.mrf.mxu0
      %890 = vdwg.mxu0
      %v891 = vld [vmem:[#allocation5] sm:$0xff]
      %893 = vset.pattern.permute.xlu0 1
      %894 = vperm.xlu0 %893, %v825
      %v895 = vpop.permute.xlu0 %894
      %v897 = vmul.f32 %v895, %v891
      %899 = vrot.lane.b32.xlu0 %v886, 8
      %v900 = vpop.permute.xlu0 %899
      %v902 = vadd.f32 %v897, %v900
      %vm903 = vcmask 130112
      %904 = vst.msk [vmem:[#allocation5] sm:$0xff] %vm903, %v902
      %905 = vst.msk [vmem:[#allocation3] sm:$0xff] %vm840, %v822
      %v906 = vld [vmem:[#allocation2] sm:$0xf]
      %v908 = vunpack.c.l.b16 %v906
      %v909 = vpack.c.b16 %v908, %v908
      %910 = vrot.lane.b32.xlu0 %v909, 112
      %v911 = vpop.permute.xlu0 %910
      %912 = vrot.lane.b32.xlu0 %v623, 112
      %v913 = vpop.permute.xlu0 %912
      %v915 = vsel %vm632, %v911, 0
      %v918 = vsel %vm632, %v913, 0
      %920 = vmatprep.subr.bf16.mxu0 0
      %921 = vmatpush1.bf16.xpose.msra.mxu0 0
      %922 = vmatprep.subr.bf16.mxu0 0
      %923 = vmatpush1.bf16.xpose.msra.mxu0 0
      %924 = vmatprep.subr.bf16.mxu0 0
      %925 = vmatpush1.bf16.xpose.msra.mxu0 0
      %926 = vmatprep.subr.bf16.mxu0 0
      %927 = vmatpush1.bf16.xpose.msra.mxu0 0
      %928 = vmatprep.subr.bf16.mxu0 0
      %929 = vmatpush1.bf16.xpose.msra.mxu0 0
      %930 = vmatprep.subr.bf16.mxu0 0
      %931 = vmatpush1.bf16.xpose.msra.mxu0 0
      %932 = vmatprep.subr.bf16.mxu0 0
      %933 = vmatpush1.bf16.xpose.msra.mxu0 0
      %934 = vmatprep.subr.bf16.mxu0 0
      %935 = vmatpush1.bf16.xpose.msra.mxu0 %v918
      %936 = vmatprep.subr.bf16.mxu0 0
      %937 = vmatpush2.bf16.xpose.msra.mxu0 0
      %938 = vmatprep.subr.bf16.mxu0 0
      %939 = vmatpush2.bf16.xpose.msra.mxu0 0
      %940 = vmatprep.subr.bf16.mxu0 0
      %941 = vmatpush2.bf16.xpose.msra.mxu0 0
      %942 = vmatprep.subr.bf16.mxu0 0
      %943 = vmatpush2.bf16.xpose.msra.mxu0 0
      %944 = vmatprep.subr.bf16.mxu0 0
      %945 = vmatpush2.bf16.xpose.msra.mxu0 0
      %946 = vmatprep.subr.bf16.mxu0 0
      %947 = vmatpush2.bf16.xpose.msra.mxu0 0
      %948 = vmatprep.subr.bf16.mxu0 0
      %949 = vmatpush2.bf16.xpose.msra.mxu0 0
      %950 = vmatprep.subr.bf16.mxu0 0
      %951 = vmatpush2.bf16.xpose.msra.mxu0 0
      %952 = vmatprep.mubr.bf16.mxu0 0
      %953 = vmatmul.mubr.bf16.gmra.mxu0 %v915
      %v954 = vpop.f32.mrf.mxu0
      %v955 = vadd.f32 %v630, %v954
      %v956 = vpop.f32.mrf.mxu0
      %v957 = vpop.f32.mrf.mxu0
      %v958 = vpop.f32.mrf.mxu0
      %959 = vdwg.mxu0
      %v960 = vld [vmem:[#allocation3] sm:$0xff]
      %v961 = vsel %vm632, %v955, -inf
      %962 = vmax.xlane.f32.xlu0 %v961
      %v963 = vpop.xlane.xlu0 %962
      %v964 = vmax.f32 %v960, %v963
      %v965 = vsub.f32 %v960, %v964
      %v966 = vmul.f32 %v965, 1.442695
      %v967 = vpow.pop %v966
      %969 = vset.pattern.permute.xlu0 2
      %970 = vperm.xlu0 %969, %v964
      %v971 = vpop.permute.xlu0 %970
      %v973 = vsub.f32 %v955, %v971
      %v974 = vmul.f32 %v973, 1.442695
      %v975 = vpow.pop %v974
      %v976 = vld [vmem:[#allocation4] sm:$0xff]
      %v977 = vmul.f32 %v967, %v976
      %v978 = vsel %vm632, %v975, 0.0
      %979 = vadd.xlane.f32.xlu0 %v978
      %v980 = vpop.xlane.xlu0 %979
      %v981 = vadd.f32 %v977, %v980
      %vm982 = vcmask 23568
      %983 = vst.msk [vmem:[#allocation4] sm:$0xff] %vm982, %v981
      %v984 = vpack.c.bf16 %v975, %v975
      %985 = vrot.lane.b32.xlu0 %v623, 80
      %v986 = vpop.permute.xlu0 %985
      %v988 = vsel %vm632, %v984, 0
      %v991 = vsel %vm710, %v986, 0
      %993 = vmatprep.subr.bf16.mxu0 0
      %994 = vmatpush1.bf16.msra.mxu0 0
      %995 = vmatprep.subr.bf16.mxu0 0
      %996 = vmatpush1.bf16.msra.mxu0 0
      %997 = vmatprep.subr.bf16.mxu0 0
      %998 = vmatpush1.bf16.msra.mxu0 0
      %999 = vmatprep.subr.bf16.mxu0 0
      %1000 = vmatpush1.bf16.msra.mxu0 0
      %1001 = vmatprep.subr.bf16.mxu0 0
      %1002 = vmatpush1.bf16.msra.mxu0 0
      %1003 = vmatprep.subr.bf16.mxu0 0
      %1004 = vmatpush1.bf16.msra.mxu0 0
      %1005 = vmatprep.subr.bf16.mxu0 0
      %1006 = vmatpush1.bf16.msra.mxu0 0
      %1007 = vmatprep.subr.bf16.mxu0 0
      %1008 = vmatpush1.bf16.msra.mxu0 %v991
      %1009 = vmatprep.subr.bf16.mxu0 0
      %1010 = vmatpush2.bf16.msra.mxu0 0
      %1011 = vmatprep.subr.bf16.mxu0 0
      %1012 = vmatpush2.bf16.msra.mxu0 0
      %1013 = vmatprep.subr.bf16.mxu0 0
      %1014 = vmatpush2.bf16.msra.mxu0 0
      %1015 = vmatprep.subr.bf16.mxu0 0
      %1016 = vmatpush2.bf16.msra.mxu0 0
      %1017 = vmatprep.subr.bf16.mxu0 0
      %1018 = vmatpush2.bf16.msra.mxu0 0
      %1019 = vmatprep.subr.bf16.mxu0 0
      %1020 = vmatpush2.bf16.msra.mxu0 0
      %1021 = vmatprep.subr.bf16.mxu0 0
      %1022 = vmatpush2.bf16.msra.mxu0 0
      %1023 = vmatprep.subr.bf16.mxu0 0
      %1024 = vmatpush2.bf16.msra.mxu0 0
      %1025 = vmatprep.mubr.bf16.mxu0 0
      %1026 = vmatmul.mubr.bf16.gmra.mxu0 %v988
      %v1027 = vpop.f32.mrf.mxu0
      %v1028 = vadd.f32 0.0, %v1027
      %v1029 = vpop.f32.mrf.mxu0
      %v1030 = vpop.f32.mrf.mxu0
      %v1031 = vpop.f32.mrf.mxu0
      %1032 = vdwg.mxu0
      %v1033 = vld [vmem:[#allocation5] sm:$0xff]
      %1035 = vset.pattern.permute.xlu0 2
      %1036 = vperm.xlu0 %1035, %v967
      %v1037 = vpop.permute.xlu0 %1036
      %v1039 = vmul.f32 %v1037, %v1033
      %1041 = vrot.lane.b32.xlu0 %v1028, 16
      %v1042 = vpop.permute.xlu0 %1041
      %v1044 = vadd.f32 %v1039, %v1042
      %vm1045 = vcmask 195712
      %1046 = vst.msk [vmem:[#allocation5] sm:$0xff] %vm1045, %v1044
      %1047 = vst.msk [vmem:[#allocation3] sm:$0xff] %vm982, %v964
      %v1048 = vld [vmem:[#allocation2] sm:$0xf]
      %v1050 = vunpack.c.l.b16 %v1048
      %v1051 = vpack.c.b16 %v1050, %v1050
      %1052 = vrot.lane.b32.xlu0 %v1051, 104
      %v1053 = vpop.permute.xlu0 %1052
      %1054 = vrot.lane.b32.xlu0 %v623, 104
      %v1055 = vpop.permute.xlu0 %1054
      %v1057 = vsel %vm632, %v1053, 0
      %v1060 = vsel %vm632, %v1055, 0
      %1062 = vmatprep.subr.bf16.mxu0 0
      %1063 = vmatpush1.bf16.xpose.msra.mxu0 0
      %1064 = vmatprep.subr.bf16.mxu0 0
      %1065 = vmatpush1.bf16.xpose.msra.mxu0 0
      %1066 = vmatprep.subr.bf16.mxu0 0
      %1067 = vmatpush1.bf16.xpose.msra.mxu0 0
      %1068 = vmatprep.subr.bf16.mxu0 0
      %1069 = vmatpush1.bf16.xpose.msra.mxu0 0
      %1070 = vmatprep.subr.bf16.mxu0 0
      %1071 = vmatpush1.bf16.xpose.msra.mxu0 0
      %1072 = vmatprep.subr.bf16.mxu0 0
      %1073 = vmatpush1.bf16.xpose.msra.mxu0 0
      %1074 = vmatprep.subr.bf16.mxu0 0
      %1075 = vmatpush1.bf16.xpose.msra.mxu0 0
      %1076 = vmatprep.subr.bf16.mxu0 0
      %1077 = vmatpush1.bf16.xpose.msra.mxu0 %v1060
      %1078 = vmatprep.subr.bf16.mxu0 0
      %1079 = vmatpush2.bf16.xpose.msra.mxu0 0
      %1080 = vmatprep.subr.bf16.mxu0 0
      %1081 = vmatpush2.bf16.xpose.msra.mxu0 0
      %1082 = vmatprep.subr.bf16.mxu0 0
      %1083 = vmatpush2.bf16.xpose.msra.mxu0 0
      %1084 = vmatprep.subr.bf16.mxu0 0
      %1085 = vmatpush2.bf16.xpose.msra.mxu0 0
      %1086 = vmatprep.subr.bf16.mxu0 0
      %1087 = vmatpush2.bf16.xpose.msra.mxu0 0
      %1088 = vmatprep.subr.bf16.mxu0 0
      %1089 = vmatpush2.bf16.xpose.msra.mxu0 0
      %1090 = vmatprep.subr.bf16.mxu0 0
      %1091 = vmatpush2.bf16.xpose.msra.mxu0 0
      %1092 = vmatprep.subr.bf16.mxu0 0
      %1093 = vmatpush2.bf16.xpose.msra.mxu0 0
      %1094 = vmatprep.mubr.bf16.mxu0 0
      %1095 = vmatmul.mubr.bf16.gmra.mxu0 %v1057
      %v1096 = vpop.f32.mrf.mxu0
      %v1097 = vadd.f32 %v630, %v1096
      %v1098 = vpop.f32.mrf.mxu0
      %v1099 = vpop.f32.mrf.mxu0
      %v1100 = vpop.f32.mrf.mxu0
      %1101 = vdwg.mxu0
      %v1102 = vld [vmem:[#allocation3] sm:$0xff]
      %v1103 = vsel %vm632, %v1097, -inf
      %1104 = vmax.xlane.f32.xlu0 %v1103
      %v1105 = vpop.xlane.xlu0 %1104
      %v1106 = vmax.f32 %v1102, %v1105
      %v1107 = vsub.f32 %v1102, %v1106
      %v1108 = vmul.f32 %v1107, 1.442695
      %v1109 = vpow.pop %v1108
      %1111 = vset.pattern.permute.xlu0 3
      %1112 = vperm.xlu0 %1111, %v1106
      %v1113 = vpop.permute.xlu0 %1112
      %v1115 = vsub.f32 %v1097, %v1113
      %v1116 = vmul.f32 %v1115, 1.442695
      %v1117 = vpow.pop %v1116
      %v1118 = vld [vmem:[#allocation4] sm:$0xff]
      %v1119 = vmul.f32 %v1109, %v1118
      %v1120 = vsel %vm632, %v1117, 0.0
      %1121 = vadd.xlane.f32.xlu0 %v1120
      %v1122 = vpop.xlane.xlu0 %1121
      %v1123 = vadd.f32 %v1119, %v1122
      %vm1124 = vcmask 31768
      %1125 = vst.msk [vmem:[#allocation4] sm:$0xff] %vm1124, %v1123
      %v1126 = vpack.c.bf16 %v1117, %v1117
      %1127 = vrot.lane.b32.xlu0 %v623, 72
      %v1128 = vpop.permute.xlu0 %1127
      %v1130 = vsel %vm632, %v1126, 0
      %v1133 = vsel %vm710, %v1128, 0
      %1135 = vmatprep.subr.bf16.mxu0 0
      %1136 = vmatpush1.bf16.msra.mxu0 0
      %1137 = vmatprep.subr.bf16.mxu0 0
      %1138 = vmatpush1.bf16.msra.mxu0 0
      %1139 = vmatprep.subr.bf16.mxu0 0
      %1140 = vmatpush1.bf16.msra.mxu0 0
      %1141 = vmatprep.subr.bf16.mxu0 0
      %1142 = vmatpush1.bf16.msra.mxu0 0
      %1143 = vmatprep.subr.bf16.mxu0 0
      %1144 = vmatpush1.bf16.msra.mxu0 0
      %1145 = vmatprep.subr.bf16.mxu0 0
      %1146 = vmatpush1.bf16.msra.mxu0 0
      %1147 = vmatprep.subr.bf16.mxu0 0
      %1148 = vmatpush1.bf16.msra.mxu0 0
      %1149 = vmatprep.subr.bf16.mxu0 0
      %1150 = vmatpush1.bf16.msra.mxu0 %v1133
      %1151 = vmatprep.subr.bf16.mxu0 0
      %1152 = vmatpush2.bf16.msra.mxu0 0
      %1153 = vmatprep.subr.bf16.mxu0 0
      %1154 = vmatpush2.bf16.msra.mxu0 0
      %1155 = vmatprep.subr.bf16.mxu0 0
      %1156 = vmatpush2.bf16.msra.mxu0 0
      %1157 = vmatprep.subr.bf16.mxu0 0
      %1158 = vmatpush2.bf16.msra.mxu0 0
      %1159 = vmatprep.subr.bf16.mxu0 0
      %1160 = vmatpush2.bf16.msra.mxu0 0
      %1161 = vmatprep.subr.bf16.mxu0 0
      %1162 = vmatpush2.bf16.msra.mxu0 0
      %1163 = vmatprep.subr.bf16.mxu0 0
      %1164 = vmatpush2.bf16.msra.mxu0 0
      %1165 = vmatprep.subr.bf16.mxu0 0
      %1166 = vmatpush2.bf16.msra.mxu0 0
      %1167 = vmatprep.mubr.bf16.mxu0 0
      %1168 = vmatmul.mubr.bf16.gmra.mxu0 %v1130
      %v1169 = vpop.f32.mrf.mxu0
      %v1170 = vadd.f32 0.0, %v1169
      %v1171 = vpop.f32.mrf.mxu0
      %v1172 = vpop.f32.mrf.mxu0
      %v1173 = vpop.f32.mrf.mxu0
      %1174 = vdwg.mxu0
      %v1175 = vld [vmem:[#allocation5] sm:$0xff]
      %1177 = vset.pattern.permute.xlu0 3
      %1178 = vperm.xlu0 %1177, %v1109
      %v1179 = vpop.permute.xlu0 %1178
      %v1181 = vmul.f32 %v1179, %v1175
      %1183 = vrot.lane.b32.xlu0 %v1170, 24
      %v1184 = vpop.permute.xlu0 %1183
      %v1186 = vadd.f32 %v1181, %v1184
      %vm1187 = vcmask 261312
      %1188 = vst.msk [vmem:[#allocation5] sm:$0xff] %vm1187, %v1186
      %1189 = vst.msk [vmem:[#allocation3] sm:$0xff] %vm1124, %v1106
      // Predicated region
      $region69: #{transformer_decoder_forward.8} parent=63 // pred_check
        %p1190 = pneg %p474
      $region70: #{transformer_decoder_forward.8} parent=63 // pred_check_branch
        %1192 = sbr.rel (%p1190) target = $region72
      $region71: #{transformer_decoder_forward.8} parent=63 // pred_region
        %v1193 = vld [vmem:[#allocation4] sm:$0xff]
        %v1194 = vrcp.pop %v1193
        %v1195 = vld [vmem:[#allocation5] sm:$0xff]
        %1197 = vset.pattern.permute.xlu0 0
        %1198 = vperm.xlu0 %1197, %v1194
        %v1199 = vpop.permute.xlu0 %1198
        %v1201 = vmul.f32 %v1195, %v1199
        %1202 = vset.pattern.permute.xlu0 1
        %1203 = vperm.xlu0 %1202, %v1194
        %v1204 = vpop.permute.xlu0 %1203
        %v1206 = vmul.f32 %v1195, %v1204
        %1207 = vset.pattern.permute.xlu0 2
        %1208 = vperm.xlu0 %1207, %v1194
        %v1209 = vpop.permute.xlu0 %1208
        %v1211 = vmul.f32 %v1195, %v1209
        %1212 = vset.pattern.permute.xlu0 3
        %1213 = vperm.xlu0 %1212, %v1194
        %v1214 = vpop.permute.xlu0 %1213
        %v1216 = vmul.f32 %v1195, %v1214
        %v1217 = vsel %vm632, %v1201, %v1206
        %vm1218 = vcmask 130048
        %v1219 = vsel %vm1218, %v1217, %v1211
        %vm1220 = vcmask 195584
        %v1221 = vsel %vm1220, %v1219, %v1216
        %v1222 = vpack.c.bf16 %v1221, %v1221
        %v1223 = vld [vmem:[%s7] sm:$0xf]
        %v1224 = vld [vmem:[%s7 + $0x4] sm:$0xf]
        %v1225 = vld [vmem:[%s7 + $0x8] sm:$0xf]
        %v1226 = vld [vmem:[%s7 + $0xc] sm:$0xf]
        %v1227 = vld [vmem:[%s8] sm:$0x1]
        %v1229 = vlaneseq
        %v1230 = vshrl.u32 %v1229, 7
        %v1231 = vsub.s32 0, %v1230
        %v1232 = vrot.slane %v1227, %v1231
        %v1238 = vunpack.c.l.b16 %v1223
        %v1239 = vunpack.c.l.b16 %v1224
        %v1240 = vunpack.c.l.b16 %v1225
        %v1241 = vunpack.c.l.b16 %v1226
        %v1242 = vpack.c.b16 %v1239, %v1238
        %v1243 = vpack.c.b16 %v1241, %v1240
        %v1247 = vsel %vm579, %v1222, 0
        %1249 = vmatprep.subr.bf16.mxu0 0
        %1250 = vmatpush1.bf16.msra.mxu0 0
        %1251 = vmatprep.subr.bf16.mxu0 0
        %1252 = vmatpush1.bf16.msra.mxu0 0
        %1253 = vmatprep.subr.bf16.mxu0 0
        %1254 = vmatpush1.bf16.msra.mxu0 0
        %1255 = vmatprep.subr.bf16.mxu0 0
        %1256 = vmatpush1.bf16.msra.mxu0 0
        %1257 = vmatprep.subr.bf16.mxu0 0
        %1258 = vmatpush1.bf16.msra.mxu0 0
        %1259 = vmatprep.subr.bf16.mxu0 0
        %1260 = vmatpush1.bf16.msra.mxu0 0
        %1261 = vmatprep.subr.bf16.mxu0 0
        %1262 = vmatpush1.bf16.msra.mxu0 %v1243
        %1263 = vmatprep.subr.bf16.mxu0 0
        %1264 = vmatpush1.bf16.msra.mxu0 %v1242
        %1265 = vmatprep.subr.bf16.mxu0 0
        %1266 = vmatpush2.bf16.msra.mxu0 0
        %1267 = vmatprep.subr.bf16.mxu0 0
        %1268 = vmatpush2.bf16.msra.mxu0 0
        %1269 = vmatprep.subr.bf16.mxu0 0
        %1270 = vmatpush2.bf16.msra.mxu0 0
        %1271 = vmatprep.subr.bf16.mxu0 0
        %1272 = vmatpush2.bf16.msra.mxu0 0
        %1273 = vmatprep.subr.bf16.mxu0 0
        %1274 = vmatpush2.bf16.msra.mxu0 0
        %1275 = vmatprep.subr.bf16.mxu0 0
        %1276 = vmatpush2.bf16.msra.mxu0 0
        %1277 = vmatprep.subr.bf16.mxu0 0
        %1278 = vmatpush2.bf16.msra.mxu0 0
        %1279 = vmatprep.subr.bf16.mxu0 0
        %1280 = vmatpush2.bf16.msra.mxu0 0
        %1281 = vmatprep.mubr.bf16.mxu0 0
        %1282 = vmatmul.mubr.bf16.gmra.mxu0 %v1247
        %v1283 = vpop.f32.mrf.mxu0
        %v1284 = vadd.f32 %v1232, %v1283
        %v1285 = vpop.f32.mrf.mxu0
        %v1286 = vpop.f32.mrf.mxu0
        %v1287 = vpop.f32.mrf.mxu0
        %1288 = vdwg.mxu0
        %v1289 = vld [vmem:[%s452] sm:$0xff]
        %v1290 = vadd.f32 %v1289, %v1284
        %v1291 = vld [vmem:[%s9] sm:$0x1]
        %v1292 = vld [vmem:[%s10] sm:$0x1]
        %v1293 = vsel %vm579, %v1290, 0.0
        %1294 = vadd.xlane.f32.xlu0 %v1293
        %v1295 = vpop.xlane.xlu0 %1294
        %v1296 = vrcp.pop 32.0
        %v1297 = vmul.f32 %v1295, %v1296
        %v1298 = vsub.f32 %v1290, %v1297
        %v1299 = vmul.f32 %v1298, %v1298
        %v1300 = vsel %vm579, %v1299, 0.0
        %1301 = vadd.xlane.f32.xlu0 %v1300
        %v1302 = vpop.xlane.xlu0 %1301
        %v1303 = vmul.f32 %v1302, %v1296
        %v1304 = vadd.f32 %v1303, 1e-05
        %v1305 = vrsqrt.pop %v1304
        %v1306 = vmul.f32 %v1298, %v1305
        %v1308 = vlaneseq
        %v1309 = vshrl.u32 %v1308, 7
        %v1310 = vsub.s32 0, %v1309
        %v1311 = vrot.slane %v1291, %v1310
        %v1313 = vmul.f32 %v1306, %v1311
        %v1315 = vlaneseq
        %v1316 = vshrl.u32 %v1315, 7
        %v1317 = vsub.s32 0, %v1316
        %v1318 = vrot.slane %v1292, %v1317
        %v1320 = vadd.f32 %v1313, %v1318
        %1321 = vst.msk [vmem:[%s472] sm:$0xff] %vm579, %v1320
      $region72: #{transformer_decoder_forward.8} parent=63 // pred_fallthru
        _
      %p1322 = scmp.lt.s32.totalorder %s27, 1
      %s1323 = scalar_select %p1322, %s27, 1
      %p1324 = scmp.lt.s32.totalorder %s28, 0
      %s1325 = scalar_select %p1324, %s28, 0
      %s1326 = sadd.s32 %s1325, %s1323
      %s1327 = smul.addr %s1326, 8
      %s1328 = scalar_lea.vmem %s11, %s1327
      // Predicated region
      $region73: #{transformer_decoder_forward.8} parent=63 // pred_check
        %p1329 = pneg %p313
      $region74: #{transformer_decoder_forward.8} parent=63 // pred_check_branch
        %1331 = sbr.rel (%p1329) target = $region76
      $region75: #{transformer_decoder_forward.8} parent=63 // pred_region
        _
      $region76: #{transformer_decoder_forward.8} parent=63 // pred_fallthru
        _
    $region64: #{transformer_decoder_forward.8} parent=5 // pred_fallthru
      _
    %p1332 = scmp.le.s32.totalorder 2, %s17
    // Predicated region
    $region77: #{transformer_decoder_forward.8} parent=5 // pred_check
      %p1333 = pneg %p1332
    $region78: #{transformer_decoder_forward.8} parent=5 // pred_check_branch
      %1335 = sbr.rel (%p1333) target = $region80
    $region79: #{transformer_decoder_forward.8} parent=5 // pred_region
      %s1336 = ssub.s32 %s17, 2
      // Predicated region
      $region81: #{transformer_decoder_forward.8} parent=79 // pred_check
        %p1337 = pneg %p319
      $region82: #{transformer_decoder_forward.8} parent=79 // pred_check_branch
        %1339 = sbr.rel (%p1337) target = $region84
      $region83: #{transformer_decoder_forward.8} parent=79 // pred_region
        %p1340 = scmp.lt.s32.totalorder %s30, 1
        %s1341 = scalar_select %p1340, %s30, 1
        %p1342 = scmp.lt.s32.totalorder %s31, 0
        %s1343 = scalar_select %p1342, %s31, 0
        %s1344 = sadd.s32 %s1343, %s1341
        %s1345 = smul.addr %s1344, 8
        %s1346 = scalar_lea.vmem %s11, %s1345
      $region84: #{transformer_decoder_forward.8} parent=79 // pred_fallthru
        _
    $region80: #{transformer_decoder_forward.8} parent=5 // pred_fallthru
      _
  $region6: #{transformer_decoder_forward.8} parent=0 // loop_footer
    %s21 = sadd.s32 1, %s17
  $region7: #{transformer_decoder_forward.8} parent=0 // loop_footer_branch
    %16 = sbr.rel target = $region3
  $region8: #{transformer_decoder_forward.8} parent=0 // loop_exit
    _

// kernel: transformer_decoder_forward.7
$region0: #{transformer_decoder_forward.7}
  #allocation0 [shape = 'u32[]', space=smem, size = 0x4, offset = 0x4, fixed_abs, tag = 'smem constant byte address 0x4 - core index']
  #allocation1 [shape = 'u32[144,128]{1,0:T(1,128)}', space=vmem, size = 0x12000, scoped, tag = 'internal scratch']
  #allocation2 [shape = 'bf16[8,32]{1,0:T(8,128)(2,1)}', space=vmem, size = 0x800, scoped, tag = 'scratch operand']
  #allocation3 [shape = 'f32[8,4]{1,0:T(8,128)}', space=vmem, size = 0x1000, scoped, tag = 'scratch operand']
  #allocation4 [shape = 'f32[8,4]{1,0:T(8,128)}', space=vmem, size = 0x1000, scoped, tag = 'scratch operand']
  #allocation5 [shape = 'f32[8,32]{1,0:T(8,128)}', space=vmem, size = 0x1000, scoped, tag = 'scratch operand']
  %s0 = inlined_call_operand.vmem [shape: f32[2,8,32], index: 0, kind: input, shape index: {}, may-alias: {0,1}]
  %s1 = inlined_call_operand.vmem [shape: f32[2,8,32], index: 1, kind: input, shape index: {}, may-alias: {0,1}]
  %s2 = inlined_call_operand.vmem [shape: f32[1,1,8], index: 2, kind: input, shape index: {}]
  %s3 = inlined_call_operand.vmem [shape: bf16[32,32], index: 3, kind: input, shape index: {}]
  %s4 = inlined_call_operand.vmem [shape: f32[1,32], index: 4, kind: input, shape index: {}]
  %s5 = inlined_call_operand.vmem [shape: bf16[32,64], index: 5, kind: input, shape index: {}]
  %s6 = inlined_call_operand.vmem [shape: f32[1,64], index: 6, kind: input, shape index: {}]
  %s7 = inlined_call_operand.vmem [shape: bf16[32,32], index: 7, kind: input, shape index: {}]
  %s8 = inlined_call_operand.vmem [shape: f32[1,32], index: 8, kind: input, shape index: {}]
  %s9 = inlined_call_operand.vmem [shape: f32[1,32], index: 9, kind: input, shape index: {}]
  %s10 = inlined_call_operand.vmem [shape: f32[1,32], index: 10, kind: input, shape index: {}]
  %s11 = inlined_call_operand.vmem [shape: f32[2,8,32], index: 11, kind: output, shape index: {}]
  %s12 = sld [smem:[#allocation0]]
  $region89: #{transformer_decoder_forward.7} parent=0
    _
  %s14 = ssub.s32 1, %s12
  %s15 = scalar_select 0, %s14, %s12
  loop: start=0, step=1, limit=4
  $region2: #{transformer_decoder_forward.7} parent=0 // loop_pre_header
    _
  $region3: #{transformer_decoder_forward.7} parent=0 // loop_header
    %s17 = sphi 0, %s21
    %p18 = scmp.ge.s32.totalorder %s17, 4
    %s24 = sphi 0, %s43
    %s25 = sphi 0, %s39
    %s26 = sphi 0, %s35
    %s27 = sphi 0, %s24
    %s28 = sphi 0, %s25
    %s29 = sphi 0, %s26
    %s30 = sphi 0, %s27
    %s31 = sphi 0, %s28
    %s32 = sphi 0, %s29
    %s48 = sphi 0, %s50
    %s51 = sphi 0, %s48
    %s52 = sphi 0, %s51
    %s68 = sphi 0, %s52
    %s76 = sphi 0, %s78
    %s79 = sphi 0, %s76
    %s80 = sphi 0, %s79
    %s96 = sphi 0, %s80
    %s102 = sphi 0, %s104
    %s105 = sphi 0, %s102
    %s106 = sphi 0, %s105
    %s122 = sphi 0, %s106
    %s126 = sphi 0, %s126
    %s128 = sphi 0, %s126
    %s129 = sphi 0, %s128
    %s143 = sphi 0, %s129
    %s147 = sphi 0, %s147
    %s149 = sphi 0, %s147
    %s150 = sphi 0, %s149
    %s164 = sphi 0, %s150
    %s168 = sphi 0, %s168
    %s170 = sphi 0, %s168
    %s171 = sphi 0, %s170
    %s185 = sphi 0, %s171
    %s189 = sphi 0, %s189
    %s191 = sphi 0, %s189
    %s192 = sphi 0, %s191
    %s206 = sphi 0, %s192
    %s210 = sphi 0, %s210
    %s212 = sphi 0, %s210
    %s213 = sphi 0, %s212
    %s227 = sphi 0, %s213
    %s231 = sphi 0, %s231
    %s233 = sphi 0, %s231
    %s234 = sphi 0, %s233
    %s248 = sphi 0, %s234
    %s252 = sphi 0, %s252
    %s254 = sphi 0, %s252
    %s255 = sphi 0, %s254
    %s269 = sphi 0, %s255
    %s273 = sphi 0, %s273
    %s275 = sphi 0, %s273
    %s276 = sphi 0, %s275
    %s290 = sphi 0, %s276
    %s298 = sphi 0, %s300
    %s301 = sphi 0, %s298
    %s302 = sphi 0, %s301
    %s318 = sphi 0, %s302
  $region4: #{transformer_decoder_forward.7} parent=0 // loop_header_branch
    %20 = sbr.rel (%p18) target = $region8
  $region5: #{transformer_decoder_forward.7} parent=0 // loop_body
    %s22 = ssub.s32 %s17, 1
    %s23 = ssub.s32 %s17, 2
    %s33 = sadd.s32 1, %s26
    %p34 = scmp.ge.s32.totalorder %s33, 1
    %s35 = scalar_select %p34, 0, %s33
    %s36 = sadd.s32 1, %s25
    %s37 = scalar_select %p34, %s36, %s25
    %p38 = scmp.ge.s32.totalorder %s37, 1
    %s39 = scalar_select %p38, 0, %s37
    %s40 = sadd.s32 1, %s24
    %s41 = scalar_select %p38, %s40, %s24
    %p42 = scmp.ge.s32.totalorder %s41, 2
    %s43 = scalar_select %p42, 0, %s41
    %s44 = ssub.s32 %s24, %s43
    %s45 = ssub.s32 %s25, %s39
    %s46 = sor.u32 %s44, %s45
    %p47 = scmp.eq.s32.totalorder %s46, 0
    %s49 = sadd.s32 %s48, 1
    %s50 = scalar_select %p47, %s48, %s49
    %p53 = pneg %p47
    %p54 = scmp.eq.s32.totalorder %s17, 1
    %p55 = por %p53, %p54
    %p56 = scmp.ne.s32.totalorder %s48, %s51
    %p57 = scmp.eq.s32.totalorder %s17, 0
    %p58 = por %p56, %p57
    %p59 = scmp.ne.s32.totalorder %s48, %s51
    %p60 = scmp.eq.s32.totalorder %s22, 1
    %p61 = por %p59, %p60
    %p62 = scmp.ne.s32.totalorder %s51, %s52
    %p63 = scmp.eq.s32.totalorder %s22, 0
    %p64 = por %p62, %p63
    %p65 = scmp.ne.s32.totalorder %s51, %s52
    %p66 = scmp.eq.s32.totalorder %s23, 1
    %p67 = por %p65, %p66
    %p69 = scmp.ne.s32.totalorder %s52, %s68
    %p70 = scmp.eq.s32.totalorder %s23, 0
    %p71 = por %p69, %p70
    %s72 = ssub.s32 %s24, %s43
    %s73 = ssub.s32 %s26, %s35
    %s74 = sor.u32 %s72, %s73
    %p75 = scmp.eq.s32.totalorder %s74, 0
    %s77 = sadd.s32 %s76, 1
    %s78 = scalar_select %p75, %s76, %s77
    %p81 = pneg %p75
    %p82 = scmp.eq.s32.totalorder %s17, 1
    %p83 = por %p81, %p82
    %p84 = scmp.ne.s32.totalorder %s76, %s79
    %p85 = scmp.eq.s32.totalorder %s17, 0
    %p86 = por %p84, %p85
    %p87 = scmp.ne.s32.totalorder %s76, %s79
    %p88 = scmp.eq.s32.totalorder %s22, 1
    %p89 = por %p87, %p88
    %p90 = scmp.ne.s32.totalorder %s79, %s80
    %p91 = scmp.eq.s32.totalorder %s22, 0
    %p92 = por %p90, %p91
    %p93 = scmp.ne.s32.totalorder %s79, %s80
    %p94 = scmp.eq.s32.totalorder %s23, 1
    %p95 = por %p93, %p94
    %p97 = scmp.ne.s32.totalorder %s80, %s96
    %p98 = scmp.eq.s32.totalorder %s23, 0
    %p99 = por %p97, %p98
    %s100 = ssub.s32 %s26, %s35
    %p101 = scmp.eq.s32.totalorder %s100, 0
    %s103 = sadd.s32 %s102, 1
    %s104 = scalar_select %p101, %s102, %s103
    %p107 = pneg %p101
    %p108 = scmp.eq.s32.totalorder %s17, 1
    %p109 = por %p107, %p108
    %p110 = scmp.ne.s32.totalorder %s102, %s105
    %p111 = scmp.eq.s32.totalorder %s17, 0
    %p112 = por %p110, %p111
    %p113 = scmp.ne.s32.totalorder %s102, %s105
    %p114 = scmp.eq.s32.totalorder %s22, 1
    %p115 = por %p113, %p114
    %p116 = scmp.ne.s32.totalorder %s105, %s106
    %p117 = scmp.eq.s32.totalorder %s22, 0
    %p118 = por %p116, %p117
    %p119 = scmp.ne.s32.totalorder %s105, %s106
    %p120 = scmp.eq.s32.totalorder %s23, 1
    %p121 = por %p119, %p120
    %p123 = scmp.ne.s32.totalorder %s106, %s122
    %p124 = scmp.eq.s32.totalorder %s23, 0
    %p125 = por %p123, %p124
    %s127 = sadd.s32 %s126, 1
    %p130 = scmp.eq.s32.totalorder %s17, 1
    %p131 = scmp.ne.s32.totalorder %s126, %s128
    %p132 = scmp.eq.s32.totalorder %s17, 0
    %p133 = por %p131, %p132
    %p134 = scmp.ne.s32.totalorder %s126, %s128
    %p135 = scmp.eq.s32.totalorder %s22, 1
    %p136 = por %p134, %p135
    %p137 = scmp.ne.s32.totalorder %s128, %s129
    %p138 = scmp.eq.s32.totalorder %s22, 0
    %p139 = por %p137, %p138
    %p140 = scmp.ne.s32.totalorder %s128, %s129
    %p141 = scmp.eq.s32.totalorder %s23, 1
    %p142 = por %p140, %p141
    %p144 = scmp.ne.s32.totalorder %s129, %s143
    %p145 = scmp.eq.s32.totalorder %s23, 0
    %p146 = por %p144, %p145
    %s148 = sadd.s32 %s147, 1
    %p151 = scmp.eq.s32.totalorder %s17, 1
    %p152 = scmp.ne.s32.totalorder %s147, %s149
    %p153 = scmp.eq.s32.totalorder %s17, 0
    %p154 = por %p152, %p153
    %p155 = scmp.ne.s32.totalorder %s147, %s149
    %p156 = scmp.eq.s32.totalorder %s22, 1
    %p157 = por %p155, %p156
    %p158 = scmp.ne.s32.totalorder %s149, %s150
    %p159 = scmp.eq.s32.totalorder %s22, 0
    %p160 = por %p158, %p159
    %p161 = scmp.ne.s32.totalorder %s149, %s150
    %p162 = scmp.eq.s32.totalorder %s23, 1
    %p163 = por %p161, %p162
    %p165 = scmp.ne.s32.totalorder %s150, %s164
    %p166 = scmp.eq.s32.totalorder %s23, 0
    %p167 = por %p165, %p166
    %s169 = sadd.s32 %s168, 1
    %p172 = scmp.eq.s32.totalorder %s17, 1
    %p173 = scmp.ne.s32.totalorder %s168, %s170
    %p174 = scmp.eq.s32.totalorder %s17, 0
    %p175 = por %p173, %p174
    %p176 = scmp.ne.s32.totalorder %s168, %s170
    %p177 = scmp.eq.s32.totalorder %s22, 1
    %p178 = por %p176, %p177
    %p179 = scmp.ne.s32.totalorder %s170, %s171
    %p180 = scmp.eq.s32.totalorder %s22, 0
    %p181 = por %p179, %p180
    %p182 = scmp.ne.s32.totalorder %s170, %s171
    %p183 = scmp.eq.s32.totalorder %s23, 1
    %p184 = por %p182, %p183
    %p186 = scmp.ne.s32.totalorder %s171, %s185
    %p187 = scmp.eq.s32.totalorder %s23, 0
    %p188 = por %p186, %p187
    %s190 = sadd.s32 %s189, 1
    %p193 = scmp.eq.s32.totalorder %s17, 1
    %p194 = scmp.ne.s32.totalorder %s189, %s191
    %p195 = scmp.eq.s32.totalorder %s17, 0
    %p196 = por %p194, %p195
    %p197 = scmp.ne.s32.totalorder %s189, %s191
    %p198 = scmp.eq.s32.totalorder %s22, 1
    %p199 = por %p197, %p198
    %p200 = scmp.ne.s32.totalorder %s191, %s192
    %p201 = scmp.eq.s32.totalorder %s22, 0
    %p202 = por %p200, %p201
    %p203 = scmp.ne.s32.totalorder %s191, %s192
    %p204 = scmp.eq.s32.totalorder %s23, 1
    %p205 = por %p203, %p204
    %p207 = scmp.ne.s32.totalorder %s192, %s206
    %p208 = scmp.eq.s32.totalorder %s23, 0
    %p209 = por %p207, %p208
    %s211 = sadd.s32 %s210, 1
    %p214 = scmp.eq.s32.totalorder %s17, 1
    %p215 = scmp.ne.s32.totalorder %s210, %s212
    %p216 = scmp.eq.s32.totalorder %s17, 0
    %p217 = por %p215, %p216
    %p218 = scmp.ne.s32.totalorder %s210, %s212
    %p219 = scmp.eq.s32.totalorder %s22, 1
    %p220 = por %p218, %p219
    %p221 = scmp.ne.s32.totalorder %s212, %s213
    %p222 = scmp.eq.s32.totalorder %s22, 0
    %p223 = por %p221, %p222
    %p224 = scmp.ne.s32.totalorder %s212, %s213
    %p225 = scmp.eq.s32.totalorder %s23, 1
    %p226 = por %p224, %p225
    %p228 = scmp.ne.s32.totalorder %s213, %s227
    %p229 = scmp.eq.s32.totalorder %s23, 0
    %p230 = por %p228, %p229
    %s232 = sadd.s32 %s231, 1
    %p235 = scmp.eq.s32.totalorder %s17, 1
    %p236 = scmp.ne.s32.totalorder %s231, %s233
    %p237 = scmp.eq.s32.totalorder %s17, 0
    %p238 = por %p236, %p237
    %p239 = scmp.ne.s32.totalorder %s231, %s233
    %p240 = scmp.eq.s32.totalorder %s22, 1
    %p241 = por %p239, %p240
    %p242 = scmp.ne.s32.totalorder %s233, %s234
    %p243 = scmp.eq.s32.totalorder %s22, 0
    %p244 = por %p242, %p243
    %p245 = scmp.ne.s32.totalorder %s233, %s234
    %p246 = scmp.eq.s32.totalorder %s23, 1
    %p247 = por %p245, %p246
    %p249 = scmp.ne.s32.totalorder %s234, %s248
    %p250 = scmp.eq.s32.totalorder %s23, 0
    %p251 = por %p249, %p250
    %s253 = sadd.s32 %s252, 1
    %p256 = scmp.eq.s32.totalorder %s17, 1
    %p257 = scmp.ne.s32.totalorder %s252, %s254
    %p258 = scmp.eq.s32.totalorder %s17, 0
    %p259 = por %p257, %p258
    %p260 = scmp.ne.s32.totalorder %s252, %s254
    %p261 = scmp.eq.s32.totalorder %s22, 1
    %p262 = por %p260, %p261
    %p263 = scmp.ne.s32.totalorder %s254, %s255
    %p264 = scmp.eq.s32.totalorder %s22, 0
    %p265 = por %p263, %p264
    %p266 = scmp.ne.s32.totalorder %s254, %s255
    %p267 = scmp.eq.s32.totalorder %s23, 1
    %p268 = por %p266, %p267
    %p270 = scmp.ne.s32.totalorder %s255, %s269
    %p271 = scmp.eq.s32.totalorder %s23, 0
    %p272 = por %p270, %p271
    %s274 = sadd.s32 %s273, 1
    %p277 = scmp.eq.s32.totalorder %s17, 1
    %p278 = scmp.ne.s32.totalorder %s273, %s275
    %p279 = scmp.eq.s32.totalorder %s17, 0
    %p280 = por %p278, %p279
    %p281 = scmp.ne.s32.totalorder %s273, %s275
    %p282 = scmp.eq.s32.totalorder %s22, 1
    %p283 = por %p281, %p282
    %p284 = scmp.ne.s32.totalorder %s275, %s276
    %p285 = scmp.eq.s32.totalorder %s22, 0
    %p286 = por %p284, %p285
    %p287 = scmp.ne.s32.totalorder %s275, %s276
    %p288 = scmp.eq.s32.totalorder %s23, 1
    %p289 = por %p287, %p288
    %p291 = scmp.ne.s32.totalorder %s276, %s290
    %p292 = scmp.eq.s32.totalorder %s23, 0
    %p293 = por %p291, %p292
    %s294 = ssub.s32 %s24, %s43
    %s295 = ssub.s32 %s25, %s39
    %s296 = sor.u32 %s294, %s295
    %p297 = scmp.eq.s32.totalorder %s296, 0
    %s299 = sadd.s32 %s298, 1
    %s300 = scalar_select %p297, %s298, %s299
    %p303 = pneg %p297
    %p304 = scmp.eq.s32.totalorder %s17, 1
    %p305 = por %p303, %p304
    %p306 = scmp.ne.s32.totalorder %s298, %s301
    %p307 = scmp.eq.s32.totalorder %s17, 0
    %p308 = por %p306, %p307
    %p309 = scmp.ne.s32.totalorder %s298, %s301
    %p310 = scmp.eq.s32.totalorder %s22, 1
    %p311 = por %p309, %p310
    %p312 = scmp.ne.s32.totalorder %s301, %s302
    %p313 = scmp.eq.s32.totalorder %s22, 0
    %p314 = por %p312, %p313
    %p315 = scmp.ne.s32.totalorder %s301, %s302
    %p316 = scmp.eq.s32.totalorder %s23, 1
    %p317 = por %p315, %p316
    %p319 = scmp.ne.s32.totalorder %s302, %s318
    %p320 = scmp.eq.s32.totalorder %s23, 0
    %p321 = por %p319, %p320
    %p322 = scmp.le.s32.totalorder 1, %s17
    %p323 = scmp.lt.s32.totalorder %s17, 3
    %p324 = pnand %p322, %p323
    %p325 = pneg %p324
    // Predicated region
    $region9: #{transformer_decoder_forward.7} parent=5 // pred_check
      _
    $region10: #{transformer_decoder_forward.7} parent=5 // pred_check_branch
      %327 = sbr.rel (%p324) target = $region12
    $region11: #{transformer_decoder_forward.7} parent=5 // pred_region
      %s328 = ssub.s32 %s17, 1
      // Predicated region
      $region13: #{transformer_decoder_forward.7} parent=11 // pred_check
        %p329 = pneg %p118
      $region14: #{transformer_decoder_forward.7} parent=11 // pred_check_branch
        %331 = sbr.rel (%p329) target = $region16
      $region15: #{transformer_decoder_forward.7} parent=11 // pred_region
        %p332 = scmp.lt.s32.totalorder %s29, 0
        %s333 = scalar_select %p332, %s29, 0
        %s334 = scalar_lea.vmem %s2, %s333
      $region16: #{transformer_decoder_forward.7} parent=11 // pred_fallthru
        _
      // Predicated region
      $region17: #{transformer_decoder_forward.7} parent=11 // pred_check
        %p335 = pneg %p139
      $region18: #{transformer_decoder_forward.7} parent=11 // pred_check_branch
        %337 = sbr.rel (%p335) target = $region20
      $region19: #{transformer_decoder_forward.7} parent=11 // pred_region
        _
      $region20: #{transformer_decoder_forward.7} parent=11 // pred_fallthru
        _
      // Predicated region
      $region21: #{transformer_decoder_forward.7} parent=11 // pred_check
        %p338 = pneg %p160
      $region22: #{transformer_decoder_forward.7} parent=11 // pred_check_branch
        %340 = sbr.rel (%p338) target = $region24
      $region23: #{transformer_decoder_forward.7} parent=11 // pred_region
        _
      $region24: #{transformer_decoder_forward.7} parent=11 // pred_fallthru
        _
      // Predicated region
      $region25: #{transformer_decoder_forward.7} parent=11 // pred_check
        %p341 = pneg %p181
      $region26: #{transformer_decoder_forward.7} parent=11 // pred_check_branch
        %343 = sbr.rel (%p341) target = $region28
      $region27: #{transformer_decoder_forward.7} parent=11 // pred_region
        _
      $region28: #{transformer_decoder_forward.7} parent=11 // pred_fallthru
        _
      // Predicated region
      $region29: #{transformer_decoder_forward.7} parent=11 // pred_check
        %p344 = pneg %p202
      $region30: #{transformer_decoder_forward.7} parent=11 // pred_check_branch
        %346 = sbr.rel (%p344) target = $region32
      $region31: #{transformer_decoder_forward.7} parent=11 // pred_region
        _
      $region32: #{transformer_decoder_forward.7} parent=11 // pred_fallthru
        _
      // Predicated region
      $region33: #{transformer_decoder_forward.7} parent=11 // pred_check
        %p347 = pneg %p223
      $region34: #{transformer_decoder_forward.7} parent=11 // pred_check_branch
        %349 = sbr.rel (%p347) target = $region36
      $region35: #{transformer_decoder_forward.7} parent=11 // pred_region
        _
      $region36: #{transformer_decoder_forward.7} parent=11 // pred_fallthru
        _
      // Predicated region
      $region37: #{transformer_decoder_forward.7} parent=11 // pred_check
        %p350 = pneg %p244
      $region38: #{transformer_decoder_forward.7} parent=11 // pred_check_branch
        %352 = sbr.rel (%p350) target = $region40
      $region39: #{transformer_decoder_forward.7} parent=11 // pred_region
        _
      $region40: #{transformer_decoder_forward.7} parent=11 // pred_fallthru
        _
      // Predicated region
      $region41: #{transformer_decoder_forward.7} parent=11 // pred_check
        %p353 = pneg %p265
      $region42: #{transformer_decoder_forward.7} parent=11 // pred_check_branch
        %355 = sbr.rel (%p353) target = $region44
      $region43: #{transformer_decoder_forward.7} parent=11 // pred_region
        _
      $region44: #{transformer_decoder_forward.7} parent=11 // pred_fallthru
        _
      // Predicated region
      $region45: #{transformer_decoder_forward.7} parent=11 // pred_check
        %p356 = pneg %p286
      $region46: #{transformer_decoder_forward.7} parent=11 // pred_check_branch
        %358 = sbr.rel (%p356) target = $region48
      $region47: #{transformer_decoder_forward.7} parent=11 // pred_region
        _
      $region48: #{transformer_decoder_forward.7} parent=11 // pred_fallthru
        _
    $region12: #{transformer_decoder_forward.7} parent=5 // pred_fallthru
      _
    %p359 = scmp.lt.s32.totalorder %s17, 2
    // Predicated region
    $region49: #{transformer_decoder_forward.7} parent=5 // pred_check
      %p360 = pneg %p359
    $region50: #{transformer_decoder_forward.7} parent=5 // pred_check_branch
      %362 = sbr.rel (%p360) target = $region52
    $region51: #{transformer_decoder_forward.7} parent=5 // pred_region
      // Predicated region
      $region53: #{transformer_decoder_forward.7} parent=51 // pred_check
        %p363 = pneg %p58
      $region54: #{transformer_decoder_forward.7} parent=51 // pred_check_branch
        %365 = sbr.rel (%p363) target = $region56
      $region55: #{transformer_decoder_forward.7} parent=51 // pred_region
        %p366 = scmp.lt.s32.totalorder %s24, 1
        %s367 = scalar_select %p366, %s24, 1
        %p368 = scmp.lt.s32.totalorder %s25, 0
        %s369 = scalar_select %p368, %s25, 0
        %s370 = sadd.s32 %s369, %s367
        %s371 = smul.addr %s370, 8
        %s372 = scalar_lea.vmem %s0, %s371
      $region56: #{transformer_decoder_forward.7} parent=51 // pred_fallthru
        _
      // Predicated region
      $region57: #{transformer_decoder_forward.7} parent=51 // pred_check
        %p373 = pneg %p86
      $region58: #{transformer_decoder_forward.7} parent=51 // pred_check_branch
        %375 = sbr.rel (%p373) target = $region60
      $region59: #{transformer_decoder_forward.7} parent=51 // pred_region
        %p376 = scmp.lt.s32.totalorder %s24, 1
        %s377 = scalar_select %p376, %s24, 1
        %p378 = scmp.lt.s32.totalorder %s26, 0
        %s379 = scalar_select %p378, %s26, 0
        %s380 = sadd.s32 %s379, %s377
        %s381 = smul.addr %s380, 8
        %s382 = scalar_lea.vmem %s1, %s381
      $region60: #{transformer_decoder_forward.7} parent=51 // pred_fallthru
        _
    $region52: #{transformer_decoder_forward.7} parent=5 // pred_fallthru
      _
    %p383 = scmp.le.s32.totalorder 1, %s17
    %p384 = scmp.lt.s32.totalorder %s17, 3
    %p385 = pnand %p383, %p384
    %p386 = pneg %p385
    // Predicated region
    $region61: #{transformer_decoder_forward.7} parent=5 // pred_check
      _
    $region62: #{transformer_decoder_forward.7} parent=5 // pred_check_branch
      %388 = sbr.rel (%p385) target = $region64
    $region63: #{transformer_decoder_forward.7} parent=5 // pred_region
      %s389 = ssub.s32 %s17, 1
      %p390 = scmp.lt.s32.totalorder %s27, 1
      %s391 = scalar_select %p390, %s27, 1
      %p392 = scmp.lt.s32.totalorder %s28, 0
      %s393 = scalar_select %p392, %s28, 0
      %s394 = sadd.s32 %s393, %s391
      %s395 = smul.addr %s394, 8
      %s396 = scalar_lea.vmem %s0, %s395
      %p397 = pneg %p64
      %p398 = pneg %p61
      %p399 = scmp.lt.s32.totalorder %s27, 1
      %s400 = scalar_select %p399, %s27, 1
      %p401 = scmp.lt.s32.totalorder %s29, 0
      %s402 = scalar_select %p401, %s29, 0
      %s403 = sadd.s32 %s402, %s400
      %s404 = smul.addr %s403, 8
      %s405 = scalar_lea.vmem %s1, %s404
      %p406 = pneg %p92
      %p407 = pneg %p89
      %p408 = scmp.lt.s32.totalorder %s29, 0
      %s409 = scalar_select %p408, %s29, 0
      %s410 = scalar_lea.vmem %s2, %s409
      %p411 = pneg %p118
      %p412 = pneg %p115
      %p413 = pneg %p139
      %p414 = pneg %p136
      %p415 = pneg %p160
      %p416 = pneg %p157
      %p417 = pneg %p181
      %p418 = pneg %p178
      %p419 = pneg %p202
      %p420 = pneg %p199
      %p421 = pneg %p223
      %p422 = pneg %p220
      %p423 = pneg %p244
      %p424 = pneg %p241
      %p425 = pneg %p265
      %p426 = pneg %p262
      %p427 = pneg %p286
      %p428 = pneg %p283
      %p429 = pneg %p314
      %p430 = pneg %p311
      %p431 = scmp.lt.s32.totalorder %s27, 1
      %s432 = scalar_select %p431, %s27, 1
      %p433 = scmp.lt.s32.totalorder %s28, 0
      %s434 = scalar_select %p433, %s28, 0
      %s435 = sadd.s32 %s434, %s432
      %s436 = smul.addr %s435, 8
      %s437 = scalar_lea.vmem %s11, %s436
      %p438 = scmp.lt.s32.totalorder %s27, 1
      %s439 = scalar_select %p438, %s27, 1
      %p440 = scmp.lt.s32.totalorder %s28, 0
      %s441 = scalar_select %p440, %s28, 0
      %s442 = sadd.s32 %s441, %s439
      %s443 = smul.addr %s442, 8
      %s444 = scalar_lea.vmem %s0, %s443
      %p445 = scmp.lt.s32.totalorder %s27, 1
      %s446 = scalar_select %p445, %s27, 1
      %p447 = scmp.lt.s32.totalorder %s29, 0
      %s448 = scalar_select %p447, %s29, 0
      %s449 = sadd.s32 %s448, %s446
      %s450 = smul.addr %s449, 8
      %s451 = scalar_lea.vmem %s1, %s450
      %p452 = scmp.lt.s32.totalorder %s29, 0
      %s453 = scalar_select %p452, %s29, 0
      %s454 = scalar_lea.vmem %s2, %s453
      %p455 = scmp.lt.s32.totalorder %s27, 1
      %s456 = scalar_select %p455, %s27, 1
      %p457 = scmp.lt.s32.totalorder %s28, 0
      %s458 = scalar_select %p457, %s28, 0
      %s459 = sadd.s32 %s458, %s456
      %s460 = smul.addr %s459, 8
      %s461 = scalar_lea.vmem %s11, %s460
      %p463 = scmp.eq.s32.totalorder %s29, 0
      // Predicated region
      $region65: #{transformer_decoder_forward.7} parent=63 // pred_check
        %p464 = pneg %p463
      $region66: #{transformer_decoder_forward.7} parent=63 // pred_check_branch
        %466 = sbr.rel (%p464) target = $region68
      $region67: #{transformer_decoder_forward.7} parent=63 // pred_region
        %v467 = vld [vmem:[%s444] sm:$0xff]
        %v468 = vpack.c.bf16 %v467, %v467
        %v469 = vld [vmem:[%s3] sm:$0xf]
        %v470 = vld [vmem:[%s3 + $0x4] sm:$0xf]
        %v471 = vld [vmem:[%s3 + $0x8] sm:$0xf]
        %v472 = vld [vmem:[%s3 + $0xc] sm:$0xf]
        %v473 = vld [vmem:[%s4] sm:$0x1]
        %v475 = vlaneseq
        %v476 = vshrl.u32 %v475, 7
        %v477 = vsub.s32 0, %v476
        %v478 = vrot.slane %v473, %v477
        %v484 = vunpack.c.l.b16 %v469
        %v485 = vunpack.c.l.b16 %v470
        %v486 = vunpack.c.l.b16 %v471
        %v487 = vunpack.c.l.b16 %v472
        %v488 = vpack.c.b16 %v485, %v484
        %v489 = vpack.c.b16 %v487, %v486
        %vm492 = vcmask 261120
        %v494 = vsel %vm492, %v468, 0
        %496 = vmatprep.subr.bf16.mxu0 0
        %497 = vmatpush1.bf16.msra.mxu0 0
        %498 = vmatprep.subr.bf16.mxu0 0
        %499 = vmatpush1.bf16.msra.mxu0 0
        %500 = vmatprep.subr.bf16.mxu0 0
        %501 = vmatpush1.bf16.msra.mxu0 0
        %502 = vmatprep.subr.bf16.mxu0 0
        %503 = vmatpush1.bf16.msra.mxu0 0
        %504 = vmatprep.subr.bf16.mxu0 0
        %505 = vmatpush1.bf16.msra.mxu0 0
        %506 = vmatprep.subr.bf16.mxu0 0
        %507 = vmatpush1.bf16.msra.mxu0 0
        %508 = vmatprep.subr.bf16.mxu0 0
        %509 = vmatpush1.bf16.msra.mxu0 %v489
        %510 = vmatprep.subr.bf16.mxu0 0
        %511 = vmatpush1.bf16.msra.mxu0 %v488
        %512 = vmatprep.subr.bf16.mxu0 0
        %513 = vmatpush2.bf16.msra.mxu0 0
        %514 = vmatprep.subr.bf16.mxu0 0
        %515 = vmatpush2.bf16.msra.mxu0 0
        %516 = vmatprep.subr.bf16.mxu0 0
        %517 = vmatpush2.bf16.msra.mxu0 0
        %518 = vmatprep.subr.bf16.mxu0 0
        %519 = vmatpush2.bf16.msra.mxu0 0
        %520 = vmatprep.subr.bf16.mxu0 0
        %521 = vmatpush2.bf16.msra.mxu0 0
        %522 = vmatprep.subr.bf16.mxu0 0
        %523 = vmatpush2.bf16.msra.mxu0 0
        %524 = vmatprep.subr.bf16.mxu0 0
        %525 = vmatpush2.bf16.msra.mxu0 0
        %526 = vmatprep.subr.bf16.mxu0 0
        %527 = vmatpush2.bf16.msra.mxu0 0
        %528 = vmatprep.mubr.bf16.mxu0 0
        %529 = vmatmul.mubr.bf16.gmra.mxu0 %v494
        %v530 = vpop.f32.mrf.mxu0
        %v531 = vadd.f32 %v478, %v530
        %v532 = vpop.f32.mrf.mxu0
        %v533 = vpop.f32.mrf.mxu0
        %v534 = vpop.f32.mrf.mxu0
        %535 = vdwg.mxu0
        %v536 = vpack.c.bf16 %v531, %v531
        %vm537 = vcmask 257024
        %538 = vst.msk [vmem:[#allocation2] sm:$0xf] %vm537, %v536
        %vm539 = vcmask 31744
        %540 = vst.msk [vmem:[#allocation3] sm:$0xff] %vm539, -inf
        %541 = vst.msk [vmem:[#allocation4] sm:$0xff] %vm539, 0.0
        %542 = vst.msk [vmem:[#allocation5] sm:$0xff] %vm492, 0.0
      $region68: #{transformer_decoder_forward.7} parent=63 // pred_fallthru
        _
      %s543 = smul.u32 %s29, 8
      %s544 = smul.u32 %s28, 8
      %s545 = sadd.s32 %s544, 7
      %p546 = scmp.le.s32.totalorder %s543, %s545
      // Predicated region
      $region69: #{transformer_decoder_forward.7} parent=63 // pred_check
        %p547 = pneg %p546
      $region70: #{transformer_decoder_forward.7} parent=63 // pred_check_branch
        %549 = sbr.rel (%p547) target = $region72
      $region71: #{transformer_decoder_forward.7} parent=63 // pred_region
        %v550 = vld [vmem:[%s451] sm:$0xff]
        %v551 = vpack.c.bf16 %v550, %v550
        %v552 = vld [vmem:[%s5] sm:$0xf]
        %v553 = vld [vmem:[%s5 + $0x4] sm:$0xf]
        %v554 = vld [vmem:[%s5 + $0x8] sm:$0xf]
        %v555 = vld [vmem:[%s5 + $0xc] sm:$0xf]
        %v556 = vld [vmem:[%s6] sm:$0x1]
        %v558 = vlaneseq
        %v559 = vshrl.u32 %v558, 7
        %v560 = vsub.s32 0, %v559
        %v561 = vrot.slane %v556, %v560
        %v567 = vunpack.c.l.b16 %v552
        %v568 = vunpack.c.l.b16 %v553
        %v569 = vunpack.c.l.b16 %v554
        %v570 = vunpack.c.l.b16 %v555
        %v571 = vpack.c.b16 %v568, %v567
        %v572 = vpack.c.b16 %v570, %v569
        %vm575 = vcmask 261120
        %v577 = vsel %vm575, %v551, 0
        %579 = vmatprep.subr.bf16.mxu0 0
        %580 = vmatpush1.bf16.msra.mxu0 0
        %581 = vmatprep.subr.bf16.mxu0 0
        %582 = vmatpush1.bf16.msra.mxu0 0
        %583 = vmatprep.subr.bf16.mxu0 0
        %584 = vmatpush1.bf16.msra.mxu0 0
        %585 = vmatprep.subr.bf16.mxu0 0
        %586 = vmatpush1.bf16.msra.mxu0 0
        %587 = vmatprep.subr.bf16.mxu0 0
        %588 = vmatpush1.bf16.msra.mxu0 0
        %589 = vmatprep.subr.bf16.mxu0 0
        %590 = vmatpush1.bf16.msra.mxu0 0
        %591 = vmatprep.subr.bf16.mxu0 0
        %592 = vmatpush1.bf16.msra.mxu0 %v572
        %593 = vmatprep.subr.bf16.mxu0 0
        %594 = vmatpush1.bf16.msra.mxu0 %v571
        %595 = vmatprep.subr.bf16.mxu0 0
        %596 = vmatpush2.bf16.msra.mxu0 0
        %597 = vmatprep.subr.bf16.mxu0 0
        %598 = vmatpush2.bf16.msra.mxu0 0
        %599 = vmatprep.subr.bf16.mxu0 0
        %600 = vmatpush2.bf16.msra.mxu0 0
        %601 = vmatprep.subr.bf16.mxu0 0
        %602 = vmatpush2.bf16.msra.mxu0 0
        %603 = vmatprep.subr.bf16.mxu0 0
        %604 = vmatpush2.bf16.msra.mxu0 0
        %605 = vmatprep.subr.bf16.mxu0 0
        %606 = vmatpush2.bf16.msra.mxu0 0
        %607 = vmatprep.subr.bf16.mxu0 0
        %608 = vmatpush2.bf16.msra.mxu0 0
        %609 = vmatprep.subr.bf16.mxu0 0
        %610 = vmatpush2.bf16.msra.mxu0 0
        %611 = vmatprep.mubr.bf16.mxu0 0
        %612 = vmatmul.mubr.bf16.gmra.mxu0 %v577
        %v613 = vpop.f32.mrf.mxu0
        %v614 = vadd.f32 %v561, %v613
        %v615 = vpop.f32.mrf.mxu0
        %v616 = vpop.f32.mrf.mxu0
        %v617 = vpop.f32.mrf.mxu0
        %618 = vdwg.mxu0
        %v619 = vpack.c.bf16 %v614, %v614
        %v620 = vld [vmem:[%s454] sm:$0x1]
        %v621 = vlaneseq
        %v622 = vshrl.u32 %v621, 7
        %v623 = vstv %s544
        %v624 = vadd.s32 %v623, %v622
        %v625 = vlaneseq
        %v626 = vand.u32 %v625, 127
        %v627 = vstv %s543
        %v628 = vadd.s32 %v627, %v626
        %vm629 = vcmp.ge.s32.totalorder %v624, %v628
        %v630 = vsel %vm629, 0.0, -1e+09
        %v632 = vlaneseq
        %v633 = vshrl.u32 %v632, 7
        %v634 = vsub.s32 0, %v633
        %v635 = vrot.slane %v620, %v634
        %v637 = vadd.f32 %v635, %v630
        %v638 = vld [vmem:[#allocation2] sm:$0xf]
        %vm639 = vcmask 64512
        %v641 = vsel %vm639, %v638, 0
        %v644 = vsel %vm639, %v619, 0
        %646 = vmatprep.subr.bf16.mxu0 0
        %647 = vmatpush1.bf16.xpose.msra.mxu0 0
        %648 = vmatprep.subr.bf16.mxu0 0
        %649 = vmatpush1.bf16.xpose.msra.mxu0 0
        %650 = vmatprep.subr.bf16.mxu0 0
        %651 = vmatpush1.bf16.xpose.msra.mxu0 0
        %652 = vmatprep.subr.bf16.mxu0 0
        %653 = vmatpush1.bf16.xpose.msra.mxu0 0
        %654 = vmatprep.subr.bf16.mxu0 0
        %655 = vmatpush1.bf16.xpose.msra.mxu0 0
        %656 = vmatprep.subr.bf16.mxu0 0
        %657 = vmatpush1.bf16.xpose.msra.mxu0 0
        %658 = vmatprep.subr.bf16.mxu0 0
        %659 = vmatpush1.bf16.xpose.msra.mxu0 0
        %660 = vmatprep.subr.bf16.mxu0 0
        %661 = vmatpush1.bf16.xpose.msra.mxu0 %v644
        %662 = vmatprep.subr.bf16.mxu0 0
        %663 = vmatpush2.bf16.xpose.msra.mxu0 0
        %664 = vmatprep.subr.bf16.mxu0 0
        %665 = vmatpush2.bf16.xpose.msra.mxu0 0
        %666 = vmatprep.subr.bf16.mxu0 0
        %667 = vmatpush2.bf16.xpose.msra.mxu0 0
        %668 = vmatprep.subr.bf16.mxu0 0
        %669 = vmatpush2.bf16.xpose.msra.mxu0 0
        %670 = vmatprep.subr.bf16.mxu0 0
        %671 = vmatpush2.bf16.xpose.msra.mxu0 0
        %672 = vmatprep.subr.bf16.mxu0 0
        %673 = vmatpush2.bf16.xpose.msra.mxu0 0
        %674 = vmatprep.subr.bf16.mxu0 0
        %675 = vmatpush2.bf16.xpose.msra.mxu0 0
        %676 = vmatprep.subr.bf16.mxu0 0
        %677 = vmatpush2.bf16.xpose.msra.mxu0 0
        %678 = vmatprep.mubr.bf16.mxu0 0
        %679 = vmatmul.mubr.bf16.gmra.mxu0 %v641
        %v680 = vpop.f32.mrf.mxu0
        %v681 = vadd.f32 %v637, %v680
        %v682 = vpop.f32.mrf.mxu0
        %v683 = vpop.f32.mrf.mxu0
        %v684 = vpop.f32.mrf.mxu0
        %685 = vdwg.mxu0
        %v686 = vld [vmem:[#allocation3] sm:$0xff]
        %v687 = vsel %vm639, %v681, -inf
        %688 = vmax.xlane.f32.xlu0 %v687
        %v689 = vpop.xlane.xlu0 %688
        %v690 = vmax.f32 %v686, %v689
        %v691 = vsub.f32 %v686, %v690
        %v692 = vmul.f32 %v691, 1.442695
        %v693 = vpow.pop %v692
        %695 = vset.pattern.permute.xlu0 0
        %696 = vperm.xlu0 %695, %v690
        %v697 = vpop.permute.xlu0 %696
        %v699 = vsub.f32 %v681, %v697
        %v700 = vmul.f32 %v699, 1.442695
        %v701 = vpow.pop %v700
        %v702 = vld [vmem:[#allocation4] sm:$0xff]
        %v703 = vmul.f32 %v693, %v702
        %v704 = vsel %vm639, %v701, 0.0
        %705 = vadd.xlane.f32.xlu0 %v704
        %v706 = vpop.xlane.xlu0 %705
        %v707 = vadd.f32 %v703, %v706
        %vm708 = vcmask 7168
        %709 = vst.msk [vmem:[#allocation4] sm:$0xff] %vm708, %v707
        %v710 = vpack.c.bf16 %v701, %v701
        %712 = vrot.lane.b32.xlu0 %v619, 96
        %v713 = vpop.permute.xlu0 %712
        %v715 = vsel %vm639, %v710, 0
        %vm717 = vcmask 1043456
        %v719 = vsel %vm717, %v713, 0
        %721 = vmatprep.subr.bf16.mxu0 0
        %722 = vmatpush1.bf16.msra.mxu0 0
        %723 = vmatprep.subr.bf16.mxu0 0
        %724 = vmatpush1.bf16.msra.mxu0 0
        %725 = vmatprep.subr.bf16.mxu0 0
        %726 = vmatpush1.bf16.msra.mxu0 0
        %727 = vmatprep.subr.bf16.mxu0 0
        %728 = vmatpush1.bf16.msra.mxu0 0
        %729 = vmatprep.subr.bf16.mxu0 0
        %730 = vmatpush1.bf16.msra.mxu0 0
        %731 = vmatprep.subr.bf16.mxu0 0
        %732 = vmatpush1.bf16.msra.mxu0 0
        %733 = vmatprep.subr.bf16.mxu0 0
        %734 = vmatpush1.bf16.msra.mxu0 0
        %735 = vmatprep.subr.bf16.mxu0 0
        %736 = vmatpush1.bf16.msra.mxu0 %v719
        %737 = vmatprep.subr.bf16.mxu0 0
        %738 = vmatpush2.bf16.msra.mxu0 0
        %739 = vmatprep.subr.bf16.mxu0 0
        %740 = vmatpush2.bf16.msra.mxu0 0
        %741 = vmatprep.subr.bf16.mxu0 0
        %742 = vmatpush2.bf16.msra.mxu0 0
        %743 = vmatprep.subr.bf16.mxu0 0
        %744 = vmatpush2.bf16.msra.mxu0 0
        %745 = vmatprep.subr.bf16.mxu0 0
        %746 = vmatpush2.bf16.msra.mxu0 0
        %747 = vmatprep.subr.bf16.mxu0 0
        %748 = vmatpush2.bf16.msra.mxu0 0
        %749 = vmatprep.subr.bf16.mxu0 0
        %750 = vmatpush2.bf16.msra.mxu0 0
        %751 = vmatprep.subr.bf16.mxu0 0
        %752 = vmatpush2.bf16.msra.mxu0 0
        %753 = vmatprep.mubr.bf16.mxu0 0
        %754 = vmatmul.mubr.bf16.gmra.mxu0 %v715
        %v755 = vpop.f32.mrf.mxu0
        %v756 = vadd.f32 0.0, %v755
        %v757 = vpop.f32.mrf.mxu0
        %v758 = vpop.f32.mrf.mxu0
        %v759 = vpop.f32.mrf.mxu0
        %760 = vdwg.mxu0
        %v761 = vld [vmem:[#allocation5] sm:$0xff]
        %763 = vset.pattern.permute.xlu0 0
        %764 = vperm.xlu0 %763, %v693
        %v765 = vpop.permute.xlu0 %764
        %v767 = vmul.f32 %v765, %v761
        %v768 = vadd.f32 %v767, %v756
        %769 = vst.msk [vmem:[#allocation5] sm:$0xff] %vm639, %v768
        %770 = vst.msk [vmem:[#allocation3] sm:$0xff] %vm708, %v690
        %v771 = vld [vmem:[#allocation2] sm:$0xf]
        %v773 = vunpack.c.l.b16 %v771
        %v774 = vpack.c.b16 %v773, %v773
        %775 = vrot.lane.b32.xlu0 %v774, 120
        %v776 = vpop.permute.xlu0 %775
        %777 = vrot.lane.b32.xlu0 %v619, 120
        %v778 = vpop.permute.xlu0 %777
        %v780 = vsel %vm639, %v776, 0
        %v783 = vsel %vm639, %v778, 0
        %785 = vmatprep.subr.bf16.mxu0 0
        %786 = vmatpush1.bf16.xpose.msra.mxu0 0
        %787 = vmatprep.subr.bf16.mxu0 0
        %788 = vmatpush1.bf16.xpose.msra.mxu0 0
        %789 = vmatprep.subr.bf16.mxu0 0
        %790 = vmatpush1.bf16.xpose.msra.mxu0 0
        %791 = vmatprep.subr.bf16.mxu0 0
        %792 = vmatpush1.bf16.xpose.msra.mxu0 0
        %793 = vmatprep.subr.bf16.mxu0 0
        %794 = vmatpush1.bf16.xpose.msra.mxu0 0
        %795 = vmatprep.subr.bf16.mxu0 0
        %796 = vmatpush1.bf16.xpose.msra.mxu0 0
        %797 = vmatprep.subr.bf16.mxu0 0
        %798 = vmatpush1.bf16.xpose.msra.mxu0 0
        %799 = vmatprep.subr.bf16.mxu0 0
        %800 = vmatpush1.bf16.xpose.msra.mxu0 %v783
        %801 = vmatprep.subr.bf16.mxu0 0
        %802 = vmatpush2.bf16.xpose.msra.mxu0 0
        %803 = vmatprep.subr.bf16.mxu0 0
        %804 = vmatpush2.bf16.xpose.msra.mxu0 0
        %805 = vmatprep.subr.bf16.mxu0 0
        %806 = vmatpush2.bf16.xpose.msra.mxu0 0
        %807 = vmatprep.subr.bf16.mxu0 0
        %808 = vmatpush2.bf16.xpose.msra.mxu0 0
        %809 = vmatprep.subr.bf16.mxu0 0
        %810 = vmatpush2.bf16.xpose.msra.mxu0 0
        %811 = vmatprep.subr.bf16.mxu0 0
        %812 = vmatpush2.bf16.xpose.msra.mxu0 0
        %813 = vmatprep.subr.bf16.mxu0 0
        %814 = vmatpush2.bf16.xpose.msra.mxu0 0
        %815 = vmatprep.subr.bf16.mxu0 0
        %816 = vmatpush2.bf16.xpose.msra.mxu0 0
        %817 = vmatprep.mubr.bf16.mxu0 0
        %818 = vmatmul.mubr.bf16.gmra.mxu0 %v780
        %v819 = vpop.f32.mrf.mxu0
        %v820 = vadd.f32 %v637, %v819
        %v821 = vpop.f32.mrf.mxu0
        %v822 = vpop.f32.mrf.mxu0
        %v823 = vpop.f32.mrf.mxu0
        %824 = vdwg.mxu0
        %v825 = vld [vmem:[#allocation3] sm:$0xff]
        %v826 = vsel %vm639, %v820, -inf
        %827 = vmax.xlane.f32.xlu0 %v826
        %v828 = vpop.xlane.xlu0 %827
        %v829 = vmax.f32 %v825, %v828
        %v830 = vsub.f32 %v825, %v829
        %v831 = vmul.f32 %v830, 1.442695
        %v832 = vpow.pop %v831
        %834 = vset.pattern.permute.xlu0 1
        %835 = vperm.xlu0 %834, %v829
        %v836 = vpop.permute.xlu0 %835
        %v838 = vsub.f32 %v820, %v836
        %v839 = vmul.f32 %v838, 1.442695
        %v840 = vpow.pop %v839
        %v841 = vld [vmem:[#allocation4] sm:$0xff]
        %v842 = vmul.f32 %v832, %v841
        %v843 = vsel %vm639, %v840, 0.0
        %844 = vadd.xlane.f32.xlu0 %v843
        %v845 = vpop.xlane.xlu0 %844
        %v846 = vadd.f32 %v842, %v845
        %vm847 = vcmask 15368
        %848 = vst.msk [vmem:[#allocation4] sm:$0xff] %vm847, %v846
        %v849 = vpack.c.bf16 %v840, %v840
        %850 = vrot.lane.b32.xlu0 %v619, 88
        %v851 = vpop.permute.xlu0 %850
        %v853 = vsel %vm639, %v849, 0
        %v856 = vsel %vm717, %v851, 0
        %858 = vmatprep.subr.bf16.mxu0 0
        %859 = vmatpush1.bf16.msra.mxu0 0
        %860 = vmatprep.subr.bf16.mxu0 0
        %861 = vmatpush1.bf16.msra.mxu0 0
        %862 = vmatprep.subr.bf16.mxu0 0
        %863 = vmatpush1.bf16.msra.mxu0 0
        %864 = vmatprep.subr.bf16.mxu0 0
        %865 = vmatpush1.bf16.msra.mxu0 0
        %866 = vmatprep.subr.bf16.mxu0 0
        %867 = vmatpush1.bf16.msra.mxu0 0
        %868 = vmatprep.subr.bf16.mxu0 0
        %869 = vmatpush1.bf16.msra.mxu0 0
        %870 = vmatprep.subr.bf16.mxu0 0
        %871 = vmatpush1.bf16.msra.mxu0 0
        %872 = vmatprep.subr.bf16.mxu0 0
        %873 = vmatpush1.bf16.msra.mxu0 %v856
        %874 = vmatprep.subr.bf16.mxu0 0
        %875 = vmatpush2.bf16.msra.mxu0 0
        %876 = vmatprep.subr.bf16.mxu0 0
        %877 = vmatpush2.bf16.msra.mxu0 0
        %878 = vmatprep.subr.bf16.mxu0 0
        %879 = vmatpush2.bf16.msra.mxu0 0
        %880 = vmatprep.subr.bf16.mxu0 0
        %881 = vmatpush2.bf16.msra.mxu0 0
        %882 = vmatprep.subr.bf16.mxu0 0
        %883 = vmatpush2.bf16.msra.mxu0 0
        %884 = vmatprep.subr.bf16.mxu0 0
        %885 = vmatpush2.bf16.msra.mxu0 0
        %886 = vmatprep.subr.bf16.mxu0 0
        %887 = vmatpush2.bf16.msra.mxu0 0
        %888 = vmatprep.subr.bf16.mxu0 0
        %889 = vmatpush2.bf16.msra.mxu0 0
        %890 = vmatprep.mubr.bf16.mxu0 0
        %891 = vmatmul.mubr.bf16.gmra.mxu0 %v853
        %v892 = vpop.f32.mrf.mxu0
        %v893 = vadd.f32 0.0, %v892
        %v894 = vpop.f32.mrf.mxu0
        %v895 = vpop.f32.mrf.mxu0
        %v896 = vpop.f32.mrf.mxu0
        %897 = vdwg.mxu0
        %v898 = vld [vmem:[#allocation5] sm:$0xff]
        %900 = vset.pattern.permute.xlu0 1
        %901 = vperm.xlu0 %900, %v832
        %v902 = vpop.permute.xlu0 %901
        %v904 = vmul.f32 %v902, %v898
        %906 = vrot.lane.b32.xlu0 %v893, 8
        %v907 = vpop.permute.xlu0 %906
        %v909 = vadd.f32 %v904, %v907
        %vm910 = vcmask 130112
        %911 = vst.msk [vmem:[#allocation5] sm:$0xff] %vm910, %v909
        %912 = vst.msk [vmem:[#allocation3] sm:$0xff] %vm847, %v829
        %v913 = vld [vmem:[#allocation2] sm:$0xf]
        %v915 = vunpack.c.l.b16 %v913
        %v916 = vpack.c.b16 %v915, %v915
        %917 = vrot.lane.b32.xlu0 %v916, 112
        %v918 = vpop.permute.xlu0 %917
        %919 = vrot.lane.b32.xlu0 %v619, 112
        %v920 = vpop.permute.xlu0 %919
        %v922 = vsel %vm639, %v918, 0
        %v925 = vsel %vm639, %v920, 0
        %927 = vmatprep.subr.bf16.mxu0 0
        %928 = vmatpush1.bf16.xpose.msra.mxu0 0
        %929 = vmatprep.subr.bf16.mxu0 0
        %930 = vmatpush1.bf16.xpose.msra.mxu0 0
        %931 = vmatprep.subr.bf16.mxu0 0
        %932 = vmatpush1.bf16.xpose.msra.mxu0 0
        %933 = vmatprep.subr.bf16.mxu0 0
        %934 = vmatpush1.bf16.xpose.msra.mxu0 0
        %935 = vmatprep.subr.bf16.mxu0 0
        %936 = vmatpush1.bf16.xpose.msra.mxu0 0
        %937 = vmatprep.subr.bf16.mxu0 0
        %938 = vmatpush1.bf16.xpose.msra.mxu0 0
        %939 = vmatprep.subr.bf16.mxu0 0
        %940 = vmatpush1.bf16.xpose.msra.mxu0 0
        %941 = vmatprep.subr.bf16.mxu0 0
        %942 = vmatpush1.bf16.xpose.msra.mxu0 %v925
        %943 = vmatprep.subr.bf16.mxu0 0
        %944 = vmatpush2.bf16.xpose.msra.mxu0 0
        %945 = vmatprep.subr.bf16.mxu0 0
        %946 = vmatpush2.bf16.xpose.msra.mxu0 0
        %947 = vmatprep.subr.bf16.mxu0 0
        %948 = vmatpush2.bf16.xpose.msra.mxu0 0
        %949 = vmatprep.subr.bf16.mxu0 0
        %950 = vmatpush2.bf16.xpose.msra.mxu0 0
        %951 = vmatprep.subr.bf16.mxu0 0
        %952 = vmatpush2.bf16.xpose.msra.mxu0 0
        %953 = vmatprep.subr.bf16.mxu0 0
        %954 = vmatpush2.bf16.xpose.msra.mxu0 0
        %955 = vmatprep.subr.bf16.mxu0 0
        %956 = vmatpush2.bf16.xpose.msra.mxu0 0
        %957 = vmatprep.subr.bf16.mxu0 0
        %958 = vmatpush2.bf16.xpose.msra.mxu0 0
        %959 = vmatprep.mubr.bf16.mxu0 0
        %960 = vmatmul.mubr.bf16.gmra.mxu0 %v922
        %v961 = vpop.f32.mrf.mxu0
        %v962 = vadd.f32 %v637, %v961
        %v963 = vpop.f32.mrf.mxu0
        %v964 = vpop.f32.mrf.mxu0
        %v965 = vpop.f32.mrf.mxu0
        %966 = vdwg.mxu0
        %v967 = vld [vmem:[#allocation3] sm:$0xff]
        %v968 = vsel %vm639, %v962, -inf
        %969 = vmax.xlane.f32.xlu0 %v968
        %v970 = vpop.xlane.xlu0 %969
        %v971 = vmax.f32 %v967, %v970
        %v972 = vsub.f32 %v967, %v971
        %v973 = vmul.f32 %v972, 1.442695
        %v974 = vpow.pop %v973
        %976 = vset.pattern.permute.xlu0 2
        %977 = vperm.xlu0 %976, %v971
        %v978 = vpop.permute.xlu0 %977
        %v980 = vsub.f32 %v962, %v978
        %v981 = vmul.f32 %v980, 1.442695
        %v982 = vpow.pop %v981
        %v983 = vld [vmem:[#allocation4] sm:$0xff]
        %v984 = vmul.f32 %v974, %v983
        %v985 = vsel %vm639, %v982, 0.0
        %986 = vadd.xlane.f32.xlu0 %v985
        %v987 = vpop.xlane.xlu0 %986
        %v988 = vadd.f32 %v984, %v987
        %vm989 = vcmask 23568
        %990 = vst.msk [vmem:[#allocation4] sm:$0xff] %vm989, %v988
        %v991 = vpack.c.bf16 %v982, %v982
        %992 = vrot.lane.b32.xlu0 %v619, 80
        %v993 = vpop.permute.xlu0 %992
        %v995 = vsel %vm639, %v991, 0
        %v998 = vsel %vm717, %v993, 0
        %1000 = vmatprep.subr.bf16.mxu0 0
        %1001 = vmatpush1.bf16.msra.mxu0 0
        %1002 = vmatprep.subr.bf16.mxu0 0
        %1003 = vmatpush1.bf16.msra.mxu0 0
        %1004 = vmatprep.subr.bf16.mxu0 0
        %1005 = vmatpush1.bf16.msra.mxu0 0
        %1006 = vmatprep.subr.bf16.mxu0 0
        %1007 = vmatpush1.bf16.msra.mxu0 0
        %1008 = vmatprep.subr.bf16.mxu0 0
        %1009 = vmatpush1.bf16.msra.mxu0 0
        %1010 = vmatprep.subr.bf16.mxu0 0
        %1011 = vmatpush1.bf16.msra.mxu0 0
        %1012 = vmatprep.subr.bf16.mxu0 0
        %1013 = vmatpush1.bf16.msra.mxu0 0
        %1014 = vmatprep.subr.bf16.mxu0 0
        %1015 = vmatpush1.bf16.msra.mxu0 %v998
        %1016 = vmatprep.subr.bf16.mxu0 0
        %1017 = vmatpush2.bf16.msra.mxu0 0
        %1018 = vmatprep.subr.bf16.mxu0 0
        %1019 = vmatpush2.bf16.msra.mxu0 0
        %1020 = vmatprep.subr.bf16.mxu0 0
        %1021 = vmatpush2.bf16.msra.mxu0 0
        %1022 = vmatprep.subr.bf16.mxu0 0
        %1023 = vmatpush2.bf16.msra.mxu0 0
        %1024 = vmatprep.subr.bf16.mxu0 0
        %1025 = vmatpush2.bf16.msra.mxu0 0
        %1026 = vmatprep.subr.bf16.mxu0 0
        %1027 = vmatpush2.bf16.msra.mxu0 0
        %1028 = vmatprep.subr.bf16.mxu0 0
        %1029 = vmatpush2.bf16.msra.mxu0 0
        %1030 = vmatprep.subr.bf16.mxu0 0
        %1031 = vmatpush2.bf16.msra.mxu0 0
        %1032 = vmatprep.mubr.bf16.mxu0 0
        %1033 = vmatmul.mubr.bf16.gmra.mxu0 %v995
        %v1034 = vpop.f32.mrf.mxu0
        %v1035 = vadd.f32 0.0, %v1034
        %v1036 = vpop.f32.mrf.mxu0
        %v1037 = vpop.f32.mrf.mxu0
        %v1038 = vpop.f32.mrf.mxu0
        %1039 = vdwg.mxu0
        %v1040 = vld [vmem:[#allocation5] sm:$0xff]
        %1042 = vset.pattern.permute.xlu0 2
        %1043 = vperm.xlu0 %1042, %v974
        %v1044 = vpop.permute.xlu0 %1043
        %v1046 = vmul.f32 %v1044, %v1040
        %1048 = vrot.lane.b32.xlu0 %v1035, 16
        %v1049 = vpop.permute.xlu0 %1048
        %v1051 = vadd.f32 %v1046, %v1049
        %vm1052 = vcmask 195712
        %1053 = vst.msk [vmem:[#allocation5] sm:$0xff] %vm1052, %v1051
        %1054 = vst.msk [vmem:[#allocation3] sm:$0xff] %vm989, %v971
        %v1055 = vld [vmem:[#allocation2] sm:$0xf]
        %v1057 = vunpack.c.l.b16 %v1055
        %v1058 = vpack.c.b16 %v1057, %v1057
        %1059 = vrot.lane.b32.xlu0 %v1058, 104
        %v1060 = vpop.permute.xlu0 %1059
        %1061 = vrot.lane.b32.xlu0 %v619, 104
        %v1062 = vpop.permute.xlu0 %1061
        %v1064 = vsel %vm639, %v1060, 0
        %v1067 = vsel %vm639, %v1062, 0
        %1069 = vmatprep.subr.bf16.mxu0 0
        %1070 = vmatpush1.bf16.xpose.msra.mxu0 0
        %1071 = vmatprep.subr.bf16.mxu0 0
        %1072 = vmatpush1.bf16.xpose.msra.mxu0 0
        %1073 = vmatprep.subr.bf16.mxu0 0
        %1074 = vmatpush1.bf16.xpose.msra.mxu0 0
        %1075 = vmatprep.subr.bf16.mxu0 0
        %1076 = vmatpush1.bf16.xpose.msra.mxu0 0
        %1077 = vmatprep.subr.bf16.mxu0 0
        %1078 = vmatpush1.bf16.xpose.msra.mxu0 0
        %1079 = vmatprep.subr.bf16.mxu0 0
        %1080 = vmatpush1.bf16.xpose.msra.mxu0 0
        %1081 = vmatprep.subr.bf16.mxu0 0
        %1082 = vmatpush1.bf16.xpose.msra.mxu0 0
        %1083 = vmatprep.subr.bf16.mxu0 0
        %1084 = vmatpush1.bf16.xpose.msra.mxu0 %v1067
        %1085 = vmatprep.subr.bf16.mxu0 0
        %1086 = vmatpush2.bf16.xpose.msra.mxu0 0
        %1087 = vmatprep.subr.bf16.mxu0 0
        %1088 = vmatpush2.bf16.xpose.msra.mxu0 0
        %1089 = vmatprep.subr.bf16.mxu0 0
        %1090 = vmatpush2.bf16.xpose.msra.mxu0 0
        %1091 = vmatprep.subr.bf16.mxu0 0
        %1092 = vmatpush2.bf16.xpose.msra.mxu0 0
        %1093 = vmatprep.subr.bf16.mxu0 0
        %1094 = vmatpush2.bf16.xpose.msra.mxu0 0
        %1095 = vmatprep.subr.bf16.mxu0 0
        %1096 = vmatpush2.bf16.xpose.msra.mxu0 0
        %1097 = vmatprep.subr.bf16.mxu0 0
        %1098 = vmatpush2.bf16.xpose.msra.mxu0 0
        %1099 = vmatprep.subr.bf16.mxu0 0
        %1100 = vmatpush2.bf16.xpose.msra.mxu0 0
        %1101 = vmatprep.mubr.bf16.mxu0 0
        %1102 = vmatmul.mubr.bf16.gmra.mxu0 %v1064
        %v1103 = vpop.f32.mrf.mxu0
        %v1104 = vadd.f32 %v637, %v1103
        %v1105 = vpop.f32.mrf.mxu0
        %v1106 = vpop.f32.mrf.mxu0
        %v1107 = vpop.f32.mrf.mxu0
        %1108 = vdwg.mxu0
        %v1109 = vld [vmem:[#allocation3] sm:$0xff]
        %v1110 = vsel %vm639, %v1104, -inf
        %1111 = vmax.xlane.f32.xlu0 %v1110
        %v1112 = vpop.xlane.xlu0 %1111
        %v1113 = vmax.f32 %v1109, %v1112
        %v1114 = vsub.f32 %v1109, %v1113
        %v1115 = vmul.f32 %v1114, 1.442695
        %v1116 = vpow.pop %v1115
        %1118 = vset.pattern.permute.xlu0 3
        %1119 = vperm.xlu0 %1118, %v1113
        %v1120 = vpop.permute.xlu0 %1119
        %v1122 = vsub.f32 %v1104, %v1120
        %v1123 = vmul.f32 %v1122, 1.442695
        %v1124 = vpow.pop %v1123
        %v1125 = vld [vmem:[#allocation4] sm:$0xff]
        %v1126 = vmul.f32 %v1116, %v1125
        %v1127 = vsel %vm639, %v1124, 0.0
        %1128 = vadd.xlane.f32.xlu0 %v1127
        %v1129 = vpop.xlane.xlu0 %1128
        %v1130 = vadd.f32 %v1126, %v1129
        %vm1131 = vcmask 31768
        %1132 = vst.msk [vmem:[#allocation4] sm:$0xff] %vm1131, %v1130
        %v1133 = vpack.c.bf16 %v1124, %v1124
        %1134 = vrot.lane.b32.xlu0 %v619, 72
        %v1135 = vpop.permute.xlu0 %1134
        %v1137 = vsel %vm639, %v1133, 0
        %v1140 = vsel %vm717, %v1135, 0
        %1142 = vmatprep.subr.bf16.mxu0 0
        %1143 = vmatpush1.bf16.msra.mxu0 0
        %1144 = vmatprep.subr.bf16.mxu0 0
        %1145 = vmatpush1.bf16.msra.mxu0 0
        %1146 = vmatprep.subr.bf16.mxu0 0
        %1147 = vmatpush1.bf16.msra.mxu0 0
        %1148 = vmatprep.subr.bf16.mxu0 0
        %1149 = vmatpush1.bf16.msra.mxu0 0
        %1150 = vmatprep.subr.bf16.mxu0 0
        %1151 = vmatpush1.bf16.msra.mxu0 0
        %1152 = vmatprep.subr.bf16.mxu0 0
        %1153 = vmatpush1.bf16.msra.mxu0 0
        %1154 = vmatprep.subr.bf16.mxu0 0
        %1155 = vmatpush1.bf16.msra.mxu0 0
        %1156 = vmatprep.subr.bf16.mxu0 0
        %1157 = vmatpush1.bf16.msra.mxu0 %v1140
        %1158 = vmatprep.subr.bf16.mxu0 0
        %1159 = vmatpush2.bf16.msra.mxu0 0
        %1160 = vmatprep.subr.bf16.mxu0 0
        %1161 = vmatpush2.bf16.msra.mxu0 0
        %1162 = vmatprep.subr.bf16.mxu0 0
        %1163 = vmatpush2.bf16.msra.mxu0 0
        %1164 = vmatprep.subr.bf16.mxu0 0
        %1165 = vmatpush2.bf16.msra.mxu0 0
        %1166 = vmatprep.subr.bf16.mxu0 0
        %1167 = vmatpush2.bf16.msra.mxu0 0
        %1168 = vmatprep.subr.bf16.mxu0 0
        %1169 = vmatpush2.bf16.msra.mxu0 0
        %1170 = vmatprep.subr.bf16.mxu0 0
        %1171 = vmatpush2.bf16.msra.mxu0 0
        %1172 = vmatprep.subr.bf16.mxu0 0
        %1173 = vmatpush2.bf16.msra.mxu0 0
        %1174 = vmatprep.mubr.bf16.mxu0 0
        %1175 = vmatmul.mubr.bf16.gmra.mxu0 %v1137
        %v1176 = vpop.f32.mrf.mxu0
        %v1177 = vadd.f32 0.0, %v1176
        %v1178 = vpop.f32.mrf.mxu0
        %v1179 = vpop.f32.mrf.mxu0
        %v1180 = vpop.f32.mrf.mxu0
        %1181 = vdwg.mxu0
        %v1182 = vld [vmem:[#allocation5] sm:$0xff]
        %1184 = vset.pattern.permute.xlu0 3
        %1185 = vperm.xlu0 %1184, %v1116
        %v1186 = vpop.permute.xlu0 %1185
        %v1188 = vmul.f32 %v1186, %v1182
        %1190 = vrot.lane.b32.xlu0 %v1177, 24
        %v1191 = vpop.permute.xlu0 %1190
        %v1193 = vadd.f32 %v1188, %v1191
        %vm1194 = vcmask 261312
        %1195 = vst.msk [vmem:[#allocation5] sm:$0xff] %vm1194, %v1193
        %1196 = vst.msk [vmem:[#allocation3] sm:$0xff] %vm1131, %v1113
      $region72: #{transformer_decoder_forward.7} parent=63 // pred_fallthru
        _
      // Predicated region
      $region73: #{transformer_decoder_forward.7} parent=63 // pred_check
        %p1197 = pneg %p463
      $region74: #{transformer_decoder_forward.7} parent=63 // pred_check_branch
        %1199 = sbr.rel (%p1197) target = $region76
      $region75: #{transformer_decoder_forward.7} parent=63 // pred_region
        %v1200 = vld [vmem:[#allocation4] sm:$0xff]
        %v1201 = vrcp.pop %v1200
        %v1202 = vld [vmem:[#allocation5] sm:$0xff]
        %1204 = vset.pattern.permute.xlu0 0
        %1205 = vperm.xlu0 %1204, %v1201
        %v1206 = vpop.permute.xlu0 %1205
        %v1208 = vmul.f32 %v1202, %v1206
        %1209 = vset.pattern.permute.xlu0 1
        %1210 = vperm.xlu0 %1209, %v1201
        %v1211 = vpop.permute.xlu0 %1210
        %v1213 = vmul.f32 %v1202, %v1211
        %1214 = vset.pattern.permute.xlu0 2
        %1215 = vperm.xlu0 %1214, %v1201
        %v1216 = vpop.permute.xlu0 %1215
        %v1218 = vmul.f32 %v1202, %v1216
        %1219 = vset.pattern.permute.xlu0 3
        %1220 = vperm.xlu0 %1219, %v1201
        %v1221 = vpop.permute.xlu0 %1220
        %v1223 = vmul.f32 %v1202, %v1221
        %vm1224 = vcmask 64512
        %v1225 = vsel %vm1224, %v1208, %v1213
        %vm1226 = vcmask 130048
        %v1227 = vsel %vm1226, %v1225, %v1218
        %vm1228 = vcmask 195584
        %v1229 = vsel %vm1228, %v1227, %v1223
        %v1230 = vpack.c.bf16 %v1229, %v1229
        %v1231 = vld [vmem:[%s7] sm:$0xf]
        %v1232 = vld [vmem:[%s7 + $0x4] sm:$0xf]
        %v1233 = vld [vmem:[%s7 + $0x8] sm:$0xf]
        %v1234 = vld [vmem:[%s7 + $0xc] sm:$0xf]
        %v1235 = vld [vmem:[%s8] sm:$0x1]
        %v1237 = vlaneseq
        %v1238 = vshrl.u32 %v1237, 7
        %v1239 = vsub.s32 0, %v1238
        %v1240 = vrot.slane %v1235, %v1239
        %v1246 = vunpack.c.l.b16 %v1231
        %v1247 = vunpack.c.l.b16 %v1232
        %v1248 = vunpack.c.l.b16 %v1233
        %v1249 = vunpack.c.l.b16 %v1234
        %v1250 = vpack.c.b16 %v1247, %v1246
        %v1251 = vpack.c.b16 %v1249, %v1248
        %vm1254 = vcmask 261120
        %v1256 = vsel %vm1254, %v1230, 0
        %1258 = vmatprep.subr.bf16.mxu0 0
        %1259 = vmatpush1.bf16.msra.mxu0 0
        %1260 = vmatprep.subr.bf16.mxu0 0
        %1261 = vmatpush1.bf16.msra.mxu0 0
        %1262 = vmatprep.subr.bf16.mxu0 0
        %1263 = vmatpush1.bf16.msra.mxu0 0
        %1264 = vmatprep.subr.bf16.mxu0 0
        %1265 = vmatpush1.bf16.msra.mxu0 0
        %1266 = vmatprep.subr.bf16.mxu0 0
        %1267 = vmatpush1.bf16.msra.mxu0 0
        %1268 = vmatprep.subr.bf16.mxu0 0
        %1269 = vmatpush1.bf16.msra.mxu0 0
        %1270 = vmatprep.subr.bf16.mxu0 0
        %1271 = vmatpush1.bf16.msra.mxu0 %v1251
        %1272 = vmatprep.subr.bf16.mxu0 0
        %1273 = vmatpush1.bf16.msra.mxu0 %v1250
        %1274 = vmatprep.subr.bf16.mxu0 0
        %1275 = vmatpush2.bf16.msra.mxu0 0
        %1276 = vmatprep.subr.bf16.mxu0 0
        %1277 = vmatpush2.bf16.msra.mxu0 0
        %1278 = vmatprep.subr.bf16.mxu0 0
        %1279 = vmatpush2.bf16.msra.mxu0 0
        %1280 = vmatprep.subr.bf16.mxu0 0
        %1281 = vmatpush2.bf16.msra.mxu0 0
        %1282 = vmatprep.subr.bf16.mxu0 0
        %1283 = vmatpush2.bf16.msra.mxu0 0
        %1284 = vmatprep.subr.bf16.mxu0 0
        %1285 = vmatpush2.bf16.msra.mxu0 0
        %1286 = vmatprep.subr.bf16.mxu0 0
        %1287 = vmatpush2.bf16.msra.mxu0 0
        %1288 = vmatprep.subr.bf16.mxu0 0
        %1289 = vmatpush2.bf16.msra.mxu0 0
        %1290 = vmatprep.mubr.bf16.mxu0 0
        %1291 = vmatmul.mubr.bf16.gmra.mxu0 %v1256
        %v1292 = vpop.f32.mrf.mxu0
        %v1293 = vadd.f32 %v1240, %v1292
        %v1294 = vpop.f32.mrf.mxu0
        %v1295 = vpop.f32.mrf.mxu0
        %v1296 = vpop.f32.mrf.mxu0
        %1297 = vdwg.mxu0
        %v1298 = vld [vmem:[%s444] sm:$0xff]
        %v1299 = vadd.f32 %v1298, %v1293
        %v1300 = vld [vmem:[%s9] sm:$0x1]
        %v1301 = vld [vmem:[%s10] sm:$0x1]
        %v1302 = vsel %vm1254, %v1299, 0.0
        %1303 = vadd.xlane.f32.xlu0 %v1302
        %v1304 = vpop.xlane.xlu0 %1303
        %v1305 = vrcp.pop 32.0
        %v1306 = vmul.f32 %v1304, %v1305
        %v1307 = vsub.f32 %v1299, %v1306
        %v1308 = vmul.f32 %v1307, %v1307
        %v1309 = vsel %vm1254, %v1308, 0.0
        %1310 = vadd.xlane.f32.xlu0 %v1309
        %v1311 = vpop.xlane.xlu0 %1310
        %v1312 = vmul.f32 %v1311, %v1305
        %v1313 = vadd.f32 %v1312, 1e-05
        %v1314 = vrsqrt.pop %v1313
        %v1315 = vmul.f32 %v1307, %v1314
        %v1317 = vlaneseq
        %v1318 = vshrl.u32 %v1317, 7
        %v1319 = vsub.s32 0, %v1318
        %v1320 = vrot.slane %v1300, %v1319
        %v1322 = vmul.f32 %v1315, %v1320
        %v1324 = vlaneseq
        %v1325 = vshrl.u32 %v1324, 7
        %v1326 = vsub.s32 0, %v1325
        %v1327 = vrot.slane %v1301, %v1326
        %v1329 = vadd.f32 %v1322, %v1327
        %1330 = vst.msk [vmem:[%s461] sm:$0xff] %vm1254, %v1329
      $region76: #{transformer_decoder_forward.7} parent=63 // pred_fallthru
        _
      %p1331 = scmp.lt.s32.totalorder %s27, 1
      %s1332 = scalar_select %p1331, %s27, 1
      %p1333 = scmp.lt.s32.totalorder %s28, 0
      %s1334 = scalar_select %p1333, %s28, 0
      %s1335 = sadd.s32 %s1334, %s1332
      %s1336 = smul.addr %s1335, 8
      %s1337 = scalar_lea.vmem %s11, %s1336
      // Predicated region
      $region77: #{transformer_decoder_forward.7} parent=63 // pred_check
        %p1338 = pneg %p311
      $region78: #{transformer_decoder_forward.7} parent=63 // pred_check_branch
        %1340 = sbr.rel (%p1338) target = $region80
      $region79: #{transformer_decoder_forward.7} parent=63 // pred_region
        _
      $region80: #{transformer_decoder_forward.7} parent=63 // pred_fallthru
        _
    $region64: #{transformer_decoder_forward.7} parent=5 // pred_fallthru
      _
    %p1341 = scmp.le.s32.totalorder 2, %s17
    // Predicated region
    $region81: #{transformer_decoder_forward.7} parent=5 // pred_check
      %p1342 = pneg %p1341
    $region82: #{transformer_decoder_forward.7} parent=5 // pred_check_branch
      %1344 = sbr.rel (%p1342) target = $region84
    $region83: #{transformer_decoder_forward.7} parent=5 // pred_region
      %s1345 = ssub.s32 %s17, 2
      // Predicated region
      $region85: #{transformer_decoder_forward.7} parent=83 // pred_check
        %p1346 = pneg %p317
      $region86: #{transformer_decoder_forward.7} parent=83 // pred_check_branch
        %1348 = sbr.rel (%p1346) target = $region88
      $region87: #{transformer_decoder_forward.7} parent=83 // pred_region
        %p1349 = scmp.lt.s32.totalorder %s30, 1
        %s1350 = scalar_select %p1349, %s30, 1
        %p1351 = scmp.lt.s32.totalorder %s31, 0
        %s1352 = scalar_select %p1351, %s31, 0
        %s1353 = sadd.s32 %s1352, %s1350
        %s1354 = smul.addr %s1353, 8
        %s1355 = scalar_lea.vmem %s11, %s1354
      $region88: #{transformer_decoder_forward.7} parent=83 // pred_fallthru
        _
    $region84: #{transformer_decoder_forward.7} parent=5 // pred_fallthru
      _
  $region6: #{transformer_decoder_forward.7} parent=0 // loop_footer
    %s21 = sadd.s32 1, %s17
  $region7: #{transformer_decoder_forward.7} parent=0 // loop_footer_branch
    %16 = sbr.rel target = $region3
  $region8: #{transformer_decoder_forward.7} parent=0 // loop_exit
    _

</llo_original>
